<compile_context>
chip_gen: v7x
topology: tpu7x:2x2x1
jax: 0.10.0
libtpu: 0.0.40
codegen_flags: <defaults>
</compile_context>

<pallas_src>
import math
import jax
import jax.numpy as jnp
from jax.experimental import pallas as pl
from jax.experimental.pallas import tpu as pltpu

CONST_EXP_RANGE = 10.0
T_MIN = 1e-6
SQRT2 = math.sqrt(2.0)
LANES = 128


def _fast_recip(x):
    # EUP approximate reciprocal + one Newton step (~f32 accuracy, frees VALU slots).
    r = pl.reciprocal(x, approx=True)
    return r * (2.0 - x * r)


def _erf(x):
    # Abramowitz & Stegun 7.1.26 polynomial erf (|err| < 1.5e-7 ~ f32 roundoff).
    # TODO(synk): exact torch.erf parity is limited by this polynomial; Mosaic has no
    # guaranteed native erf lowering, so we build it from exp/abs/select.
    a1, a2, a3, a4, a5 = 0.254829592, -0.284496736, 1.421413741, -1.453152027, 1.061405429
    p = 0.3275911
    sgn = jnp.where(x >= 0.0, 1.0, -1.0)
    ax = jnp.abs(x)
    tt = _fast_recip(1.0 + p * ax)
    poly = ((((a5 * tt + a4) * tt + a3) * tt + a2) * tt + a1) * tt
    return sgn * (1.0 - poly * jnp.exp(-ax * ax))


def make_kernel(k, hidden, sigma_one, interior_edges):
    """Kernel closure over static bin edges / model width.

    interior_edges: the K-1 shared bin edges strictly inside (-1, 1); the outermost edges
    have statically-clamped CDF values 0 and 1 (paper eq. 108 clipping).
    """

    def kernel(mu_ref, t_ref, g_ref, w1_ref, b1_ref, w2t_ref, b2_ref, out_ref):
        mu = mu_ref[...]       # (TR, C) f32
        t = t_ref[...]         # (TR, C) f32
        gamma = g_ref[...]     # (TR, C) f32

        # ---- inner model (per-element MLP: [mu, t] -> hidden -> [mu_eps, ln_sigma_eps]) ----
        # Contraction over the hidden axis is unrolled; weights are scalar reads from SMEM.
        mu_eps = jnp.full_like(mu, b2_ref[0, 0])
        ln_sigma_eps = jnp.full_like(mu, b2_ref[0, 1])
        for j in range(hidden):
            h = jnp.maximum(mu * w1_ref[0, j] + t * w1_ref[1, j] + b1_ref[0, j], 0.0)
            mu_eps = mu_eps + h * w2t_ref[0, j]
            ln_sigma_eps = ln_sigma_eps + h * w2t_ref[1, j]

        # ---- discretised output distribution (paper eq. 108) ----
        inv_gamma = _fast_recip(gamma)
        var_scale = jnp.sqrt((1.0 - gamma) * inv_gamma)
        mu_x = mu * inv_gamma - var_scale * mu_eps
        sigma_x = jnp.maximum(
            var_scale * jnp.exp(jnp.clip(ln_sigma_eps, -CONST_EXP_RANGE, CONST_EXP_RANGE)),
            sigma_one,
        )
        tmask = t < T_MIN
        mu_x = jnp.where(tmask, 0.0, mu_x)
        sigma_x = jnp.where(tmask, 1.0, sigma_x)
        mu_x = jnp.clip(mu_x, -1.0, 1.0)

        # Hoisted per-edge affine transform: z = edge * inv + base  (== (edge - mu_x)/(sigma_x*sqrt2))
        inv = _fast_recip(sigma_x) * (1.0 / SQRT2)
        base = -mu_x * inv

        # Shared edges: CDF at the K+1 edges; edge 0 is clamped to 0, edge K to 1, only the
        # K-1 interior edges need an erf.  Bin probabilities are successive differences.
        prev_cdf = jnp.zeros_like(mu_x)
        for ki in range(k - 1):
            edge = float(interior_edges[ki])
            cur_cdf = 0.5 * (1.0 + _erf(edge * inv + base))
            out_ref[ki] = cur_cdf - prev_cdf       # (TR, C) lane-dense slab of (K, TR, C)
            prev_cdf = cur_cdf
        out_ref[k - 1] = 1.0 - prev_cdf

    return kernel


def discretised_output_distribution_pallas(mu, t, gamma, params, *, k, sigma_one):
    """mu, t, gamma: (B, D) float32.  Returns (B, D, K) float32 (== PyTorch output)."""
    B, D = mu.shape
    total = B * D
    C = LANES

    # Fold batch into the row axis; rows are multiples of 8 -> full (8,128) vregs.
    r_raw = -(-total // C)                              # ceil(total / C)
    tr = min(256, ((r_raw + 7) // 8) * 8)               # row tile (multiple of 8)
    r_pad = ((r_raw + tr - 1) // tr) * tr               # padded rows (multiple of tile)
    n_pad = r_pad * C - total

    def flat_pad(x, fill):
        xf = jnp.pad(x.reshape(-1), (0, n_pad), constant_values=fill)
        return xf.reshape(r_pad, C)

    # Padding values are numerically safe (gamma away from 0); padded outputs are discarded.
    mu_p = flat_pad(mu.astype(jnp.float32), 0.0)
    t_p = flat_pad(t.astype(jnp.float32), 1.0)
    g_p = flat_pad(gamma.astype(jnp.float32), 1.0 - float(sigma_one) ** 2)

    hidden = params["w1"].shape[1]
    interior_edges = [2.0 * (i + 1) / k - 1.0 for i in range(k - 1)]
    kernel = make_kernel(k, hidden, float(sigma_one), interior_edges)

    w1 = params["w1"].astype(jnp.float32)               # (2, H)
    b1 = params["b1"].astype(jnp.float32)               # (1, H)
    w2t = params["w2"].T.astype(jnp.float32)            # (2, H): long axis last -> less SMEM padding
    b2 = params["b2"].astype(jnp.float32)               # (1, 2)

    def smem_spec(shape):
        return pl.BlockSpec(shape, lambda i: (0,) * len(shape),
                            memory_space=pltpu.MemorySpace.SMEM)

    grid = (r_pad // tr,)
    out_krc = pl.pallas_call(
        kernel,
        out_shape=jax.ShapeDtypeStruct((k, r_pad, C), jnp.float32),
        grid=grid,
        in_specs=[
            pl.BlockSpec((tr, C), lambda i: (i, 0)),     # mu
            pl.BlockSpec((tr, C), lambda i: (i, 0)),     # t
            pl.BlockSpec((tr, C), lambda i: (i, 0)),     # gamma
            smem_spec(w1.shape),
            smem_spec(b1.shape),
            smem_spec(w2t.shape),
            smem_spec(b2.shape),
        ],
        out_specs=pl.BlockSpec((k, tr, C), lambda i: (0, i, 0)),
        compiler_params=pltpu.CompilerParams(
            dimension_semantics=("parallel",)),          # shards the row axis across TCs on v7x
    )(mu_p, t_p, g_p, w1, b1, w2t, b2)

    # TODO(synk): this K-last transpose is lane-sparse (K=16 on lanes); consumers that can take
    # the (K, B*D) layout directly (e.g. the sum over K in the sampler) should skip it.
    out = out_krc.reshape(k, r_pad * C)[:, :total].reshape(k, B, D)
    return jnp.transpose(out, (1, 2, 0))                 # -> (B, D, K)


def reference(mu, t, gamma, params, *, k, sigma_one):
    """Pure-JAX reference mirroring the PyTorch semantics (uses exact erf)."""
    w1, b1, w2, b2 = params["w1"], params["b1"], params["w2"], params["b2"]
    feat = jnp.stack([mu, t], axis=-1)                       # (B, D, 2)
    h = jax.nn.relu(jnp.einsum("bdi,ih->bdh", feat, w1) + b1[0])
    out = jnp.einsum("bdh,ho->bdo", h, w2) + b2[0]           # (B, D, 2)
    mu_eps, ln_sigma_eps = out[..., 0], out[..., 1]

    var_scale = jnp.sqrt((1.0 - gamma) / gamma)
    mu_x = mu / gamma - var_scale * mu_eps
    sigma_x = jnp.maximum(
        var_scale * jnp.exp(jnp.clip(ln_sigma_eps, -CONST_EXP_RANGE, CONST_EXP_RANGE)), sigma_one
    )
    mu_x = jnp.where(t < T_MIN, 0.0, mu_x)
    sigma_x = jnp.where(t < T_MIN, 1.0, sigma_x)
    mu_x = jnp.clip(mu_x, -1.0, 1.0)

    kc = (2.0 * jnp.arange(1, k + 1, dtype=jnp.float32) - 1.0) / k - 1.0
    klo, kup = kc - 1.0 / k, kc + 1.0 / k

    def cdf(edges):
        z = (edges - mu_x[..., None]) / (sigma_x[..., None] * SQRT2)
        return 0.5 * (1.0 + jax.scipy.special.erf(z))

    c_lo = jnp.where(klo <= -1.0, 0.0, cdf(klo))
    c_up = jnp.where(kup >= 1.0, 1.0, cdf(kup))
    return c_up - c_lo


if __name__ == "__main__":
    K = 16            # number of bins
    SIGMA_ONE = 0.02
    B, D, H = 2, 128, 32

    key = jax.random.PRNGKey(0)
    k_w1, k_w2, k_mu, k_t = jax.random.split(key, 4)

    # deterministic synthetic inner-model parameters (MLP: 2 -> H -> 2)
    params = {
        "w1": (0.5 * jax.random.normal(k_w1, (2, H))).astype(jnp.float32),
        "b1": (0.01 * jnp.arange(H, dtype=jnp.float32)).reshape(1, H),
        "w2": (0.5 * jax.random.normal(k_w2, (H, 2))).astype(jnp.float32),
        "b2": jnp.array([[0.0, -1.0]], dtype=jnp.float32),
    }

    # example inputs: noisy prior mean mu, per-batch time t broadcast over D, gamma = 1 - sigma_one^(2t)
    mu = (0.5 * jax.random.normal(k_mu, (B, D))).astype(jnp.float32)
    t = jnp.broadcast_to(jax.random.uniform(k_t, (B, 1), dtype=jnp.float32), (B, D))
    gamma = 1.0 - jnp.power(jnp.float32(SIGMA_ONE), 2.0 * t)

    out = discretised_output_distribution_pallas(mu, t, gamma, params, k=K, sigma_one=SIGMA_ONE)
    out = jax.block_until_ready(out)

    ref = reference(mu, t, gamma, params, k=K, sigma_one=SIGMA_ONE)
    assert out.shape == (B, D, K)
    err = float(jnp.max(jnp.abs(out - ref)))
    assert jnp.allclose(out, ref, atol=1e-4, rtol=1e-4), err
    # probabilities over bins telescope to exactly 1 with shared edges
    assert jnp.allclose(out.sum(-1), 1.0, atol=1e-4)

    print("KERNEL_OK")
</pallas_src>

<mosaic_0001>
module attributes {stable_mosaic.version = 11 : i64} {
  func.func @kernel(%arg0: i32, %arg1: memref<8x128xf32, #tpu.memory_space<vmem>>, %arg2: memref<8x128xf32, #tpu.memory_space<vmem>>, %arg3: memref<8x128xf32, #tpu.memory_space<vmem>>, %arg4: memref<2x32xf32, #tpu.memory_space<smem>>, %arg5: memref<1x32xf32, #tpu.memory_space<smem>>, %arg6: memref<2x32xf32, #tpu.memory_space<smem>>, %arg7: memref<1x2xf32, #tpu.memory_space<smem>>, %arg8: memref<16x8x128xf32, #tpu.memory_space<vmem>>) attributes {dimension_semantics = [#tpu.dimension_semantics<parallel>], iteration_bounds = array<i64: 1>, scalar_prefetch = 0 : i64, scratch_operands = 0 : i64, tpu.core_type = #tpu.core_type<tc>, window_params = [{transform_indices = @transform_0, window_bounds = array<i64: 8, 128>}, {transform_indices = @transform_1, window_bounds = array<i64: 8, 128>}, {transform_indices = @transform_2, window_bounds = array<i64: 8, 128>}, {transform_indices = @transform_3, window_bounds = array<i64: 2, 32>}, {transform_indices = @transform_4, window_bounds = array<i64: 1, 32>}, {transform_indices = @transform_5, window_bounds = array<i64: 2, 32>}, {transform_indices = @transform_6, window_bounds = array<i64: 1, 2>}, {transform_indices = @transform_7, window_bounds = array<i64: 16, 8, 128>}]} {
    %c0 = arith.constant 0 : index
    %c0_0 = arith.constant 0 : index
    %0 = vector.load %arg1[%c0, %c0_0] : memref<8x128xf32, #tpu.memory_space<vmem>>, vector<8x128xf32>
    %c0_1 = arith.constant 0 : index
    %c0_2 = arith.constant 0 : index
    %1 = vector.load %arg2[%c0_1, %c0_2] : memref<8x128xf32, #tpu.memory_space<vmem>>, vector<8x128xf32>
    %c0_3 = arith.constant 0 : index
    %c0_4 = arith.constant 0 : index
    %2 = vector.load %arg3[%c0_3, %c0_4] : memref<8x128xf32, #tpu.memory_space<vmem>>, vector<8x128xf32>
    %c0_5 = arith.constant 0 : index
    %c0_6 = arith.constant 0 : index
    %3 = memref.load %arg7[%c0_5, %c0_6] : memref<1x2xf32, #tpu.memory_space<smem>>
    %4 = vector.broadcast %3 : f32 to vector<8x128xf32>
    %c0_7 = arith.constant 0 : index
    %c1 = arith.constant 1 : index
    %5 = memref.load %arg7[%c0_7, %c1] : memref<1x2xf32, #tpu.memory_space<smem>>
    %6 = vector.broadcast %5 : f32 to vector<8x128xf32>
    %c0_8 = arith.constant 0 : index
    %c0_9 = arith.constant 0 : index
    %7 = memref.load %arg4[%c0_8, %c0_9] : memref<2x32xf32, #tpu.memory_space<smem>>
    %8 = vector.broadcast %7 : f32 to vector<8x128xf32>
    %9 = arith.mulf %0, %8 : vector<8x128xf32>
    %c1_10 = arith.constant 1 : index
    %c0_11 = arith.constant 0 : index
    %10 = memref.load %arg4[%c1_10, %c0_11] : memref<2x32xf32, #tpu.memory_space<smem>>
    %11 = vector.broadcast %10 : f32 to vector<8x128xf32>
    %12 = arith.mulf %1, %11 : vector<8x128xf32>
    %13 = arith.addf %9, %12 : vector<8x128xf32>
    %c0_12 = arith.constant 0 : index
    %c0_13 = arith.constant 0 : index
    %14 = memref.load %arg5[%c0_12, %c0_13] : memref<1x32xf32, #tpu.memory_space<smem>>
    %15 = vector.broadcast %14 : f32 to vector<8x128xf32>
    %16 = arith.addf %13, %15 : vector<8x128xf32>
    %cst = arith.constant 0.000000e+00 : f32
    %17 = vector.broadcast %cst : f32 to vector<8x128xf32>
    %18 = arith.maximumf %16, %17 : vector<8x128xf32>
    %c0_14 = arith.constant 0 : index
    %c0_15 = arith.constant 0 : index
    %19 = memref.load %arg6[%c0_14, %c0_15] : memref<2x32xf32, #tpu.memory_space<smem>>
    %20 = vector.broadcast %19 : f32 to vector<8x128xf32>
    %21 = arith.mulf %18, %20 : vector<8x128xf32>
    %22 = arith.addf %4, %21 : vector<8x128xf32>
    %c1_16 = arith.constant 1 : index
    %c0_17 = arith.constant 0 : index
    %23 = memref.load %arg6[%c1_16, %c0_17] : memref<2x32xf32, #tpu.memory_space<smem>>
    %24 = vector.broadcast %23 : f32 to vector<8x128xf32>
    %25 = arith.mulf %18, %24 : vector<8x128xf32>
    %26 = arith.addf %6, %25 : vector<8x128xf32>
    %c0_18 = arith.constant 0 : index
    %c1_19 = arith.constant 1 : index
    %27 = memref.load %arg4[%c0_18, %c1_19] : memref<2x32xf32, #tpu.memory_space<smem>>
    %28 = vector.broadcast %27 : f32 to vector<8x128xf32>
    %29 = arith.mulf %0, %28 : vector<8x128xf32>
    %c1_20 = arith.constant 1 : index
    %c1_21 = arith.constant 1 : index
    %30 = memref.load %arg4[%c1_20, %c1_21] : memref<2x32xf32, #tpu.memory_space<smem>>
    %31 = vector.broadcast %30 : f32 to vector<8x128xf32>
    %32 = arith.mulf %1, %31 : vector<8x128xf32>
    %33 = arith.addf %29, %32 : vector<8x128xf32>
    %c0_22 = arith.constant 0 : index
    %c1_23 = arith.constant 1 : index
    %34 = memref.load %arg5[%c0_22, %c1_23] : memref<1x32xf32, #tpu.memory_space<smem>>
    %35 = vector.broadcast %34 : f32 to vector<8x128xf32>
    %36 = arith.addf %33, %35 : vector<8x128xf32>
    %cst_24 = arith.constant 0.000000e+00 : f32
    %37 = vector.broadcast %cst_24 : f32 to vector<8x128xf32>
    %38 = arith.maximumf %36, %37 : vector<8x128xf32>
    %c0_25 = arith.constant 0 : index
    %c1_26 = arith.constant 1 : index
    %39 = memref.load %arg6[%c0_25, %c1_26] : memref<2x32xf32, #tpu.memory_space<smem>>
    %40 = vector.broadcast %39 : f32 to vector<8x128xf32>
    %41 = arith.mulf %38, %40 : vector<8x128xf32>
    %42 = arith.addf %22, %41 : vector<8x128xf32>
    %c1_27 = arith.constant 1 : index
    %c1_28 = arith.constant 1 : index
    %43 = memref.load %arg6[%c1_27, %c1_28] : memref<2x32xf32, #tpu.memory_space<smem>>
    %44 = vector.broadcast %43 : f32 to vector<8x128xf32>
    %45 = arith.mulf %38, %44 : vector<8x128xf32>
    %46 = arith.addf %26, %45 : vector<8x128xf32>
    %c0_29 = arith.constant 0 : index
    %c2 = arith.constant 2 : index
    %47 = memref.load %arg4[%c0_29, %c2] : memref<2x32xf32, #tpu.memory_space<smem>>
    %48 = vector.broadcast %47 : f32 to vector<8x128xf32>
    %49 = arith.mulf %0, %48 : vector<8x128xf32>
    %c1_30 = arith.constant 1 : index
    %c2_31 = arith.constant 2 : index
    %50 = memref.load %arg4[%c1_30, %c2_31] : memref<2x32xf32, #tpu.memory_space<smem>>
    %51 = vector.broadcast %50 : f32 to vector<8x128xf32>
    %52 = arith.mulf %1, %51 : vector<8x128xf32>
    %53 = arith.addf %49, %52 : vector<8x128xf32>
    %c0_32 = arith.constant 0 : index
    %c2_33 = arith.constant 2 : index
    %54 = memref.load %arg5[%c0_32, %c2_33] : memref<1x32xf32, #tpu.memory_space<smem>>
    %55 = vector.broadcast %54 : f32 to vector<8x128xf32>
    %56 = arith.addf %53, %55 : vector<8x128xf32>
    %cst_34 = arith.constant 0.000000e+00 : f32
    %57 = vector.broadcast %cst_34 : f32 to vector<8x128xf32>
    %58 = arith.maximumf %56, %57 : vector<8x128xf32>
    %c0_35 = arith.constant 0 : index
    %c2_36 = arith.constant 2 : index
    %59 = memref.load %arg6[%c0_35, %c2_36] : memref<2x32xf32, #tpu.memory_space<smem>>
    %60 = vector.broadcast %59 : f32 to vector<8x128xf32>
    %61 = arith.mulf %58, %60 : vector<8x128xf32>
    %62 = arith.addf %42, %61 : vector<8x128xf32>
    %c1_37 = arith.constant 1 : index
    %c2_38 = arith.constant 2 : index
    %63 = memref.load %arg6[%c1_37, %c2_38] : memref<2x32xf32, #tpu.memory_space<smem>>
    %64 = vector.broadcast %63 : f32 to vector<8x128xf32>
    %65 = arith.mulf %58, %64 : vector<8x128xf32>
    %66 = arith.addf %46, %65 : vector<8x128xf32>
    %c0_39 = arith.constant 0 : index
    %c3 = arith.constant 3 : index
    %67 = memref.load %arg4[%c0_39, %c3] : memref<2x32xf32, #tpu.memory_space<smem>>
    %68 = vector.broadcast %67 : f32 to vector<8x128xf32>
    %69 = arith.mulf %0, %68 : vector<8x128xf32>
    %c1_40 = arith.constant 1 : index
    %c3_41 = arith.constant 3 : index
    %70 = memref.load %arg4[%c1_40, %c3_41] : memref<2x32xf32, #tpu.memory_space<smem>>
    %71 = vector.broadcast %70 : f32 to vector<8x128xf32>
    %72 = arith.mulf %1, %71 : vector<8x128xf32>
    %73 = arith.addf %69, %72 : vector<8x128xf32>
    %c0_42 = arith.constant 0 : index
    %c3_43 = arith.constant 3 : index
    %74 = memref.load %arg5[%c0_42, %c3_43] : memref<1x32xf32, #tpu.memory_space<smem>>
    %75 = vector.broadcast %74 : f32 to vector<8x128xf32>
    %76 = arith.addf %73, %75 : vector<8x128xf32>
    %cst_44 = arith.constant 0.000000e+00 : f32
    %77 = vector.broadcast %cst_44 : f32 to vector<8x128xf32>
    %78 = arith.maximumf %76, %77 : vector<8x128xf32>
    %c0_45 = arith.constant 0 : index
    %c3_46 = arith.constant 3 : index
    %79 = memref.load %arg6[%c0_45, %c3_46] : memref<2x32xf32, #tpu.memory_space<smem>>
    %80 = vector.broadcast %79 : f32 to vector<8x128xf32>
    %81 = arith.mulf %78, %80 : vector<8x128xf32>
    %82 = arith.addf %62, %81 : vector<8x128xf32>
    %c1_47 = arith.constant 1 : index
    %c3_48 = arith.constant 3 : index
    %83 = memref.load %arg6[%c1_47, %c3_48] : memref<2x32xf32, #tpu.memory_space<smem>>
    %84 = vector.broadcast %83 : f32 to vector<8x128xf32>
    %85 = arith.mulf %78, %84 : vector<8x128xf32>
    %86 = arith.addf %66, %85 : vector<8x128xf32>
    %c0_49 = arith.constant 0 : index
    %c4 = arith.constant 4 : index
    %87 = memref.load %arg4[%c0_49, %c4] : memref<2x32xf32, #tpu.memory_space<smem>>
    %88 = vector.broadcast %87 : f32 to vector<8x128xf32>
    %89 = arith.mulf %0, %88 : vector<8x128xf32>
    %c1_50 = arith.constant 1 : index
    %c4_51 = arith.constant 4 : index
    %90 = memref.load %arg4[%c1_50, %c4_51] : memref<2x32xf32, #tpu.memory_space<smem>>
    %91 = vector.broadcast %90 : f32 to vector<8x128xf32>
    %92 = arith.mulf %1, %91 : vector<8x128xf32>
    %93 = arith.addf %89, %92 : vector<8x128xf32>
    %c0_52 = arith.constant 0 : index
    %c4_53 = arith.constant 4 : index
    %94 = memref.load %arg5[%c0_52, %c4_53] : memref<1x32xf32, #tpu.memory_space<smem>>
    %95 = vector.broadcast %94 : f32 to vector<8x128xf32>
    %96 = arith.addf %93, %95 : vector<8x128xf32>
    %cst_54 = arith.constant 0.000000e+00 : f32
    %97 = vector.broadcast %cst_54 : f32 to vector<8x128xf32>
    %98 = arith.maximumf %96, %97 : vector<8x128xf32>
    %c0_55 = arith.constant 0 : index
    %c4_56 = arith.constant 4 : index
    %99 = memref.load %arg6[%c0_55, %c4_56] : memref<2x32xf32, #tpu.memory_space<smem>>
    %100 = vector.broadcast %99 : f32 to vector<8x128xf32>
    %101 = arith.mulf %98, %100 : vector<8x128xf32>
    %102 = arith.addf %82, %101 : vector<8x128xf32>
    %c1_57 = arith.constant 1 : index
    %c4_58 = arith.constant 4 : index
    %103 = memref.load %arg6[%c1_57, %c4_58] : memref<2x32xf32, #tpu.memory_space<smem>>
    %104 = vector.broadcast %103 : f32 to vector<8x128xf32>
    %105 = arith.mulf %98, %104 : vector<8x128xf32>
    %106 = arith.addf %86, %105 : vector<8x128xf32>
    %c0_59 = arith.constant 0 : index
    %c5 = arith.constant 5 : index
    %107 = memref.load %arg4[%c0_59, %c5] : memref<2x32xf32, #tpu.memory_space<smem>>
    %108 = vector.broadcast %107 : f32 to vector<8x128xf32>
    %109 = arith.mulf %0, %108 : vector<8x128xf32>
    %c1_60 = arith.constant 1 : index
    %c5_61 = arith.constant 5 : index
    %110 = memref.load %arg4[%c1_60, %c5_61] : memref<2x32xf32, #tpu.memory_space<smem>>
    %111 = vector.broadcast %110 : f32 to vector<8x128xf32>
    %112 = arith.mulf %1, %111 : vector<8x128xf32>
    %113 = arith.addf %109, %112 : vector<8x128xf32>
    %c0_62 = arith.constant 0 : index
    %c5_63 = arith.constant 5 : index
    %114 = memref.load %arg5[%c0_62, %c5_63] : memref<1x32xf32, #tpu.memory_space<smem>>
    %115 = vector.broadcast %114 : f32 to vector<8x128xf32>
    %116 = arith.addf %113, %115 : vector<8x128xf32>
    %cst_64 = arith.constant 0.000000e+00 : f32
    %117 = vector.broadcast %cst_64 : f32 to vector<8x128xf32>
    %118 = arith.maximumf %116, %117 : vector<8x128xf32>
    %c0_65 = arith.constant 0 : index
    %c5_66 = arith.constant 5 : index
    %119 = memref.load %arg6[%c0_65, %c5_66] : memref<2x32xf32, #tpu.memory_space<smem>>
    %120 = vector.broadcast %119 : f32 to vector<8x128xf32>
    %121 = arith.mulf %118, %120 : vector<8x128xf32>
    %122 = arith.addf %102, %121 : vector<8x128xf32>
    %c1_67 = arith.constant 1 : index
    %c5_68 = arith.constant 5 : index
    %123 = memref.load %arg6[%c1_67, %c5_68] : memref<2x32xf32, #tpu.memory_space<smem>>
    %124 = vector.broadcast %123 : f32 to vector<8x128xf32>
    %125 = arith.mulf %118, %124 : vector<8x128xf32>
    %126 = arith.addf %106, %125 : vector<8x128xf32>
    %c0_69 = arith.constant 0 : index
    %c6 = arith.constant 6 : index
    %127 = memref.load %arg4[%c0_69, %c6] : memref<2x32xf32, #tpu.memory_space<smem>>
    %128 = vector.broadcast %127 : f32 to vector<8x128xf32>
    %129 = arith.mulf %0, %128 : vector<8x128xf32>
    %c1_70 = arith.constant 1 : index
    %c6_71 = arith.constant 6 : index
    %130 = memref.load %arg4[%c1_70, %c6_71] : memref<2x32xf32, #tpu.memory_space<smem>>
    %131 = vector.broadcast %130 : f32 to vector<8x128xf32>
    %132 = arith.mulf %1, %131 : vector<8x128xf32>
    %133 = arith.addf %129, %132 : vector<8x128xf32>
    %c0_72 = arith.constant 0 : index
    %c6_73 = arith.constant 6 : index
    %134 = memref.load %arg5[%c0_72, %c6_73] : memref<1x32xf32, #tpu.memory_space<smem>>
    %135 = vector.broadcast %134 : f32 to vector<8x128xf32>
    %136 = arith.addf %133, %135 : vector<8x128xf32>
    %cst_74 = arith.constant 0.000000e+00 : f32
    %137 = vector.broadcast %cst_74 : f32 to vector<8x128xf32>
    %138 = arith.maximumf %136, %137 : vector<8x128xf32>
    %c0_75 = arith.constant 0 : index
    %c6_76 = arith.constant 6 : index
    %139 = memref.load %arg6[%c0_75, %c6_76] : memref<2x32xf32, #tpu.memory_space<smem>>
    %140 = vector.broadcast %139 : f32 to vector<8x128xf32>
    %141 = arith.mulf %138, %140 : vector<8x128xf32>
    %142 = arith.addf %122, %141 : vector<8x128xf32>
    %c1_77 = arith.constant 1 : index
    %c6_78 = arith.constant 6 : index
    %143 = memref.load %arg6[%c1_77, %c6_78] : memref<2x32xf32, #tpu.memory_space<smem>>
    %144 = vector.broadcast %143 : f32 to vector<8x128xf32>
    %145 = arith.mulf %138, %144 : vector<8x128xf32>
    %146 = arith.addf %126, %145 : vector<8x128xf32>
    %c0_79 = arith.constant 0 : index
    %c7 = arith.constant 7 : index
    %147 = memref.load %arg4[%c0_79, %c7] : memref<2x32xf32, #tpu.memory_space<smem>>
    %148 = vector.broadcast %147 : f32 to vector<8x128xf32>
    %149 = arith.mulf %0, %148 : vector<8x128xf32>
    %c1_80 = arith.constant 1 : index
    %c7_81 = arith.constant 7 : index
    %150 = memref.load %arg4[%c1_80, %c7_81] : memref<2x32xf32, #tpu.memory_space<smem>>
    %151 = vector.broadcast %150 : f32 to vector<8x128xf32>
    %152 = arith.mulf %1, %151 : vector<8x128xf32>
    %153 = arith.addf %149, %152 : vector<8x128xf32>
    %c0_82 = arith.constant 0 : index
    %c7_83 = arith.constant 7 : index
    %154 = memref.load %arg5[%c0_82, %c7_83] : memref<1x32xf32, #tpu.memory_space<smem>>
    %155 = vector.broadcast %154 : f32 to vector<8x128xf32>
    %156 = arith.addf %153, %155 : vector<8x128xf32>
    %cst_84 = arith.constant 0.000000e+00 : f32
    %157 = vector.broadcast %cst_84 : f32 to vector<8x128xf32>
    %158 = arith.maximumf %156, %157 : vector<8x128xf32>
    %c0_85 = arith.constant 0 : index
    %c7_86 = arith.constant 7 : index
    %159 = memref.load %arg6[%c0_85, %c7_86] : memref<2x32xf32, #tpu.memory_space<smem>>
    %160 = vector.broadcast %159 : f32 to vector<8x128xf32>
    %161 = arith.mulf %158, %160 : vector<8x128xf32>
    %162 = arith.addf %142, %161 : vector<8x128xf32>
    %c1_87 = arith.constant 1 : index
    %c7_88 = arith.constant 7 : index
    %163 = memref.load %arg6[%c1_87, %c7_88] : memref<2x32xf32, #tpu.memory_space<smem>>
    %164 = vector.broadcast %163 : f32 to vector<8x128xf32>
    %165 = arith.mulf %158, %164 : vector<8x128xf32>
    %166 = arith.addf %146, %165 : vector<8x128xf32>
    %c0_89 = arith.constant 0 : index
    %c8 = arith.constant 8 : index
    %167 = memref.load %arg4[%c0_89, %c8] : memref<2x32xf32, #tpu.memory_space<smem>>
    %168 = vector.broadcast %167 : f32 to vector<8x128xf32>
    %169 = arith.mulf %0, %168 : vector<8x128xf32>
    %c1_90 = arith.constant 1 : index
    %c8_91 = arith.constant 8 : index
    %170 = memref.load %arg4[%c1_90, %c8_91] : memref<2x32xf32, #tpu.memory_space<smem>>
    %171 = vector.broadcast %170 : f32 to vector<8x128xf32>
    %172 = arith.mulf %1, %171 : vector<8x128xf32>
    %173 = arith.addf %169, %172 : vector<8x128xf32>
    %c0_92 = arith.constant 0 : index
    %c8_93 = arith.constant 8 : index
    %174 = memref.load %arg5[%c0_92, %c8_93] : memref<1x32xf32, #tpu.memory_space<smem>>
    %175 = vector.broadcast %174 : f32 to vector<8x128xf32>
    %176 = arith.addf %173, %175 : vector<8x128xf32>
    %cst_94 = arith.constant 0.000000e+00 : f32
    %177 = vector.broadcast %cst_94 : f32 to vector<8x128xf32>
    %178 = arith.maximumf %176, %177 : vector<8x128xf32>
    %c0_95 = arith.constant 0 : index
    %c8_96 = arith.constant 8 : index
    %179 = memref.load %arg6[%c0_95, %c8_96] : memref<2x32xf32, #tpu.memory_space<smem>>
    %180 = vector.broadcast %179 : f32 to vector<8x128xf32>
    %181 = arith.mulf %178, %180 : vector<8x128xf32>
    %182 = arith.addf %162, %181 : vector<8x128xf32>
    %c1_97 = arith.constant 1 : index
    %c8_98 = arith.constant 8 : index
    %183 = memref.load %arg6[%c1_97, %c8_98] : memref<2x32xf32, #tpu.memory_space<smem>>
    %184 = vector.broadcast %183 : f32 to vector<8x128xf32>
    %185 = arith.mulf %178, %184 : vector<8x128xf32>
    %186 = arith.addf %166, %185 : vector<8x128xf32>
    %c0_99 = arith.constant 0 : index
    %c9 = arith.constant 9 : index
    %187 = memref.load %arg4[%c0_99, %c9] : memref<2x32xf32, #tpu.memory_space<smem>>
    %188 = vector.broadcast %187 : f32 to vector<8x128xf32>
    %189 = arith.mulf %0, %188 : vector<8x128xf32>
    %c1_100 = arith.constant 1 : index
    %c9_101 = arith.constant 9 : index
    %190 = memref.load %arg4[%c1_100, %c9_101] : memref<2x32xf32, #tpu.memory_space<smem>>
    %191 = vector.broadcast %190 : f32 to vector<8x128xf32>
    %192 = arith.mulf %1, %191 : vector<8x128xf32>
    %193 = arith.addf %189, %192 : vector<8x128xf32>
    %c0_102 = arith.constant 0 : index
    %c9_103 = arith.constant 9 : index
    %194 = memref.load %arg5[%c0_102, %c9_103] : memref<1x32xf32, #tpu.memory_space<smem>>
    %195 = vector.broadcast %194 : f32 to vector<8x128xf32>
    %196 = arith.addf %193, %195 : vector<8x128xf32>
    %cst_104 = arith.constant 0.000000e+00 : f32
    %197 = vector.broadcast %cst_104 : f32 to vector<8x128xf32>
    %198 = arith.maximumf %196, %197 : vector<8x128xf32>
    %c0_105 = arith.constant 0 : index
    %c9_106 = arith.constant 9 : index
    %199 = memref.load %arg6[%c0_105, %c9_106] : memref<2x32xf32, #tpu.memory_space<smem>>
    %200 = vector.broadcast %199 : f32 to vector<8x128xf32>
    %201 = arith.mulf %198, %200 : vector<8x128xf32>
    %202 = arith.addf %182, %201 : vector<8x128xf32>
    %c1_107 = arith.constant 1 : index
    %c9_108 = arith.constant 9 : index
    %203 = memref.load %arg6[%c1_107, %c9_108] : memref<2x32xf32, #tpu.memory_space<smem>>
    %204 = vector.broadcast %203 : f32 to vector<8x128xf32>
    %205 = arith.mulf %198, %204 : vector<8x128xf32>
    %206 = arith.addf %186, %205 : vector<8x128xf32>
    %c0_109 = arith.constant 0 : index
    %c10 = arith.constant 10 : index
    %207 = memref.load %arg4[%c0_109, %c10] : memref<2x32xf32, #tpu.memory_space<smem>>
    %208 = vector.broadcast %207 : f32 to vector<8x128xf32>
    %209 = arith.mulf %0, %208 : vector<8x128xf32>
    %c1_110 = arith.constant 1 : index
    %c10_111 = arith.constant 10 : index
    %210 = memref.load %arg4[%c1_110, %c10_111] : memref<2x32xf32, #tpu.memory_space<smem>>
    %211 = vector.broadcast %210 : f32 to vector<8x128xf32>
    %212 = arith.mulf %1, %211 : vector<8x128xf32>
    %213 = arith.addf %209, %212 : vector<8x128xf32>
    %c0_112 = arith.constant 0 : index
    %c10_113 = arith.constant 10 : index
    %214 = memref.load %arg5[%c0_112, %c10_113] : memref<1x32xf32, #tpu.memory_space<smem>>
    %215 = vector.broadcast %214 : f32 to vector<8x128xf32>
    %216 = arith.addf %213, %215 : vector<8x128xf32>
    %cst_114 = arith.constant 0.000000e+00 : f32
    %217 = vector.broadcast %cst_114 : f32 to vector<8x128xf32>
    %218 = arith.maximumf %216, %217 : vector<8x128xf32>
    %c0_115 = arith.constant 0 : index
    %c10_116 = arith.constant 10 : index
    %219 = memref.load %arg6[%c0_115, %c10_116] : memref<2x32xf32, #tpu.memory_space<smem>>
    %220 = vector.broadcast %219 : f32 to vector<8x128xf32>
    %221 = arith.mulf %218, %220 : vector<8x128xf32>
    %222 = arith.addf %202, %221 : vector<8x128xf32>
    %c1_117 = arith.constant 1 : index
    %c10_118 = arith.constant 10 : index
    %223 = memref.load %arg6[%c1_117, %c10_118] : memref<2x32xf32, #tpu.memory_space<smem>>
    %224 = vector.broadcast %223 : f32 to vector<8x128xf32>
    %225 = arith.mulf %218, %224 : vector<8x128xf32>
    %226 = arith.addf %206, %225 : vector<8x128xf32>
    %c0_119 = arith.constant 0 : index
    %c11 = arith.constant 11 : index
    %227 = memref.load %arg4[%c0_119, %c11] : memref<2x32xf32, #tpu.memory_space<smem>>
    %228 = vector.broadcast %227 : f32 to vector<8x128xf32>
    %229 = arith.mulf %0, %228 : vector<8x128xf32>
    %c1_120 = arith.constant 1 : index
    %c11_121 = arith.constant 11 : index
    %230 = memref.load %arg4[%c1_120, %c11_121] : memref<2x32xf32, #tpu.memory_space<smem>>
    %231 = vector.broadcast %230 : f32 to vector<8x128xf32>
    %232 = arith.mulf %1, %231 : vector<8x128xf32>
    %233 = arith.addf %229, %232 : vector<8x128xf32>
    %c0_122 = arith.constant 0 : index
    %c11_123 = arith.constant 11 : index
    %234 = memref.load %arg5[%c0_122, %c11_123] : memref<1x32xf32, #tpu.memory_space<smem>>
    %235 = vector.broadcast %234 : f32 to vector<8x128xf32>
    %236 = arith.addf %233, %235 : vector<8x128xf32>
    %cst_124 = arith.constant 0.000000e+00 : f32
    %237 = vector.broadcast %cst_124 : f32 to vector<8x128xf32>
    %238 = arith.maximumf %236, %237 : vector<8x128xf32>
    %c0_125 = arith.constant 0 : index
    %c11_126 = arith.constant 11 : index
    %239 = memref.load %arg6[%c0_125, %c11_126] : memref<2x32xf32, #tpu.memory_space<smem>>
    %240 = vector.broadcast %239 : f32 to vector<8x128xf32>
    %241 = arith.mulf %238, %240 : vector<8x128xf32>
    %242 = arith.addf %222, %241 : vector<8x128xf32>
    %c1_127 = arith.constant 1 : index
    %c11_128 = arith.constant 11 : index
    %243 = memref.load %arg6[%c1_127, %c11_128] : memref<2x32xf32, #tpu.memory_space<smem>>
    %244 = vector.broadcast %243 : f32 to vector<8x128xf32>
    %245 = arith.mulf %238, %244 : vector<8x128xf32>
    %246 = arith.addf %226, %245 : vector<8x128xf32>
    %c0_129 = arith.constant 0 : index
    %c12 = arith.constant 12 : index
    %247 = memref.load %arg4[%c0_129, %c12] : memref<2x32xf32, #tpu.memory_space<smem>>
    %248 = vector.broadcast %247 : f32 to vector<8x128xf32>
    %249 = arith.mulf %0, %248 : vector<8x128xf32>
    %c1_130 = arith.constant 1 : index
    %c12_131 = arith.constant 12 : index
    %250 = memref.load %arg4[%c1_130, %c12_131] : memref<2x32xf32, #tpu.memory_space<smem>>
    %251 = vector.broadcast %250 : f32 to vector<8x128xf32>
    %252 = arith.mulf %1, %251 : vector<8x128xf32>
    %253 = arith.addf %249, %252 : vector<8x128xf32>
    %c0_132 = arith.constant 0 : index
    %c12_133 = arith.constant 12 : index
    %254 = memref.load %arg5[%c0_132, %c12_133] : memref<1x32xf32, #tpu.memory_space<smem>>
    %255 = vector.broadcast %254 : f32 to vector<8x128xf32>
    %256 = arith.addf %253, %255 : vector<8x128xf32>
    %cst_134 = arith.constant 0.000000e+00 : f32
    %257 = vector.broadcast %cst_134 : f32 to vector<8x128xf32>
    %258 = arith.maximumf %256, %257 : vector<8x128xf32>
    %c0_135 = arith.constant 0 : index
    %c12_136 = arith.constant 12 : index
    %259 = memref.load %arg6[%c0_135, %c12_136] : memref<2x32xf32, #tpu.memory_space<smem>>
    %260 = vector.broadcast %259 : f32 to vector<8x128xf32>
    %261 = arith.mulf %258, %260 : vector<8x128xf32>
    %262 = arith.addf %242, %261 : vector<8x128xf32>
    %c1_137 = arith.constant 1 : index
    %c12_138 = arith.constant 12 : index
    %263 = memref.load %arg6[%c1_137, %c12_138] : memref<2x32xf32, #tpu.memory_space<smem>>
    %264 = vector.broadcast %263 : f32 to vector<8x128xf32>
    %265 = arith.mulf %258, %264 : vector<8x128xf32>
    %266 = arith.addf %246, %265 : vector<8x128xf32>
    %c0_139 = arith.constant 0 : index
    %c13 = arith.constant 13 : index
    %267 = memref.load %arg4[%c0_139, %c13] : memref<2x32xf32, #tpu.memory_space<smem>>
    %268 = vector.broadcast %267 : f32 to vector<8x128xf32>
    %269 = arith.mulf %0, %268 : vector<8x128xf32>
    %c1_140 = arith.constant 1 : index
    %c13_141 = arith.constant 13 : index
    %270 = memref.load %arg4[%c1_140, %c13_141] : memref<2x32xf32, #tpu.memory_space<smem>>
    %271 = vector.broadcast %270 : f32 to vector<8x128xf32>
    %272 = arith.mulf %1, %271 : vector<8x128xf32>
    %273 = arith.addf %269, %272 : vector<8x128xf32>
    %c0_142 = arith.constant 0 : index
    %c13_143 = arith.constant 13 : index
    %274 = memref.load %arg5[%c0_142, %c13_143] : memref<1x32xf32, #tpu.memory_space<smem>>
    %275 = vector.broadcast %274 : f32 to vector<8x128xf32>
    %276 = arith.addf %273, %275 : vector<8x128xf32>
    %cst_144 = arith.constant 0.000000e+00 : f32
    %277 = vector.broadcast %cst_144 : f32 to vector<8x128xf32>
    %278 = arith.maximumf %276, %277 : vector<8x128xf32>
    %c0_145 = arith.constant 0 : index
    %c13_146 = arith.constant 13 : index
    %279 = memref.load %arg6[%c0_145, %c13_146] : memref<2x32xf32, #tpu.memory_space<smem>>
    %280 = vector.broadcast %279 : f32 to vector<8x128xf32>
    %281 = arith.mulf %278, %280 : vector<8x128xf32>
    %282 = arith.addf %262, %281 : vector<8x128xf32>
    %c1_147 = arith.constant 1 : index
    %c13_148 = arith.constant 13 : index
    %283 = memref.load %arg6[%c1_147, %c13_148] : memref<2x32xf32, #tpu.memory_space<smem>>
    %284 = vector.broadcast %283 : f32 to vector<8x128xf32>
    %285 = arith.mulf %278, %284 : vector<8x128xf32>
    %286 = arith.addf %266, %285 : vector<8x128xf32>
    %c0_149 = arith.constant 0 : index
    %c14 = arith.constant 14 : index
    %287 = memref.load %arg4[%c0_149, %c14] : memref<2x32xf32, #tpu.memory_space<smem>>
    %288 = vector.broadcast %287 : f32 to vector<8x128xf32>
    %289 = arith.mulf %0, %288 : vector<8x128xf32>
    %c1_150 = arith.constant 1 : index
    %c14_151 = arith.constant 14 : index
    %290 = memref.load %arg4[%c1_150, %c14_151] : memref<2x32xf32, #tpu.memory_space<smem>>
    %291 = vector.broadcast %290 : f32 to vector<8x128xf32>
    %292 = arith.mulf %1, %291 : vector<8x128xf32>
    %293 = arith.addf %289, %292 : vector<8x128xf32>
    %c0_152 = arith.constant 0 : index
    %c14_153 = arith.constant 14 : index
    %294 = memref.load %arg5[%c0_152, %c14_153] : memref<1x32xf32, #tpu.memory_space<smem>>
    %295 = vector.broadcast %294 : f32 to vector<8x128xf32>
    %296 = arith.addf %293, %295 : vector<8x128xf32>
    %cst_154 = arith.constant 0.000000e+00 : f32
    %297 = vector.broadcast %cst_154 : f32 to vector<8x128xf32>
    %298 = arith.maximumf %296, %297 : vector<8x128xf32>
    %c0_155 = arith.constant 0 : index
    %c14_156 = arith.constant 14 : index
    %299 = memref.load %arg6[%c0_155, %c14_156] : memref<2x32xf32, #tpu.memory_space<smem>>
    %300 = vector.broadcast %299 : f32 to vector<8x128xf32>
    %301 = arith.mulf %298, %300 : vector<8x128xf32>
    %302 = arith.addf %282, %301 : vector<8x128xf32>
    %c1_157 = arith.constant 1 : index
    %c14_158 = arith.constant 14 : index
    %303 = memref.load %arg6[%c1_157, %c14_158] : memref<2x32xf32, #tpu.memory_space<smem>>
    %304 = vector.broadcast %303 : f32 to vector<8x128xf32>
    %305 = arith.mulf %298, %304 : vector<8x128xf32>
    %306 = arith.addf %286, %305 : vector<8x128xf32>
    %c0_159 = arith.constant 0 : index
    %c15 = arith.constant 15 : index
    %307 = memref.load %arg4[%c0_159, %c15] : memref<2x32xf32, #tpu.memory_space<smem>>
    %308 = vector.broadcast %307 : f32 to vector<8x128xf32>
    %309 = arith.mulf %0, %308 : vector<8x128xf32>
    %c1_160 = arith.constant 1 : index
    %c15_161 = arith.constant 15 : index
    %310 = memref.load %arg4[%c1_160, %c15_161] : memref<2x32xf32, #tpu.memory_space<smem>>
    %311 = vector.broadcast %310 : f32 to vector<8x128xf32>
    %312 = arith.mulf %1, %311 : vector<8x128xf32>
    %313 = arith.addf %309, %312 : vector<8x128xf32>
    %c0_162 = arith.constant 0 : index
    %c15_163 = arith.constant 15 : index
    %314 = memref.load %arg5[%c0_162, %c15_163] : memref<1x32xf32, #tpu.memory_space<smem>>
    %315 = vector.broadcast %314 : f32 to vector<8x128xf32>
    %316 = arith.addf %313, %315 : vector<8x128xf32>
    %cst_164 = arith.constant 0.000000e+00 : f32
    %317 = vector.broadcast %cst_164 : f32 to vector<8x128xf32>
    %318 = arith.maximumf %316, %317 : vector<8x128xf32>
    %c0_165 = arith.constant 0 : index
    %c15_166 = arith.constant 15 : index
    %319 = memref.load %arg6[%c0_165, %c15_166] : memref<2x32xf32, #tpu.memory_space<smem>>
    %320 = vector.broadcast %319 : f32 to vector<8x128xf32>
    %321 = arith.mulf %318, %320 : vector<8x128xf32>
    %322 = arith.addf %302, %321 : vector<8x128xf32>
    %c1_167 = arith.constant 1 : index
    %c15_168 = arith.constant 15 : index
    %323 = memref.load %arg6[%c1_167, %c15_168] : memref<2x32xf32, #tpu.memory_space<smem>>
    %324 = vector.broadcast %323 : f32 to vector<8x128xf32>
    %325 = arith.mulf %318, %324 : vector<8x128xf32>
    %326 = arith.addf %306, %325 : vector<8x128xf32>
    %c0_169 = arith.constant 0 : index
    %c16 = arith.constant 16 : index
    %327 = memref.load %arg4[%c0_169, %c16] : memref<2x32xf32, #tpu.memory_space<smem>>
    %328 = vector.broadcast %327 : f32 to vector<8x128xf32>
    %329 = arith.mulf %0, %328 : vector<8x128xf32>
    %c1_170 = arith.constant 1 : index
    %c16_171 = arith.constant 16 : index
    %330 = memref.load %arg4[%c1_170, %c16_171] : memref<2x32xf32, #tpu.memory_space<smem>>
    %331 = vector.broadcast %330 : f32 to vector<8x128xf32>
    %332 = arith.mulf %1, %331 : vector<8x128xf32>
    %333 = arith.addf %329, %332 : vector<8x128xf32>
    %c0_172 = arith.constant 0 : index
    %c16_173 = arith.constant 16 : index
    %334 = memref.load %arg5[%c0_172, %c16_173] : memref<1x32xf32, #tpu.memory_space<smem>>
    %335 = vector.broadcast %334 : f32 to vector<8x128xf32>
    %336 = arith.addf %333, %335 : vector<8x128xf32>
    %cst_174 = arith.constant 0.000000e+00 : f32
    %337 = vector.broadcast %cst_174 : f32 to vector<8x128xf32>
    %338 = arith.maximumf %336, %337 : vector<8x128xf32>
    %c0_175 = arith.constant 0 : index
    %c16_176 = arith.constant 16 : index
    %339 = memref.load %arg6[%c0_175, %c16_176] : memref<2x32xf32, #tpu.memory_space<smem>>
    %340 = vector.broadcast %339 : f32 to vector<8x128xf32>
    %341 = arith.mulf %338, %340 : vector<8x128xf32>
    %342 = arith.addf %322, %341 : vector<8x128xf32>
    %c1_177 = arith.constant 1 : index
    %c16_178 = arith.constant 16 : index
    %343 = memref.load %arg6[%c1_177, %c16_178] : memref<2x32xf32, #tpu.memory_space<smem>>
    %344 = vector.broadcast %343 : f32 to vector<8x128xf32>
    %345 = arith.mulf %338, %344 : vector<8x128xf32>
    %346 = arith.addf %326, %345 : vector<8x128xf32>
    %c0_179 = arith.constant 0 : index
    %c17 = arith.constant 17 : index
    %347 = memref.load %arg4[%c0_179, %c17] : memref<2x32xf32, #tpu.memory_space<smem>>
    %348 = vector.broadcast %347 : f32 to vector<8x128xf32>
    %349 = arith.mulf %0, %348 : vector<8x128xf32>
    %c1_180 = arith.constant 1 : index
    %c17_181 = arith.constant 17 : index
    %350 = memref.load %arg4[%c1_180, %c17_181] : memref<2x32xf32, #tpu.memory_space<smem>>
    %351 = vector.broadcast %350 : f32 to vector<8x128xf32>
    %352 = arith.mulf %1, %351 : vector<8x128xf32>
    %353 = arith.addf %349, %352 : vector<8x128xf32>
    %c0_182 = arith.constant 0 : index
    %c17_183 = arith.constant 17 : index
    %354 = memref.load %arg5[%c0_182, %c17_183] : memref<1x32xf32, #tpu.memory_space<smem>>
    %355 = vector.broadcast %354 : f32 to vector<8x128xf32>
    %356 = arith.addf %353, %355 : vector<8x128xf32>
    %cst_184 = arith.constant 0.000000e+00 : f32
    %357 = vector.broadcast %cst_184 : f32 to vector<8x128xf32>
    %358 = arith.maximumf %356, %357 : vector<8x128xf32>
    %c0_185 = arith.constant 0 : index
    %c17_186 = arith.constant 17 : index
    %359 = memref.load %arg6[%c0_185, %c17_186] : memref<2x32xf32, #tpu.memory_space<smem>>
    %360 = vector.broadcast %359 : f32 to vector<8x128xf32>
    %361 = arith.mulf %358, %360 : vector<8x128xf32>
    %362 = arith.addf %342, %361 : vector<8x128xf32>
    %c1_187 = arith.constant 1 : index
    %c17_188 = arith.constant 17 : index
    %363 = memref.load %arg6[%c1_187, %c17_188] : memref<2x32xf32, #tpu.memory_space<smem>>
    %364 = vector.broadcast %363 : f32 to vector<8x128xf32>
    %365 = arith.mulf %358, %364 : vector<8x128xf32>
    %366 = arith.addf %346, %365 : vector<8x128xf32>
    %c0_189 = arith.constant 0 : index
    %c18 = arith.constant 18 : index
    %367 = memref.load %arg4[%c0_189, %c18] : memref<2x32xf32, #tpu.memory_space<smem>>
    %368 = vector.broadcast %367 : f32 to vector<8x128xf32>
    %369 = arith.mulf %0, %368 : vector<8x128xf32>
    %c1_190 = arith.constant 1 : index
    %c18_191 = arith.constant 18 : index
    %370 = memref.load %arg4[%c1_190, %c18_191] : memref<2x32xf32, #tpu.memory_space<smem>>
    %371 = vector.broadcast %370 : f32 to vector<8x128xf32>
    %372 = arith.mulf %1, %371 : vector<8x128xf32>
    %373 = arith.addf %369, %372 : vector<8x128xf32>
    %c0_192 = arith.constant 0 : index
    %c18_193 = arith.constant 18 : index
    %374 = memref.load %arg5[%c0_192, %c18_193] : memref<1x32xf32, #tpu.memory_space<smem>>
    %375 = vector.broadcast %374 : f32 to vector<8x128xf32>
    %376 = arith.addf %373, %375 : vector<8x128xf32>
    %cst_194 = arith.constant 0.000000e+00 : f32
    %377 = vector.broadcast %cst_194 : f32 to vector<8x128xf32>
    %378 = arith.maximumf %376, %377 : vector<8x128xf32>
    %c0_195 = arith.constant 0 : index
    %c18_196 = arith.constant 18 : index
    %379 = memref.load %arg6[%c0_195, %c18_196] : memref<2x32xf32, #tpu.memory_space<smem>>
    %380 = vector.broadcast %379 : f32 to vector<8x128xf32>
    %381 = arith.mulf %378, %380 : vector<8x128xf32>
    %382 = arith.addf %362, %381 : vector<8x128xf32>
    %c1_197 = arith.constant 1 : index
    %c18_198 = arith.constant 18 : index
    %383 = memref.load %arg6[%c1_197, %c18_198] : memref<2x32xf32, #tpu.memory_space<smem>>
    %384 = vector.broadcast %383 : f32 to vector<8x128xf32>
    %385 = arith.mulf %378, %384 : vector<8x128xf32>
    %386 = arith.addf %366, %385 : vector<8x128xf32>
    %c0_199 = arith.constant 0 : index
    %c19 = arith.constant 19 : index
    %387 = memref.load %arg4[%c0_199, %c19] : memref<2x32xf32, #tpu.memory_space<smem>>
    %388 = vector.broadcast %387 : f32 to vector<8x128xf32>
    %389 = arith.mulf %0, %388 : vector<8x128xf32>
    %c1_200 = arith.constant 1 : index
    %c19_201 = arith.constant 19 : index
    %390 = memref.load %arg4[%c1_200, %c19_201] : memref<2x32xf32, #tpu.memory_space<smem>>
    %391 = vector.broadcast %390 : f32 to vector<8x128xf32>
    %392 = arith.mulf %1, %391 : vector<8x128xf32>
    %393 = arith.addf %389, %392 : vector<8x128xf32>
    %c0_202 = arith.constant 0 : index
    %c19_203 = arith.constant 19 : index
    %394 = memref.load %arg5[%c0_202, %c19_203] : memref<1x32xf32, #tpu.memory_space<smem>>
    %395 = vector.broadcast %394 : f32 to vector<8x128xf32>
    %396 = arith.addf %393, %395 : vector<8x128xf32>
    %cst_204 = arith.constant 0.000000e+00 : f32
    %397 = vector.broadcast %cst_204 : f32 to vector<8x128xf32>
    %398 = arith.maximumf %396, %397 : vector<8x128xf32>
    %c0_205 = arith.constant 0 : index
    %c19_206 = arith.constant 19 : index
    %399 = memref.load %arg6[%c0_205, %c19_206] : memref<2x32xf32, #tpu.memory_space<smem>>
    %400 = vector.broadcast %399 : f32 to vector<8x128xf32>
    %401 = arith.mulf %398, %400 : vector<8x128xf32>
    %402 = arith.addf %382, %401 : vector<8x128xf32>
    %c1_207 = arith.constant 1 : index
    %c19_208 = arith.constant 19 : index
    %403 = memref.load %arg6[%c1_207, %c19_208] : memref<2x32xf32, #tpu.memory_space<smem>>
    %404 = vector.broadcast %403 : f32 to vector<8x128xf32>
    %405 = arith.mulf %398, %404 : vector<8x128xf32>
    %406 = arith.addf %386, %405 : vector<8x128xf32>
    %c0_209 = arith.constant 0 : index
    %c20 = arith.constant 20 : index
    %407 = memref.load %arg4[%c0_209, %c20] : memref<2x32xf32, #tpu.memory_space<smem>>
    %408 = vector.broadcast %407 : f32 to vector<8x128xf32>
    %409 = arith.mulf %0, %408 : vector<8x128xf32>
    %c1_210 = arith.constant 1 : index
    %c20_211 = arith.constant 20 : index
    %410 = memref.load %arg4[%c1_210, %c20_211] : memref<2x32xf32, #tpu.memory_space<smem>>
    %411 = vector.broadcast %410 : f32 to vector<8x128xf32>
    %412 = arith.mulf %1, %411 : vector<8x128xf32>
    %413 = arith.addf %409, %412 : vector<8x128xf32>
    %c0_212 = arith.constant 0 : index
    %c20_213 = arith.constant 20 : index
    %414 = memref.load %arg5[%c0_212, %c20_213] : memref<1x32xf32, #tpu.memory_space<smem>>
    %415 = vector.broadcast %414 : f32 to vector<8x128xf32>
    %416 = arith.addf %413, %415 : vector<8x128xf32>
    %cst_214 = arith.constant 0.000000e+00 : f32
    %417 = vector.broadcast %cst_214 : f32 to vector<8x128xf32>
    %418 = arith.maximumf %416, %417 : vector<8x128xf32>
    %c0_215 = arith.constant 0 : index
    %c20_216 = arith.constant 20 : index
    %419 = memref.load %arg6[%c0_215, %c20_216] : memref<2x32xf32, #tpu.memory_space<smem>>
    %420 = vector.broadcast %419 : f32 to vector<8x128xf32>
    %421 = arith.mulf %418, %420 : vector<8x128xf32>
    %422 = arith.addf %402, %421 : vector<8x128xf32>
    %c1_217 = arith.constant 1 : index
    %c20_218 = arith.constant 20 : index
    %423 = memref.load %arg6[%c1_217, %c20_218] : memref<2x32xf32, #tpu.memory_space<smem>>
    %424 = vector.broadcast %423 : f32 to vector<8x128xf32>
    %425 = arith.mulf %418, %424 : vector<8x128xf32>
    %426 = arith.addf %406, %425 : vector<8x128xf32>
    %c0_219 = arith.constant 0 : index
    %c21 = arith.constant 21 : index
    %427 = memref.load %arg4[%c0_219, %c21] : memref<2x32xf32, #tpu.memory_space<smem>>
    %428 = vector.broadcast %427 : f32 to vector<8x128xf32>
    %429 = arith.mulf %0, %428 : vector<8x128xf32>
    %c1_220 = arith.constant 1 : index
    %c21_221 = arith.constant 21 : index
    %430 = memref.load %arg4[%c1_220, %c21_221] : memref<2x32xf32, #tpu.memory_space<smem>>
    %431 = vector.broadcast %430 : f32 to vector<8x128xf32>
    %432 = arith.mulf %1, %431 : vector<8x128xf32>
    %433 = arith.addf %429, %432 : vector<8x128xf32>
    %c0_222 = arith.constant 0 : index
    %c21_223 = arith.constant 21 : index
    %434 = memref.load %arg5[%c0_222, %c21_223] : memref<1x32xf32, #tpu.memory_space<smem>>
    %435 = vector.broadcast %434 : f32 to vector<8x128xf32>
    %436 = arith.addf %433, %435 : vector<8x128xf32>
    %cst_224 = arith.constant 0.000000e+00 : f32
    %437 = vector.broadcast %cst_224 : f32 to vector<8x128xf32>
    %438 = arith.maximumf %436, %437 : vector<8x128xf32>
    %c0_225 = arith.constant 0 : index
    %c21_226 = arith.constant 21 : index
    %439 = memref.load %arg6[%c0_225, %c21_226] : memref<2x32xf32, #tpu.memory_space<smem>>
    %440 = vector.broadcast %439 : f32 to vector<8x128xf32>
    %441 = arith.mulf %438, %440 : vector<8x128xf32>
    %442 = arith.addf %422, %441 : vector<8x128xf32>
    %c1_227 = arith.constant 1 : index
    %c21_228 = arith.constant 21 : index
    %443 = memref.load %arg6[%c1_227, %c21_228] : memref<2x32xf32, #tpu.memory_space<smem>>
    %444 = vector.broadcast %443 : f32 to vector<8x128xf32>
    %445 = arith.mulf %438, %444 : vector<8x128xf32>
    %446 = arith.addf %426, %445 : vector<8x128xf32>
    %c0_229 = arith.constant 0 : index
    %c22 = arith.constant 22 : index
    %447 = memref.load %arg4[%c0_229, %c22] : memref<2x32xf32, #tpu.memory_space<smem>>
    %448 = vector.broadcast %447 : f32 to vector<8x128xf32>
    %449 = arith.mulf %0, %448 : vector<8x128xf32>
    %c1_230 = arith.constant 1 : index
    %c22_231 = arith.constant 22 : index
    %450 = memref.load %arg4[%c1_230, %c22_231] : memref<2x32xf32, #tpu.memory_space<smem>>
    %451 = vector.broadcast %450 : f32 to vector<8x128xf32>
    %452 = arith.mulf %1, %451 : vector<8x128xf32>
    %453 = arith.addf %449, %452 : vector<8x128xf32>
    %c0_232 = arith.constant 0 : index
    %c22_233 = arith.constant 22 : index
    %454 = memref.load %arg5[%c0_232, %c22_233] : memref<1x32xf32, #tpu.memory_space<smem>>
    %455 = vector.broadcast %454 : f32 to vector<8x128xf32>
    %456 = arith.addf %453, %455 : vector<8x128xf32>
    %cst_234 = arith.constant 0.000000e+00 : f32
    %457 = vector.broadcast %cst_234 : f32 to vector<8x128xf32>
    %458 = arith.maximumf %456, %457 : vector<8x128xf32>
    %c0_235 = arith.constant 0 : index
    %c22_236 = arith.constant 22 : index
    %459 = memref.load %arg6[%c0_235, %c22_236] : memref<2x32xf32, #tpu.memory_space<smem>>
    %460 = vector.broadcast %459 : f32 to vector<8x128xf32>
    %461 = arith.mulf %458, %460 : vector<8x128xf32>
    %462 = arith.addf %442, %461 : vector<8x128xf32>
    %c1_237 = arith.constant 1 : index
    %c22_238 = arith.constant 22 : index
    %463 = memref.load %arg6[%c1_237, %c22_238] : memref<2x32xf32, #tpu.memory_space<smem>>
    %464 = vector.broadcast %463 : f32 to vector<8x128xf32>
    %465 = arith.mulf %458, %464 : vector<8x128xf32>
    %466 = arith.addf %446, %465 : vector<8x128xf32>
    %c0_239 = arith.constant 0 : index
    %c23 = arith.constant 23 : index
    %467 = memref.load %arg4[%c0_239, %c23] : memref<2x32xf32, #tpu.memory_space<smem>>
    %468 = vector.broadcast %467 : f32 to vector<8x128xf32>
    %469 = arith.mulf %0, %468 : vector<8x128xf32>
    %c1_240 = arith.constant 1 : index
    %c23_241 = arith.constant 23 : index
    %470 = memref.load %arg4[%c1_240, %c23_241] : memref<2x32xf32, #tpu.memory_space<smem>>
    %471 = vector.broadcast %470 : f32 to vector<8x128xf32>
    %472 = arith.mulf %1, %471 : vector<8x128xf32>
    %473 = arith.addf %469, %472 : vector<8x128xf32>
    %c0_242 = arith.constant 0 : index
    %c23_243 = arith.constant 23 : index
    %474 = memref.load %arg5[%c0_242, %c23_243] : memref<1x32xf32, #tpu.memory_space<smem>>
    %475 = vector.broadcast %474 : f32 to vector<8x128xf32>
    %476 = arith.addf %473, %475 : vector<8x128xf32>
    %cst_244 = arith.constant 0.000000e+00 : f32
    %477 = vector.broadcast %cst_244 : f32 to vector<8x128xf32>
    %478 = arith.maximumf %476, %477 : vector<8x128xf32>
    %c0_245 = arith.constant 0 : index
    %c23_246 = arith.constant 23 : index
    %479 = memref.load %arg6[%c0_245, %c23_246] : memref<2x32xf32, #tpu.memory_space<smem>>
    %480 = vector.broadcast %479 : f32 to vector<8x128xf32>
    %481 = arith.mulf %478, %480 : vector<8x128xf32>
    %482 = arith.addf %462, %481 : vector<8x128xf32>
    %c1_247 = arith.constant 1 : index
    %c23_248 = arith.constant 23 : index
    %483 = memref.load %arg6[%c1_247, %c23_248] : memref<2x32xf32, #tpu.memory_space<smem>>
    %484 = vector.broadcast %483 : f32 to vector<8x128xf32>
    %485 = arith.mulf %478, %484 : vector<8x128xf32>
    %486 = arith.addf %466, %485 : vector<8x128xf32>
    %c0_249 = arith.constant 0 : index
    %c24 = arith.constant 24 : index
    %487 = memref.load %arg4[%c0_249, %c24] : memref<2x32xf32, #tpu.memory_space<smem>>
    %488 = vector.broadcast %487 : f32 to vector<8x128xf32>
    %489 = arith.mulf %0, %488 : vector<8x128xf32>
    %c1_250 = arith.constant 1 : index
    %c24_251 = arith.constant 24 : index
    %490 = memref.load %arg4[%c1_250, %c24_251] : memref<2x32xf32, #tpu.memory_space<smem>>
    %491 = vector.broadcast %490 : f32 to vector<8x128xf32>
    %492 = arith.mulf %1, %491 : vector<8x128xf32>
    %493 = arith.addf %489, %492 : vector<8x128xf32>
    %c0_252 = arith.constant 0 : index
    %c24_253 = arith.constant 24 : index
    %494 = memref.load %arg5[%c0_252, %c24_253] : memref<1x32xf32, #tpu.memory_space<smem>>
    %495 = vector.broadcast %494 : f32 to vector<8x128xf32>
    %496 = arith.addf %493, %495 : vector<8x128xf32>
    %cst_254 = arith.constant 0.000000e+00 : f32
    %497 = vector.broadcast %cst_254 : f32 to vector<8x128xf32>
    %498 = arith.maximumf %496, %497 : vector<8x128xf32>
    %c0_255 = arith.constant 0 : index
    %c24_256 = arith.constant 24 : index
    %499 = memref.load %arg6[%c0_255, %c24_256] : memref<2x32xf32, #tpu.memory_space<smem>>
    %500 = vector.broadcast %499 : f32 to vector<8x128xf32>
    %501 = arith.mulf %498, %500 : vector<8x128xf32>
    %502 = arith.addf %482, %501 : vector<8x128xf32>
    %c1_257 = arith.constant 1 : index
    %c24_258 = arith.constant 24 : index
    %503 = memref.load %arg6[%c1_257, %c24_258] : memref<2x32xf32, #tpu.memory_space<smem>>
    %504 = vector.broadcast %503 : f32 to vector<8x128xf32>
    %505 = arith.mulf %498, %504 : vector<8x128xf32>
    %506 = arith.addf %486, %505 : vector<8x128xf32>
    %c0_259 = arith.constant 0 : index
    %c25 = arith.constant 25 : index
    %507 = memref.load %arg4[%c0_259, %c25] : memref<2x32xf32, #tpu.memory_space<smem>>
    %508 = vector.broadcast %507 : f32 to vector<8x128xf32>
    %509 = arith.mulf %0, %508 : vector<8x128xf32>
    %c1_260 = arith.constant 1 : index
    %c25_261 = arith.constant 25 : index
    %510 = memref.load %arg4[%c1_260, %c25_261] : memref<2x32xf32, #tpu.memory_space<smem>>
    %511 = vector.broadcast %510 : f32 to vector<8x128xf32>
    %512 = arith.mulf %1, %511 : vector<8x128xf32>
    %513 = arith.addf %509, %512 : vector<8x128xf32>
    %c0_262 = arith.constant 0 : index
    %c25_263 = arith.constant 25 : index
    %514 = memref.load %arg5[%c0_262, %c25_263] : memref<1x32xf32, #tpu.memory_space<smem>>
    %515 = vector.broadcast %514 : f32 to vector<8x128xf32>
    %516 = arith.addf %513, %515 : vector<8x128xf32>
    %cst_264 = arith.constant 0.000000e+00 : f32
    %517 = vector.broadcast %cst_264 : f32 to vector<8x128xf32>
    %518 = arith.maximumf %516, %517 : vector<8x128xf32>
    %c0_265 = arith.constant 0 : index
    %c25_266 = arith.constant 25 : index
    %519 = memref.load %arg6[%c0_265, %c25_266] : memref<2x32xf32, #tpu.memory_space<smem>>
    %520 = vector.broadcast %519 : f32 to vector<8x128xf32>
    %521 = arith.mulf %518, %520 : vector<8x128xf32>
    %522 = arith.addf %502, %521 : vector<8x128xf32>
    %c1_267 = arith.constant 1 : index
    %c25_268 = arith.constant 25 : index
    %523 = memref.load %arg6[%c1_267, %c25_268] : memref<2x32xf32, #tpu.memory_space<smem>>
    %524 = vector.broadcast %523 : f32 to vector<8x128xf32>
    %525 = arith.mulf %518, %524 : vector<8x128xf32>
    %526 = arith.addf %506, %525 : vector<8x128xf32>
    %c0_269 = arith.constant 0 : index
    %c26 = arith.constant 26 : index
    %527 = memref.load %arg4[%c0_269, %c26] : memref<2x32xf32, #tpu.memory_space<smem>>
    %528 = vector.broadcast %527 : f32 to vector<8x128xf32>
    %529 = arith.mulf %0, %528 : vector<8x128xf32>
    %c1_270 = arith.constant 1 : index
    %c26_271 = arith.constant 26 : index
    %530 = memref.load %arg4[%c1_270, %c26_271] : memref<2x32xf32, #tpu.memory_space<smem>>
    %531 = vector.broadcast %530 : f32 to vector<8x128xf32>
    %532 = arith.mulf %1, %531 : vector<8x128xf32>
    %533 = arith.addf %529, %532 : vector<8x128xf32>
    %c0_272 = arith.constant 0 : index
    %c26_273 = arith.constant 26 : index
    %534 = memref.load %arg5[%c0_272, %c26_273] : memref<1x32xf32, #tpu.memory_space<smem>>
    %535 = vector.broadcast %534 : f32 to vector<8x128xf32>
    %536 = arith.addf %533, %535 : vector<8x128xf32>
    %cst_274 = arith.constant 0.000000e+00 : f32
    %537 = vector.broadcast %cst_274 : f32 to vector<8x128xf32>
    %538 = arith.maximumf %536, %537 : vector<8x128xf32>
    %c0_275 = arith.constant 0 : index
    %c26_276 = arith.constant 26 : index
    %539 = memref.load %arg6[%c0_275, %c26_276] : memref<2x32xf32, #tpu.memory_space<smem>>
    %540 = vector.broadcast %539 : f32 to vector<8x128xf32>
    %541 = arith.mulf %538, %540 : vector<8x128xf32>
    %542 = arith.addf %522, %541 : vector<8x128xf32>
    %c1_277 = arith.constant 1 : index
    %c26_278 = arith.constant 26 : index
    %543 = memref.load %arg6[%c1_277, %c26_278] : memref<2x32xf32, #tpu.memory_space<smem>>
    %544 = vector.broadcast %543 : f32 to vector<8x128xf32>
    %545 = arith.mulf %538, %544 : vector<8x128xf32>
    %546 = arith.addf %526, %545 : vector<8x128xf32>
    %c0_279 = arith.constant 0 : index
    %c27 = arith.constant 27 : index
    %547 = memref.load %arg4[%c0_279, %c27] : memref<2x32xf32, #tpu.memory_space<smem>>
    %548 = vector.broadcast %547 : f32 to vector<8x128xf32>
    %549 = arith.mulf %0, %548 : vector<8x128xf32>
    %c1_280 = arith.constant 1 : index
    %c27_281 = arith.constant 27 : index
    %550 = memref.load %arg4[%c1_280, %c27_281] : memref<2x32xf32, #tpu.memory_space<smem>>
    %551 = vector.broadcast %550 : f32 to vector<8x128xf32>
    %552 = arith.mulf %1, %551 : vector<8x128xf32>
    %553 = arith.addf %549, %552 : vector<8x128xf32>
    %c0_282 = arith.constant 0 : index
    %c27_283 = arith.constant 27 : index
    %554 = memref.load %arg5[%c0_282, %c27_283] : memref<1x32xf32, #tpu.memory_space<smem>>
    %555 = vector.broadcast %554 : f32 to vector<8x128xf32>
    %556 = arith.addf %553, %555 : vector<8x128xf32>
    %cst_284 = arith.constant 0.000000e+00 : f32
    %557 = vector.broadcast %cst_284 : f32 to vector<8x128xf32>
    %558 = arith.maximumf %556, %557 : vector<8x128xf32>
    %c0_285 = arith.constant 0 : index
    %c27_286 = arith.constant 27 : index
    %559 = memref.load %arg6[%c0_285, %c27_286] : memref<2x32xf32, #tpu.memory_space<smem>>
    %560 = vector.broadcast %559 : f32 to vector<8x128xf32>
    %561 = arith.mulf %558, %560 : vector<8x128xf32>
    %562 = arith.addf %542, %561 : vector<8x128xf32>
    %c1_287 = arith.constant 1 : index
    %c27_288 = arith.constant 27 : index
    %563 = memref.load %arg6[%c1_287, %c27_288] : memref<2x32xf32, #tpu.memory_space<smem>>
    %564 = vector.broadcast %563 : f32 to vector<8x128xf32>
    %565 = arith.mulf %558, %564 : vector<8x128xf32>
    %566 = arith.addf %546, %565 : vector<8x128xf32>
    %c0_289 = arith.constant 0 : index
    %c28 = arith.constant 28 : index
    %567 = memref.load %arg4[%c0_289, %c28] : memref<2x32xf32, #tpu.memory_space<smem>>
    %568 = vector.broadcast %567 : f32 to vector<8x128xf32>
    %569 = arith.mulf %0, %568 : vector<8x128xf32>
    %c1_290 = arith.constant 1 : index
    %c28_291 = arith.constant 28 : index
    %570 = memref.load %arg4[%c1_290, %c28_291] : memref<2x32xf32, #tpu.memory_space<smem>>
    %571 = vector.broadcast %570 : f32 to vector<8x128xf32>
    %572 = arith.mulf %1, %571 : vector<8x128xf32>
    %573 = arith.addf %569, %572 : vector<8x128xf32>
    %c0_292 = arith.constant 0 : index
    %c28_293 = arith.constant 28 : index
    %574 = memref.load %arg5[%c0_292, %c28_293] : memref<1x32xf32, #tpu.memory_space<smem>>
    %575 = vector.broadcast %574 : f32 to vector<8x128xf32>
    %576 = arith.addf %573, %575 : vector<8x128xf32>
    %cst_294 = arith.constant 0.000000e+00 : f32
    %577 = vector.broadcast %cst_294 : f32 to vector<8x128xf32>
    %578 = arith.maximumf %576, %577 : vector<8x128xf32>
    %c0_295 = arith.constant 0 : index
    %c28_296 = arith.constant 28 : index
    %579 = memref.load %arg6[%c0_295, %c28_296] : memref<2x32xf32, #tpu.memory_space<smem>>
    %580 = vector.broadcast %579 : f32 to vector<8x128xf32>
    %581 = arith.mulf %578, %580 : vector<8x128xf32>
    %582 = arith.addf %562, %581 : vector<8x128xf32>
    %c1_297 = arith.constant 1 : index
    %c28_298 = arith.constant 28 : index
    %583 = memref.load %arg6[%c1_297, %c28_298] : memref<2x32xf32, #tpu.memory_space<smem>>
    %584 = vector.broadcast %583 : f32 to vector<8x128xf32>
    %585 = arith.mulf %578, %584 : vector<8x128xf32>
    %586 = arith.addf %566, %585 : vector<8x128xf32>
    %c0_299 = arith.constant 0 : index
    %c29 = arith.constant 29 : index
    %587 = memref.load %arg4[%c0_299, %c29] : memref<2x32xf32, #tpu.memory_space<smem>>
    %588 = vector.broadcast %587 : f32 to vector<8x128xf32>
    %589 = arith.mulf %0, %588 : vector<8x128xf32>
    %c1_300 = arith.constant 1 : index
    %c29_301 = arith.constant 29 : index
    %590 = memref.load %arg4[%c1_300, %c29_301] : memref<2x32xf32, #tpu.memory_space<smem>>
    %591 = vector.broadcast %590 : f32 to vector<8x128xf32>
    %592 = arith.mulf %1, %591 : vector<8x128xf32>
    %593 = arith.addf %589, %592 : vector<8x128xf32>
    %c0_302 = arith.constant 0 : index
    %c29_303 = arith.constant 29 : index
    %594 = memref.load %arg5[%c0_302, %c29_303] : memref<1x32xf32, #tpu.memory_space<smem>>
    %595 = vector.broadcast %594 : f32 to vector<8x128xf32>
    %596 = arith.addf %593, %595 : vector<8x128xf32>
    %cst_304 = arith.constant 0.000000e+00 : f32
    %597 = vector.broadcast %cst_304 : f32 to vector<8x128xf32>
    %598 = arith.maximumf %596, %597 : vector<8x128xf32>
    %c0_305 = arith.constant 0 : index
    %c29_306 = arith.constant 29 : index
    %599 = memref.load %arg6[%c0_305, %c29_306] : memref<2x32xf32, #tpu.memory_space<smem>>
    %600 = vector.broadcast %599 : f32 to vector<8x128xf32>
    %601 = arith.mulf %598, %600 : vector<8x128xf32>
    %602 = arith.addf %582, %601 : vector<8x128xf32>
    %c1_307 = arith.constant 1 : index
    %c29_308 = arith.constant 29 : index
    %603 = memref.load %arg6[%c1_307, %c29_308] : memref<2x32xf32, #tpu.memory_space<smem>>
    %604 = vector.broadcast %603 : f32 to vector<8x128xf32>
    %605 = arith.mulf %598, %604 : vector<8x128xf32>
    %606 = arith.addf %586, %605 : vector<8x128xf32>
    %c0_309 = arith.constant 0 : index
    %c30 = arith.constant 30 : index
    %607 = memref.load %arg4[%c0_309, %c30] : memref<2x32xf32, #tpu.memory_space<smem>>
    %608 = vector.broadcast %607 : f32 to vector<8x128xf32>
    %609 = arith.mulf %0, %608 : vector<8x128xf32>
    %c1_310 = arith.constant 1 : index
    %c30_311 = arith.constant 30 : index
    %610 = memref.load %arg4[%c1_310, %c30_311] : memref<2x32xf32, #tpu.memory_space<smem>>
    %611 = vector.broadcast %610 : f32 to vector<8x128xf32>
    %612 = arith.mulf %1, %611 : vector<8x128xf32>
    %613 = arith.addf %609, %612 : vector<8x128xf32>
    %c0_312 = arith.constant 0 : index
    %c30_313 = arith.constant 30 : index
    %614 = memref.load %arg5[%c0_312, %c30_313] : memref<1x32xf32, #tpu.memory_space<smem>>
    %615 = vector.broadcast %614 : f32 to vector<8x128xf32>
    %616 = arith.addf %613, %615 : vector<8x128xf32>
    %cst_314 = arith.constant 0.000000e+00 : f32
    %617 = vector.broadcast %cst_314 : f32 to vector<8x128xf32>
    %618 = arith.maximumf %616, %617 : vector<8x128xf32>
    %c0_315 = arith.constant 0 : index
    %c30_316 = arith.constant 30 : index
    %619 = memref.load %arg6[%c0_315, %c30_316] : memref<2x32xf32, #tpu.memory_space<smem>>
    %620 = vector.broadcast %619 : f32 to vector<8x128xf32>
    %621 = arith.mulf %618, %620 : vector<8x128xf32>
    %622 = arith.addf %602, %621 : vector<8x128xf32>
    %c1_317 = arith.constant 1 : index
    %c30_318 = arith.constant 30 : index
    %623 = memref.load %arg6[%c1_317, %c30_318] : memref<2x32xf32, #tpu.memory_space<smem>>
    %624 = vector.broadcast %623 : f32 to vector<8x128xf32>
    %625 = arith.mulf %618, %624 : vector<8x128xf32>
    %626 = arith.addf %606, %625 : vector<8x128xf32>
    %c0_319 = arith.constant 0 : index
    %c31 = arith.constant 31 : index
    %627 = memref.load %arg4[%c0_319, %c31] : memref<2x32xf32, #tpu.memory_space<smem>>
    %628 = vector.broadcast %627 : f32 to vector<8x128xf32>
    %629 = arith.mulf %0, %628 : vector<8x128xf32>
    %c1_320 = arith.constant 1 : index
    %c31_321 = arith.constant 31 : index
    %630 = memref.load %arg4[%c1_320, %c31_321] : memref<2x32xf32, #tpu.memory_space<smem>>
    %631 = vector.broadcast %630 : f32 to vector<8x128xf32>
    %632 = arith.mulf %1, %631 : vector<8x128xf32>
    %633 = arith.addf %629, %632 : vector<8x128xf32>
    %c0_322 = arith.constant 0 : index
    %c31_323 = arith.constant 31 : index
    %634 = memref.load %arg5[%c0_322, %c31_323] : memref<1x32xf32, #tpu.memory_space<smem>>
    %635 = vector.broadcast %634 : f32 to vector<8x128xf32>
    %636 = arith.addf %633, %635 : vector<8x128xf32>
    %cst_324 = arith.constant 0.000000e+00 : f32
    %637 = vector.broadcast %cst_324 : f32 to vector<8x128xf32>
    %638 = arith.maximumf %636, %637 : vector<8x128xf32>
    %c0_325 = arith.constant 0 : index
    %c31_326 = arith.constant 31 : index
    %639 = memref.load %arg6[%c0_325, %c31_326] : memref<2x32xf32, #tpu.memory_space<smem>>
    %640 = vector.broadcast %639 : f32 to vector<8x128xf32>
    %641 = arith.mulf %638, %640 : vector<8x128xf32>
    %642 = arith.addf %622, %641 : vector<8x128xf32>
    %c1_327 = arith.constant 1 : index
    %c31_328 = arith.constant 31 : index
    %643 = memref.load %arg6[%c1_327, %c31_328] : memref<2x32xf32, #tpu.memory_space<smem>>
    %644 = vector.broadcast %643 : f32 to vector<8x128xf32>
    %645 = arith.mulf %638, %644 : vector<8x128xf32>
    %646 = arith.addf %626, %645 : vector<8x128xf32>
    %647 = tpu.reciprocal %2 {approx = true} : vector<8x128xf32> -> vector<8x128xf32>
    %648 = arith.mulf %2, %647 : vector<8x128xf32>
    %cst_329 = arith.constant 2.000000e+00 : f32
    %649 = vector.broadcast %cst_329 : f32 to vector<8x128xf32>
    %650 = arith.subf %649, %648 : vector<8x128xf32>
    %651 = arith.mulf %647, %650 : vector<8x128xf32>
    %cst_330 = arith.constant 1.000000e+00 : f32
    %652 = vector.broadcast %cst_330 : f32 to vector<8x128xf32>
    %653 = arith.subf %652, %2 : vector<8x128xf32>
    %654 = arith.mulf %653, %651 : vector<8x128xf32>
    %655 = math.sqrt %654 : vector<8x128xf32>
    %656 = arith.mulf %0, %651 : vector<8x128xf32>
    %657 = arith.mulf %655, %642 : vector<8x128xf32>
    %658 = arith.subf %656, %657 : vector<8x128xf32>
    %cst_331 = arith.constant -1.000000e+01 : f32
    %cst_332 = arith.constant 1.000000e+01 : f32
    %659 = vector.broadcast %cst_331 : f32 to vector<8x128xf32>
    %660 = arith.maximumf %659, %646 : vector<8x128xf32>
    %661 = vector.broadcast %cst_332 : f32 to vector<8x128xf32>
    %662 = arith.minimumf %661, %660 : vector<8x128xf32>
    %663 = math.exp %662 : vector<8x128xf32>
    %664 = arith.mulf %655, %663 : vector<8x128xf32>
    %cst_333 = arith.constant 2.000000e-02 : f32
    %665 = vector.broadcast %cst_333 : f32 to vector<8x128xf32>
    %666 = arith.maximumf %664, %665 : vector<8x128xf32>
    %cst_334 = arith.constant 9.99999997E-7 : f32
    %667 = vector.broadcast %cst_334 : f32 to vector<8x128xf32>
    %668 = arith.cmpf olt, %1, %667 : vector<8x128xf32>
    %cst_335 = arith.constant 0.000000e+00 : f32
    %669 = vector.broadcast %cst_335 : f32 to vector<8x128xf32>
    %670 = arith.select %668, %669, %658 : vector<8x128xi1>, vector<8x128xf32>
    %cst_336 = arith.constant 1.000000e+00 : f32
    %671 = vector.broadcast %cst_336 : f32 to vector<8x128xf32>
    %672 = arith.select %668, %671, %666 : vector<8x128xi1>, vector<8x128xf32>
    %cst_337 = arith.constant -1.000000e+00 : f32
    %cst_338 = arith.constant 1.000000e+00 : f32
    %673 = vector.broadcast %cst_337 : f32 to vector<8x128xf32>
    %674 = arith.maximumf %673, %670 : vector<8x128xf32>
    %675 = vector.broadcast %cst_338 : f32 to vector<8x128xf32>
    %676 = arith.minimumf %675, %674 : vector<8x128xf32>
    %677 = tpu.reciprocal %672 {approx = true} : vector<8x128xf32> -> vector<8x128xf32>
    %678 = arith.mulf %672, %677 : vector<8x128xf32>
    %cst_339 = arith.constant 2.000000e+00 : f32
    %679 = vector.broadcast %cst_339 : f32 to vector<8x128xf32>
    %680 = arith.subf %679, %678 : vector<8x128xf32>
    %681 = arith.mulf %677, %680 : vector<8x128xf32>
    %cst_340 = arith.constant 0.707106769 : f32
    %682 = vector.broadcast %cst_340 : f32 to vector<8x128xf32>
    %683 = arith.mulf %681, %682 : vector<8x128xf32>
    %cst_341 = arith.constant 0.000000e+00 : f32
    %684 = vector.broadcast %cst_341 : f32 to vector<8x128xf32>
    %685 = arith.subf %684, %676 : vector<8x128xf32>
    %686 = arith.mulf %685, %683 : vector<8x128xf32>
    %cst_342 = arith.constant 0.000000e+00 : f32
    %687 = vector.broadcast %cst_342 : f32 to vector<8x128xf32>
    %cst_343 = arith.constant -8.750000e-01 : f32
    %688 = vector.broadcast %cst_343 : f32 to vector<8x128xf32>
    %689 = arith.mulf %688, %683 : vector<8x128xf32>
    %690 = arith.addf %689, %686 : vector<8x128xf32>
    %cst_344 = arith.constant 0.000000e+00 : f32
    %691 = vector.broadcast %cst_344 : f32 to vector<8x128xf32>
    %692 = arith.cmpf oge, %690, %691 : vector<8x128xf32>
    %cst_345 = arith.constant 1.000000e+00 : f32
    %cst_346 = arith.constant -1.000000e+00 : f32
    %693 = vector.broadcast %cst_345 : f32 to vector<8x128xf32>
    %694 = vector.broadcast %cst_346 : f32 to vector<8x128xf32>
    %695 = arith.select %692, %693, %694 : vector<8x128xi1>, vector<8x128xf32>
    %696 = math.absf %690 : vector<8x128xf32>
    %cst_347 = arith.constant 0.327591091 : f32
    %697 = vector.broadcast %cst_347 : f32 to vector<8x128xf32>
    %698 = arith.mulf %697, %696 : vector<8x128xf32>
    %cst_348 = arith.constant 1.000000e+00 : f32
    %699 = vector.broadcast %cst_348 : f32 to vector<8x128xf32>
    %700 = arith.addf %699, %698 : vector<8x128xf32>
    %701 = tpu.reciprocal %700 {approx = true} : vector<8x128xf32> -> vector<8x128xf32>
    %702 = arith.mulf %700, %701 : vector<8x128xf32>
    %cst_349 = arith.constant 2.000000e+00 : f32
    %703 = vector.broadcast %cst_349 : f32 to vector<8x128xf32>
    %704 = arith.subf %703, %702 : vector<8x128xf32>
    %705 = arith.mulf %701, %704 : vector<8x128xf32>
    %cst_350 = arith.constant 1.06140542 : f32
    %706 = vector.broadcast %cst_350 : f32 to vector<8x128xf32>
    %707 = arith.mulf %706, %705 : vector<8x128xf32>
    %cst_351 = arith.constant -1.45315206 : f32
    %708 = vector.broadcast %cst_351 : f32 to vector<8x128xf32>
    %709 = arith.addf %707, %708 : vector<8x128xf32>
    %710 = arith.mulf %709, %705 : vector<8x128xf32>
    %cst_352 = arith.constant 1.42141378 : f32
    %711 = vector.broadcast %cst_352 : f32 to vector<8x128xf32>
    %712 = arith.addf %710, %711 : vector<8x128xf32>
    %713 = arith.mulf %712, %705 : vector<8x128xf32>
    %cst_353 = arith.constant -0.284496725 : f32
    %714 = vector.broadcast %cst_353 : f32 to vector<8x128xf32>
    %715 = arith.addf %713, %714 : vector<8x128xf32>
    %716 = arith.mulf %715, %705 : vector<8x128xf32>
    %cst_354 = arith.constant 0.254829586 : f32
    %717 = vector.broadcast %cst_354 : f32 to vector<8x128xf32>
    %718 = arith.addf %716, %717 : vector<8x128xf32>
    %719 = arith.mulf %718, %705 : vector<8x128xf32>
    %cst_355 = arith.constant 0.000000e+00 : f32
    %720 = vector.broadcast %cst_355 : f32 to vector<8x128xf32>
    %721 = arith.subf %720, %696 : vector<8x128xf32>
    %722 = arith.mulf %721, %696 : vector<8x128xf32>
    %723 = math.exp %722 : vector<8x128xf32>
    %724 = arith.mulf %719, %723 : vector<8x128xf32>
    %cst_356 = arith.constant 1.000000e+00 : f32
    %725 = vector.broadcast %cst_356 : f32 to vector<8x128xf32>
    %726 = arith.subf %725, %724 : vector<8x128xf32>
    %727 = arith.mulf %695, %726 : vector<8x128xf32>
    %cst_357 = arith.constant 1.000000e+00 : f32
    %728 = vector.broadcast %cst_357 : f32 to vector<8x128xf32>
    %729 = arith.addf %728, %727 : vector<8x128xf32>
    %cst_358 = arith.constant 5.000000e-01 : f32
    %730 = vector.broadcast %cst_358 : f32 to vector<8x128xf32>
    %731 = arith.mulf %730, %729 : vector<8x128xf32>
    %732 = arith.subf %731, %687 : vector<8x128xf32>
    %c0_359 = arith.constant 0 : index
    %c0_360 = arith.constant 0 : index
    %c0_361 = arith.constant 0 : index
    %733 = vector.load %arg8[%c0_359, %c0_360, %c0_361] : memref<16x8x128xf32, #tpu.memory_space<vmem>>, vector<1x8x128xf32>
    %734 = vector.shape_cast %733 : vector<1x8x128xf32> to vector<8x128xf32>
    %735 = vector.shape_cast %732 : vector<8x128xf32> to vector<1x8x128xf32>
    tpu.vector_store %arg8[%c0_359, %c0_360, %c0_361], %735 {strides = array<i32>} : memref<16x8x128xf32, #tpu.memory_space<vmem>>, vector<1x8x128xf32>,
    %cst_362 = arith.constant -7.500000e-01 : f32
    %736 = vector.broadcast %cst_362 : f32 to vector<8x128xf32>
    %737 = arith.mulf %736, %683 : vector<8x128xf32>
    %738 = arith.addf %737, %686 : vector<8x128xf32>
    %cst_363 = arith.constant 0.000000e+00 : f32
    %739 = vector.broadcast %cst_363 : f32 to vector<8x128xf32>
    %740 = arith.cmpf oge, %738, %739 : vector<8x128xf32>
    %cst_364 = arith.constant 1.000000e+00 : f32
    %cst_365 = arith.constant -1.000000e+00 : f32
    %741 = vector.broadcast %cst_364 : f32 to vector<8x128xf32>
    %742 = vector.broadcast %cst_365 : f32 to vector<8x128xf32>
    %743 = arith.select %740, %741, %742 : vector<8x128xi1>, vector<8x128xf32>
    %744 = math.absf %738 : vector<8x128xf32>
    %cst_366 = arith.constant 0.327591091 : f32
    %745 = vector.broadcast %cst_366 : f32 to vector<8x128xf32>
    %746 = arith.mulf %745, %744 : vector<8x128xf32>
    %cst_367 = arith.constant 1.000000e+00 : f32
    %747 = vector.broadcast %cst_367 : f32 to vector<8x128xf32>
    %748 = arith.addf %747, %746 : vector<8x128xf32>
    %749 = tpu.reciprocal %748 {approx = true} : vector<8x128xf32> -> vector<8x128xf32>
    %750 = arith.mulf %748, %749 : vector<8x128xf32>
    %cst_368 = arith.constant 2.000000e+00 : f32
    %751 = vector.broadcast %cst_368 : f32 to vector<8x128xf32>
    %752 = arith.subf %751, %750 : vector<8x128xf32>
    %753 = arith.mulf %749, %752 : vector<8x128xf32>
    %cst_369 = arith.constant 1.06140542 : f32
    %754 = vector.broadcast %cst_369 : f32 to vector<8x128xf32>
    %755 = arith.mulf %754, %753 : vector<8x128xf32>
    %cst_370 = arith.constant -1.45315206 : f32
    %756 = vector.broadcast %cst_370 : f32 to vector<8x128xf32>
    %757 = arith.addf %755, %756 : vector<8x128xf32>
    %758 = arith.mulf %757, %753 : vector<8x128xf32>
    %cst_371 = arith.constant 1.42141378 : f32
    %759 = vector.broadcast %cst_371 : f32 to vector<8x128xf32>
    %760 = arith.addf %758, %759 : vector<8x128xf32>
    %761 = arith.mulf %760, %753 : vector<8x128xf32>
    %cst_372 = arith.constant -0.284496725 : f32
    %762 = vector.broadcast %cst_372 : f32 to vector<8x128xf32>
    %763 = arith.addf %761, %762 : vector<8x128xf32>
    %764 = arith.mulf %763, %753 : vector<8x128xf32>
    %cst_373 = arith.constant 0.254829586 : f32
    %765 = vector.broadcast %cst_373 : f32 to vector<8x128xf32>
    %766 = arith.addf %764, %765 : vector<8x128xf32>
    %767 = arith.mulf %766, %753 : vector<8x128xf32>
    %cst_374 = arith.constant 0.000000e+00 : f32
    %768 = vector.broadcast %cst_374 : f32 to vector<8x128xf32>
    %769 = arith.subf %768, %744 : vector<8x128xf32>
    %770 = arith.mulf %769, %744 : vector<8x128xf32>
    %771 = math.exp %770 : vector<8x128xf32>
    %772 = arith.mulf %767, %771 : vector<8x128xf32>
    %cst_375 = arith.constant 1.000000e+00 : f32
    %773 = vector.broadcast %cst_375 : f32 to vector<8x128xf32>
    %774 = arith.subf %773, %772 : vector<8x128xf32>
    %775 = arith.mulf %743, %774 : vector<8x128xf32>
    %cst_376 = arith.constant 1.000000e+00 : f32
    %776 = vector.broadcast %cst_376 : f32 to vector<8x128xf32>
    %777 = arith.addf %776, %775 : vector<8x128xf32>
    %cst_377 = arith.constant 5.000000e-01 : f32
    %778 = vector.broadcast %cst_377 : f32 to vector<8x128xf32>
    %779 = arith.mulf %778, %777 : vector<8x128xf32>
    %780 = arith.subf %779, %731 : vector<8x128xf32>
    %c1_378 = arith.constant 1 : index
    %c0_379 = arith.constant 0 : index
    %c0_380 = arith.constant 0 : index
    %781 = vector.load %arg8[%c1_378, %c0_379, %c0_380] : memref<16x8x128xf32, #tpu.memory_space<vmem>>, vector<1x8x128xf32>
    %782 = vector.shape_cast %781 : vector<1x8x128xf32> to vector<8x128xf32>
    %783 = vector.shape_cast %780 : vector<8x128xf32> to vector<1x8x128xf32>
    tpu.vector_store %arg8[%c1_378, %c0_379, %c0_380], %783 {strides = array<i32>} : memref<16x8x128xf32, #tpu.memory_space<vmem>>, vector<1x8x128xf32>,
    %cst_381 = arith.constant -6.250000e-01 : f32
    %784 = vector.broadcast %cst_381 : f32 to vector<8x128xf32>
    %785 = arith.mulf %784, %683 : vector<8x128xf32>
    %786 = arith.addf %785, %686 : vector<8x128xf32>
    %cst_382 = arith.constant 0.000000e+00 : f32
    %787 = vector.broadcast %cst_382 : f32 to vector<8x128xf32>
    %788 = arith.cmpf oge, %786, %787 : vector<8x128xf32>
    %cst_383 = arith.constant 1.000000e+00 : f32
    %cst_384 = arith.constant -1.000000e+00 : f32
    %789 = vector.broadcast %cst_383 : f32 to vector<8x128xf32>
    %790 = vector.broadcast %cst_384 : f32 to vector<8x128xf32>
    %791 = arith.select %788, %789, %790 : vector<8x128xi1>, vector<8x128xf32>
    %792 = math.absf %786 : vector<8x128xf32>
    %cst_385 = arith.constant 0.327591091 : f32
    %793 = vector.broadcast %cst_385 : f32 to vector<8x128xf32>
    %794 = arith.mulf %793, %792 : vector<8x128xf32>
    %cst_386 = arith.constant 1.000000e+00 : f32
    %795 = vector.broadcast %cst_386 : f32 to vector<8x128xf32>
    %796 = arith.addf %795, %794 : vector<8x128xf32>
    %797 = tpu.reciprocal %796 {approx = true} : vector<8x128xf32> -> vector<8x128xf32>
    %798 = arith.mulf %796, %797 : vector<8x128xf32>
    %cst_387 = arith.constant 2.000000e+00 : f32
    %799 = vector.broadcast %cst_387 : f32 to vector<8x128xf32>
    %800 = arith.subf %799, %798 : vector<8x128xf32>
    %801 = arith.mulf %797, %800 : vector<8x128xf32>
    %cst_388 = arith.constant 1.06140542 : f32
    %802 = vector.broadcast %cst_388 : f32 to vector<8x128xf32>
    %803 = arith.mulf %802, %801 : vector<8x128xf32>
    %cst_389 = arith.constant -1.45315206 : f32
    %804 = vector.broadcast %cst_389 : f32 to vector<8x128xf32>
    %805 = arith.addf %803, %804 : vector<8x128xf32>
    %806 = arith.mulf %805, %801 : vector<8x128xf32>
    %cst_390 = arith.constant 1.42141378 : f32
    %807 = vector.broadcast %cst_390 : f32 to vector<8x128xf32>
    %808 = arith.addf %806, %807 : vector<8x128xf32>
    %809 = arith.mulf %808, %801 : vector<8x128xf32>
    %cst_391 = arith.constant -0.284496725 : f32
    %810 = vector.broadcast %cst_391 : f32 to vector<8x128xf32>
    %811 = arith.addf %809, %810 : vector<8x128xf32>
    %812 = arith.mulf %811, %801 : vector<8x128xf32>
    %cst_392 = arith.constant 0.254829586 : f32
    %813 = vector.broadcast %cst_392 : f32 to vector<8x128xf32>
    %814 = arith.addf %812, %813 : vector<8x128xf32>
    %815 = arith.mulf %814, %801 : vector<8x128xf32>
    %cst_393 = arith.constant 0.000000e+00 : f32
    %816 = vector.broadcast %cst_393 : f32 to vector<8x128xf32>
    %817 = arith.subf %816, %792 : vector<8x128xf32>
    %818 = arith.mulf %817, %792 : vector<8x128xf32>
    %819 = math.exp %818 : vector<8x128xf32>
    %820 = arith.mulf %815, %819 : vector<8x128xf32>
    %cst_394 = arith.constant 1.000000e+00 : f32
    %821 = vector.broadcast %cst_394 : f32 to vector<8x128xf32>
    %822 = arith.subf %821, %820 : vector<8x128xf32>
    %823 = arith.mulf %791, %822 : vector<8x128xf32>
    %cst_395 = arith.constant 1.000000e+00 : f32
    %824 = vector.broadcast %cst_395 : f32 to vector<8x128xf32>
    %825 = arith.addf %824, %823 : vector<8x128xf32>
    %cst_396 = arith.constant 5.000000e-01 : f32
    %826 = vector.broadcast %cst_396 : f32 to vector<8x128xf32>
    %827 = arith.mulf %826, %825 : vector<8x128xf32>
    %828 = arith.subf %827, %779 : vector<8x128xf32>
    %c2_397 = arith.constant 2 : index
    %c0_398 = arith.constant 0 : index
    %c0_399 = arith.constant 0 : index
    %829 = vector.load %arg8[%c2_397, %c0_398, %c0_399] : memref<16x8x128xf32, #tpu.memory_space<vmem>>, vector<1x8x128xf32>
    %830 = vector.shape_cast %829 : vector<1x8x128xf32> to vector<8x128xf32>
    %831 = vector.shape_cast %828 : vector<8x128xf32> to vector<1x8x128xf32>
    tpu.vector_store %arg8[%c2_397, %c0_398, %c0_399], %831 {strides = array<i32>} : memref<16x8x128xf32, #tpu.memory_space<vmem>>, vector<1x8x128xf32>,
    %cst_400 = arith.constant -5.000000e-01 : f32
    %832 = vector.broadcast %cst_400 : f32 to vector<8x128xf32>
    %833 = arith.mulf %832, %683 : vector<8x128xf32>
    %834 = arith.addf %833, %686 : vector<8x128xf32>
    %cst_401 = arith.constant 0.000000e+00 : f32
    %835 = vector.broadcast %cst_401 : f32 to vector<8x128xf32>
    %836 = arith.cmpf oge, %834, %835 : vector<8x128xf32>
    %cst_402 = arith.constant 1.000000e+00 : f32
    %cst_403 = arith.constant -1.000000e+00 : f32
    %837 = vector.broadcast %cst_402 : f32 to vector<8x128xf32>
    %838 = vector.broadcast %cst_403 : f32 to vector<8x128xf32>
    %839 = arith.select %836, %837, %838 : vector<8x128xi1>, vector<8x128xf32>
    %840 = math.absf %834 : vector<8x128xf32>
    %cst_404 = arith.constant 0.327591091 : f32
    %841 = vector.broadcast %cst_404 : f32 to vector<8x128xf32>
    %842 = arith.mulf %841, %840 : vector<8x128xf32>
    %cst_405 = arith.constant 1.000000e+00 : f32
    %843 = vector.broadcast %cst_405 : f32 to vector<8x128xf32>
    %844 = arith.addf %843, %842 : vector<8x128xf32>
    %845 = tpu.reciprocal %844 {approx = true} : vector<8x128xf32> -> vector<8x128xf32>
    %846 = arith.mulf %844, %845 : vector<8x128xf32>
    %cst_406 = arith.constant 2.000000e+00 : f32
    %847 = vector.broadcast %cst_406 : f32 to vector<8x128xf32>
    %848 = arith.subf %847, %846 : vector<8x128xf32>
    %849 = arith.mulf %845, %848 : vector<8x128xf32>
    %cst_407 = arith.constant 1.06140542 : f32
    %850 = vector.broadcast %cst_407 : f32 to vector<8x128xf32>
    %851 = arith.mulf %850, %849 : vector<8x128xf32>
    %cst_408 = arith.constant -1.45315206 : f32
    %852 = vector.broadcast %cst_408 : f32 to vector<8x128xf32>
    %853 = arith.addf %851, %852 : vector<8x128xf32>
    %854 = arith.mulf %853, %849 : vector<8x128xf32>
    %cst_409 = arith.constant 1.42141378 : f32
    %855 = vector.broadcast %cst_409 : f32 to vector<8x128xf32>
    %856 = arith.addf %854, %855 : vector<8x128xf32>
    %857 = arith.mulf %856, %849 : vector<8x128xf32>
    %cst_410 = arith.constant -0.284496725 : f32
    %858 = vector.broadcast %cst_410 : f32 to vector<8x128xf32>
    %859 = arith.addf %857, %858 : vector<8x128xf32>
    %860 = arith.mulf %859, %849 : vector<8x128xf32>
    %cst_411 = arith.constant 0.254829586 : f32
    %861 = vector.broadcast %cst_411 : f32 to vector<8x128xf32>
    %862 = arith.addf %860, %861 : vector<8x128xf32>
    %863 = arith.mulf %862, %849 : vector<8x128xf32>
    %cst_412 = arith.constant 0.000000e+00 : f32
    %864 = vector.broadcast %cst_412 : f32 to vector<8x128xf32>
    %865 = arith.subf %864, %840 : vector<8x128xf32>
    %866 = arith.mulf %865, %840 : vector<8x128xf32>
    %867 = math.exp %866 : vector<8x128xf32>
    %868 = arith.mulf %863, %867 : vector<8x128xf32>
    %cst_413 = arith.constant 1.000000e+00 : f32
    %869 = vector.broadcast %cst_413 : f32 to vector<8x128xf32>
    %870 = arith.subf %869, %868 : vector<8x128xf32>
    %871 = arith.mulf %839, %870 : vector<8x128xf32>
    %cst_414 = arith.constant 1.000000e+00 : f32
    %872 = vector.broadcast %cst_414 : f32 to vector<8x128xf32>
    %873 = arith.addf %872, %871 : vector<8x128xf32>
    %cst_415 = arith.constant 5.000000e-01 : f32
    %874 = vector.broadcast %cst_415 : f32 to vector<8x128xf32>
    %875 = arith.mulf %874, %873 : vector<8x128xf32>
    %876 = arith.subf %875, %827 : vector<8x128xf32>
    %c3_416 = arith.constant 3 : index
    %c0_417 = arith.constant 0 : index
    %c0_418 = arith.constant 0 : index
    %877 = vector.load %arg8[%c3_416, %c0_417, %c0_418] : memref<16x8x128xf32, #tpu.memory_space<vmem>>, vector<1x8x128xf32>
    %878 = vector.shape_cast %877 : vector<1x8x128xf32> to vector<8x128xf32>
    %879 = vector.shape_cast %876 : vector<8x128xf32> to vector<1x8x128xf32>
    tpu.vector_store %arg8[%c3_416, %c0_417, %c0_418], %879 {strides = array<i32>} : memref<16x8x128xf32, #tpu.memory_space<vmem>>, vector<1x8x128xf32>,
    %cst_419 = arith.constant -3.750000e-01 : f32
    %880 = vector.broadcast %cst_419 : f32 to vector<8x128xf32>
    %881 = arith.mulf %880, %683 : vector<8x128xf32>
    %882 = arith.addf %881, %686 : vector<8x128xf32>
    %cst_420 = arith.constant 0.000000e+00 : f32
    %883 = vector.broadcast %cst_420 : f32 to vector<8x128xf32>
    %884 = arith.cmpf oge, %882, %883 : vector<8x128xf32>
    %cst_421 = arith.constant 1.000000e+00 : f32
    %cst_422 = arith.constant -1.000000e+00 : f32
    %885 = vector.broadcast %cst_421 : f32 to vector<8x128xf32>
    %886 = vector.broadcast %cst_422 : f32 to vector<8x128xf32>
    %887 = arith.select %884, %885, %886 : vector<8x128xi1>, vector<8x128xf32>
    %888 = math.absf %882 : vector<8x128xf32>
    %cst_423 = arith.constant 0.327591091 : f32
    %889 = vector.broadcast %cst_423 : f32 to vector<8x128xf32>
    %890 = arith.mulf %889, %888 : vector<8x128xf32>
    %cst_424 = arith.constant 1.000000e+00 : f32
    %891 = vector.broadcast %cst_424 : f32 to vector<8x128xf32>
    %892 = arith.addf %891, %890 : vector<8x128xf32>
    %893 = tpu.reciprocal %892 {approx = true} : vector<8x128xf32> -> vector<8x128xf32>
    %894 = arith.mulf %892, %893 : vector<8x128xf32>
    %cst_425 = arith.constant 2.000000e+00 : f32
    %895 = vector.broadcast %cst_425 : f32 to vector<8x128xf32>
    %896 = arith.subf %895, %894 : vector<8x128xf32>
    %897 = arith.mulf %893, %896 : vector<8x128xf32>
    %cst_426 = arith.constant 1.06140542 : f32
    %898 = vector.broadcast %cst_426 : f32 to vector<8x128xf32>
    %899 = arith.mulf %898, %897 : vector<8x128xf32>
    %cst_427 = arith.constant -1.45315206 : f32
    %900 = vector.broadcast %cst_427 : f32 to vector<8x128xf32>
    %901 = arith.addf %899, %900 : vector<8x128xf32>
    %902 = arith.mulf %901, %897 : vector<8x128xf32>
    %cst_428 = arith.constant 1.42141378 : f32
    %903 = vector.broadcast %cst_428 : f32 to vector<8x128xf32>
    %904 = arith.addf %902, %903 : vector<8x128xf32>
    %905 = arith.mulf %904, %897 : vector<8x128xf32>
    %cst_429 = arith.constant -0.284496725 : f32
    %906 = vector.broadcast %cst_429 : f32 to vector<8x128xf32>
    %907 = arith.addf %905, %906 : vector<8x128xf32>
    %908 = arith.mulf %907, %897 : vector<8x128xf32>
    %cst_430 = arith.constant 0.254829586 : f32
    %909 = vector.broadcast %cst_430 : f32 to vector<8x128xf32>
    %910 = arith.addf %908, %909 : vector<8x128xf32>
    %911 = arith.mulf %910, %897 : vector<8x128xf32>
    %cst_431 = arith.constant 0.000000e+00 : f32
    %912 = vector.broadcast %cst_431 : f32 to vector<8x128xf32>
    %913 = arith.subf %912, %888 : vector<8x128xf32>
    %914 = arith.mulf %913, %888 : vector<8x128xf32>
    %915 = math.exp %914 : vector<8x128xf32>
    %916 = arith.mulf %911, %915 : vector<8x128xf32>
    %cst_432 = arith.constant 1.000000e+00 : f32
    %917 = vector.broadcast %cst_432 : f32 to vector<8x128xf32>
    %918 = arith.subf %917, %916 : vector<8x128xf32>
    %919 = arith.mulf %887, %918 : vector<8x128xf32>
    %cst_433 = arith.constant 1.000000e+00 : f32
    %920 = vector.broadcast %cst_433 : f32 to vector<8x128xf32>
    %921 = arith.addf %920, %919 : vector<8x128xf32>
    %cst_434 = arith.constant 5.000000e-01 : f32
    %922 = vector.broadcast %cst_434 : f32 to vector<8x128xf32>
    %923 = arith.mulf %922, %921 : vector<8x128xf32>
    %924 = arith.subf %923, %875 : vector<8x128xf32>
    %c4_435 = arith.constant 4 : index
    %c0_436 = arith.constant 0 : index
    %c0_437 = arith.constant 0 : index
    %925 = vector.load %arg8[%c4_435, %c0_436, %c0_437] : memref<16x8x128xf32, #tpu.memory_space<vmem>>, vector<1x8x128xf32>
    %926 = vector.shape_cast %925 : vector<1x8x128xf32> to vector<8x128xf32>
    %927 = vector.shape_cast %924 : vector<8x128xf32> to vector<1x8x128xf32>
    tpu.vector_store %arg8[%c4_435, %c0_436, %c0_437], %927 {strides = array<i32>} : memref<16x8x128xf32, #tpu.memory_space<vmem>>, vector<1x8x128xf32>,
    %cst_438 = arith.constant -2.500000e-01 : f32
    %928 = vector.broadcast %cst_438 : f32 to vector<8x128xf32>
    %929 = arith.mulf %928, %683 : vector<8x128xf32>
    %930 = arith.addf %929, %686 : vector<8x128xf32>
    %cst_439 = arith.constant 0.000000e+00 : f32
    %931 = vector.broadcast %cst_439 : f32 to vector<8x128xf32>
    %932 = arith.cmpf oge, %930, %931 : vector<8x128xf32>
    %cst_440 = arith.constant 1.000000e+00 : f32
    %cst_441 = arith.constant -1.000000e+00 : f32
    %933 = vector.broadcast %cst_440 : f32 to vector<8x128xf32>
    %934 = vector.broadcast %cst_441 : f32 to vector<8x128xf32>
    %935 = arith.select %932, %933, %934 : vector<8x128xi1>, vector<8x128xf32>
    %936 = math.absf %930 : vector<8x128xf32>
    %cst_442 = arith.constant 0.327591091 : f32
    %937 = vector.broadcast %cst_442 : f32 to vector<8x128xf32>
    %938 = arith.mulf %937, %936 : vector<8x128xf32>
    %cst_443 = arith.constant 1.000000e+00 : f32
    %939 = vector.broadcast %cst_443 : f32 to vector<8x128xf32>
    %940 = arith.addf %939, %938 : vector<8x128xf32>
    %941 = tpu.reciprocal %940 {approx = true} : vector<8x128xf32> -> vector<8x128xf32>
    %942 = arith.mulf %940, %941 : vector<8x128xf32>
    %cst_444 = arith.constant 2.000000e+00 : f32
    %943 = vector.broadcast %cst_444 : f32 to vector<8x128xf32>
    %944 = arith.subf %943, %942 : vector<8x128xf32>
    %945 = arith.mulf %941, %944 : vector<8x128xf32>
    %cst_445 = arith.constant 1.06140542 : f32
    %946 = vector.broadcast %cst_445 : f32 to vector<8x128xf32>
    %947 = arith.mulf %946, %945 : vector<8x128xf32>
    %cst_446 = arith.constant -1.45315206 : f32
    %948 = vector.broadcast %cst_446 : f32 to vector<8x128xf32>
    %949 = arith.addf %947, %948 : vector<8x128xf32>
    %950 = arith.mulf %949, %945 : vector<8x128xf32>
    %cst_447 = arith.constant 1.42141378 : f32
    %951 = vector.broadcast %cst_447 : f32 to vector<8x128xf32>
    %952 = arith.addf %950, %951 : vector<8x128xf32>
    %953 = arith.mulf %952, %945 : vector<8x128xf32>
    %cst_448 = arith.constant -0.284496725 : f32
    %954 = vector.broadcast %cst_448 : f32 to vector<8x128xf32>
    %955 = arith.addf %953, %954 : vector<8x128xf32>
    %956 = arith.mulf %955, %945 : vector<8x128xf32>
    %cst_449 = arith.constant 0.254829586 : f32
    %957 = vector.broadcast %cst_449 : f32 to vector<8x128xf32>
    %958 = arith.addf %956, %957 : vector<8x128xf32>
    %959 = arith.mulf %958, %945 : vector<8x128xf32>
    %cst_450 = arith.constant 0.000000e+00 : f32
    %960 = vector.broadcast %cst_450 : f32 to vector<8x128xf32>
    %961 = arith.subf %960, %936 : vector<8x128xf32>
    %962 = arith.mulf %961, %936 : vector<8x128xf32>
    %963 = math.exp %962 : vector<8x128xf32>
    %964 = arith.mulf %959, %963 : vector<8x128xf32>
    %cst_451 = arith.constant 1.000000e+00 : f32
    %965 = vector.broadcast %cst_451 : f32 to vector<8x128xf32>
    %966 = arith.subf %965, %964 : vector<8x128xf32>
    %967 = arith.mulf %935, %966 : vector<8x128xf32>
    %cst_452 = arith.constant 1.000000e+00 : f32
    %968 = vector.broadcast %cst_452 : f32 to vector<8x128xf32>
    %969 = arith.addf %968, %967 : vector<8x128xf32>
    %cst_453 = arith.constant 5.000000e-01 : f32
    %970 = vector.broadcast %cst_453 : f32 to vector<8x128xf32>
    %971 = arith.mulf %970, %969 : vector<8x128xf32>
    %972 = arith.subf %971, %923 : vector<8x128xf32>
    %c5_454 = arith.constant 5 : index
    %c0_455 = arith.constant 0 : index
    %c0_456 = arith.constant 0 : index
    %973 = vector.load %arg8[%c5_454, %c0_455, %c0_456] : memref<16x8x128xf32, #tpu.memory_space<vmem>>, vector<1x8x128xf32>
    %974 = vector.shape_cast %973 : vector<1x8x128xf32> to vector<8x128xf32>
    %975 = vector.shape_cast %972 : vector<8x128xf32> to vector<1x8x128xf32>
    tpu.vector_store %arg8[%c5_454, %c0_455, %c0_456], %975 {strides = array<i32>} : memref<16x8x128xf32, #tpu.memory_space<vmem>>, vector<1x8x128xf32>,
    %cst_457 = arith.constant -1.250000e-01 : f32
    %976 = vector.broadcast %cst_457 : f32 to vector<8x128xf32>
    %977 = arith.mulf %976, %683 : vector<8x128xf32>
    %978 = arith.addf %977, %686 : vector<8x128xf32>
    %cst_458 = arith.constant 0.000000e+00 : f32
    %979 = vector.broadcast %cst_458 : f32 to vector<8x128xf32>
    %980 = arith.cmpf oge, %978, %979 : vector<8x128xf32>
    %cst_459 = arith.constant 1.000000e+00 : f32
    %cst_460 = arith.constant -1.000000e+00 : f32
    %981 = vector.broadcast %cst_459 : f32 to vector<8x128xf32>
    %982 = vector.broadcast %cst_460 : f32 to vector<8x128xf32>
    %983 = arith.select %980, %981, %982 : vector<8x128xi1>, vector<8x128xf32>
    %984 = math.absf %978 : vector<8x128xf32>
    %cst_461 = arith.constant 0.327591091 : f32
    %985 = vector.broadcast %cst_461 : f32 to vector<8x128xf32>
    %986 = arith.mulf %985, %984 : vector<8x128xf32>
    %cst_462 = arith.constant 1.000000e+00 : f32
    %987 = vector.broadcast %cst_462 : f32 to vector<8x128xf32>
    %988 = arith.addf %987, %986 : vector<8x128xf32>
    %989 = tpu.reciprocal %988 {approx = true} : vector<8x128xf32> -> vector<8x128xf32>
    %990 = arith.mulf %988, %989 : vector<8x128xf32>
    %cst_463 = arith.constant 2.000000e+00 : f32
    %991 = vector.broadcast %cst_463 : f32 to vector<8x128xf32>
    %992 = arith.subf %991, %990 : vector<8x128xf32>
    %993 = arith.mulf %989, %992 : vector<8x128xf32>
    %cst_464 = arith.constant 1.06140542 : f32
    %994 = vector.broadcast %cst_464 : f32 to vector<8x128xf32>
    %995 = arith.mulf %994, %993 : vector<8x128xf32>
    %cst_465 = arith.constant -1.45315206 : f32
    %996 = vector.broadcast %cst_465 : f32 to vector<8x128xf32>
    %997 = arith.addf %995, %996 : vector<8x128xf32>
    %998 = arith.mulf %997, %993 : vector<8x128xf32>
    %cst_466 = arith.constant 1.42141378 : f32
    %999 = vector.broadcast %cst_466 : f32 to vector<8x128xf32>
    %1000 = arith.addf %998, %999 : vector<8x128xf32>
    %1001 = arith.mulf %1000, %993 : vector<8x128xf32>
    %cst_467 = arith.constant -0.284496725 : f32
    %1002 = vector.broadcast %cst_467 : f32 to vector<8x128xf32>
    %1003 = arith.addf %1001, %1002 : vector<8x128xf32>
    %1004 = arith.mulf %1003, %993 : vector<8x128xf32>
    %cst_468 = arith.constant 0.254829586 : f32
    %1005 = vector.broadcast %cst_468 : f32 to vector<8x128xf32>
    %1006 = arith.addf %1004, %1005 : vector<8x128xf32>
    %1007 = arith.mulf %1006, %993 : vector<8x128xf32>
    %cst_469 = arith.constant 0.000000e+00 : f32
    %1008 = vector.broadcast %cst_469 : f32 to vector<8x128xf32>
    %1009 = arith.subf %1008, %984 : vector<8x128xf32>
    %1010 = arith.mulf %1009, %984 : vector<8x128xf32>
    %1011 = math.exp %1010 : vector<8x128xf32>
    %1012 = arith.mulf %1007, %1011 : vector<8x128xf32>
    %cst_470 = arith.constant 1.000000e+00 : f32
    %1013 = vector.broadcast %cst_470 : f32 to vector<8x128xf32>
    %1014 = arith.subf %1013, %1012 : vector<8x128xf32>
    %1015 = arith.mulf %983, %1014 : vector<8x128xf32>
    %cst_471 = arith.constant 1.000000e+00 : f32
    %1016 = vector.broadcast %cst_471 : f32 to vector<8x128xf32>
    %1017 = arith.addf %1016, %1015 : vector<8x128xf32>
    %cst_472 = arith.constant 5.000000e-01 : f32
    %1018 = vector.broadcast %cst_472 : f32 to vector<8x128xf32>
    %1019 = arith.mulf %1018, %1017 : vector<8x128xf32>
    %1020 = arith.subf %1019, %971 : vector<8x128xf32>
    %c6_473 = arith.constant 6 : index
    %c0_474 = arith.constant 0 : index
    %c0_475 = arith.constant 0 : index
    %1021 = vector.load %arg8[%c6_473, %c0_474, %c0_475] : memref<16x8x128xf32, #tpu.memory_space<vmem>>, vector<1x8x128xf32>
    %1022 = vector.shape_cast %1021 : vector<1x8x128xf32> to vector<8x128xf32>
    %1023 = vector.shape_cast %1020 : vector<8x128xf32> to vector<1x8x128xf32>
    tpu.vector_store %arg8[%c6_473, %c0_474, %c0_475], %1023 {strides = array<i32>} : memref<16x8x128xf32, #tpu.memory_space<vmem>>, vector<1x8x128xf32>,
    %cst_476 = arith.constant 0.000000e+00 : f32
    %1024 = vector.broadcast %cst_476 : f32 to vector<8x128xf32>
    %1025 = arith.mulf %1024, %683 : vector<8x128xf32>
    %1026 = arith.addf %1025, %686 : vector<8x128xf32>
    %cst_477 = arith.constant 0.000000e+00 : f32
    %1027 = vector.broadcast %cst_477 : f32 to vector<8x128xf32>
    %1028 = arith.cmpf oge, %1026, %1027 : vector<8x128xf32>
    %cst_478 = arith.constant 1.000000e+00 : f32
    %cst_479 = arith.constant -1.000000e+00 : f32
    %1029 = vector.broadcast %cst_478 : f32 to vector<8x128xf32>
    %1030 = vector.broadcast %cst_479 : f32 to vector<8x128xf32>
    %1031 = arith.select %1028, %1029, %1030 : vector<8x128xi1>, vector<8x128xf32>
    %1032 = math.absf %1026 : vector<8x128xf32>
    %cst_480 = arith.constant 0.327591091 : f32
    %1033 = vector.broadcast %cst_480 : f32 to vector<8x128xf32>
    %1034 = arith.mulf %1033, %1032 : vector<8x128xf32>
    %cst_481 = arith.constant 1.000000e+00 : f32
    %1035 = vector.broadcast %cst_481 : f32 to vector<8x128xf32>
    %1036 = arith.addf %1035, %1034 : vector<8x128xf32>
    %1037 = tpu.reciprocal %1036 {approx = true} : vector<8x128xf32> -> vector<8x128xf32>
    %1038 = arith.mulf %1036, %1037 : vector<8x128xf32>
    %cst_482 = arith.constant 2.000000e+00 : f32
    %1039 = vector.broadcast %cst_482 : f32 to vector<8x128xf32>
    %1040 = arith.subf %1039, %1038 : vector<8x128xf32>
    %1041 = arith.mulf %1037, %1040 : vector<8x128xf32>
    %cst_483 = arith.constant 1.06140542 : f32
    %1042 = vector.broadcast %cst_483 : f32 to vector<8x128xf32>
    %1043 = arith.mulf %1042, %1041 : vector<8x128xf32>
    %cst_484 = arith.constant -1.45315206 : f32
    %1044 = vector.broadcast %cst_484 : f32 to vector<8x128xf32>
    %1045 = arith.addf %1043, %1044 : vector<8x128xf32>
    %1046 = arith.mulf %1045, %1041 : vector<8x128xf32>
    %cst_485 = arith.constant 1.42141378 : f32
    %1047 = vector.broadcast %cst_485 : f32 to vector<8x128xf32>
    %1048 = arith.addf %1046, %1047 : vector<8x128xf32>
    %1049 = arith.mulf %1048, %1041 : vector<8x128xf32>
    %cst_486 = arith.constant -0.284496725 : f32
    %1050 = vector.broadcast %cst_486 : f32 to vector<8x128xf32>
    %1051 = arith.addf %1049, %1050 : vector<8x128xf32>
    %1052 = arith.mulf %1051, %1041 : vector<8x128xf32>
    %cst_487 = arith.constant 0.254829586 : f32
    %1053 = vector.broadcast %cst_487 : f32 to vector<8x128xf32>
    %1054 = arith.addf %1052, %1053 : vector<8x128xf32>
    %1055 = arith.mulf %1054, %1041 : vector<8x128xf32>
    %cst_488 = arith.constant 0.000000e+00 : f32
    %1056 = vector.broadcast %cst_488 : f32 to vector<8x128xf32>
    %1057 = arith.subf %1056, %1032 : vector<8x128xf32>
    %1058 = arith.mulf %1057, %1032 : vector<8x128xf32>
    %1059 = math.exp %1058 : vector<8x128xf32>
    %1060 = arith.mulf %1055, %1059 : vector<8x128xf32>
    %cst_489 = arith.constant 1.000000e+00 : f32
    %1061 = vector.broadcast %cst_489 : f32 to vector<8x128xf32>
    %1062 = arith.subf %1061, %1060 : vector<8x128xf32>
    %1063 = arith.mulf %1031, %1062 : vector<8x128xf32>
    %cst_490 = arith.constant 1.000000e+00 : f32
    %1064 = vector.broadcast %cst_490 : f32 to vector<8x128xf32>
    %1065 = arith.addf %1064, %1063 : vector<8x128xf32>
    %cst_491 = arith.constant 5.000000e-01 : f32
    %1066 = vector.broadcast %cst_491 : f32 to vector<8x128xf32>
    %1067 = arith.mulf %1066, %1065 : vector<8x128xf32>
    %1068 = arith.subf %1067, %1019 : vector<8x128xf32>
    %c7_492 = arith.constant 7 : index
    %c0_493 = arith.constant 0 : index
    %c0_494 = arith.constant 0 : index
    %1069 = vector.load %arg8[%c7_492, %c0_493, %c0_494] : memref<16x8x128xf32, #tpu.memory_space<vmem>>, vector<1x8x128xf32>
    %1070 = vector.shape_cast %1069 : vector<1x8x128xf32> to vector<8x128xf32>
    %1071 = vector.shape_cast %1068 : vector<8x128xf32> to vector<1x8x128xf32>
    tpu.vector_store %arg8[%c7_492, %c0_493, %c0_494], %1071 {strides = array<i32>} : memref<16x8x128xf32, #tpu.memory_space<vmem>>, vector<1x8x128xf32>,
    %cst_495 = arith.constant 1.250000e-01 : f32
    %1072 = vector.broadcast %cst_495 : f32 to vector<8x128xf32>
    %1073 = arith.mulf %1072, %683 : vector<8x128xf32>
    %1074 = arith.addf %1073, %686 : vector<8x128xf32>
    %cst_496 = arith.constant 0.000000e+00 : f32
    %1075 = vector.broadcast %cst_496 : f32 to vector<8x128xf32>
    %1076 = arith.cmpf oge, %1074, %1075 : vector<8x128xf32>
    %cst_497 = arith.constant 1.000000e+00 : f32
    %cst_498 = arith.constant -1.000000e+00 : f32
    %1077 = vector.broadcast %cst_497 : f32 to vector<8x128xf32>
    %1078 = vector.broadcast %cst_498 : f32 to vector<8x128xf32>
    %1079 = arith.select %1076, %1077, %1078 : vector<8x128xi1>, vector<8x128xf32>
    %1080 = math.absf %1074 : vector<8x128xf32>
    %cst_499 = arith.constant 0.327591091 : f32
    %1081 = vector.broadcast %cst_499 : f32 to vector<8x128xf32>
    %1082 = arith.mulf %1081, %1080 : vector<8x128xf32>
    %cst_500 = arith.constant 1.000000e+00 : f32
    %1083 = vector.broadcast %cst_500 : f32 to vector<8x128xf32>
    %1084 = arith.addf %1083, %1082 : vector<8x128xf32>
    %1085 = tpu.reciprocal %1084 {approx = true} : vector<8x128xf32> -> vector<8x128xf32>
    %1086 = arith.mulf %1084, %1085 : vector<8x128xf32>
    %cst_501 = arith.constant 2.000000e+00 : f32
    %1087 = vector.broadcast %cst_501 : f32 to vector<8x128xf32>
    %1088 = arith.subf %1087, %1086 : vector<8x128xf32>
    %1089 = arith.mulf %1085, %1088 : vector<8x128xf32>
    %cst_502 = arith.constant 1.06140542 : f32
    %1090 = vector.broadcast %cst_502 : f32 to vector<8x128xf32>
    %1091 = arith.mulf %1090, %1089 : vector<8x128xf32>
    %cst_503 = arith.constant -1.45315206 : f32
    %1092 = vector.broadcast %cst_503 : f32 to vector<8x128xf32>
    %1093 = arith.addf %1091, %1092 : vector<8x128xf32>
    %1094 = arith.mulf %1093, %1089 : vector<8x128xf32>
    %cst_504 = arith.constant 1.42141378 : f32
    %1095 = vector.broadcast %cst_504 : f32 to vector<8x128xf32>
    %1096 = arith.addf %1094, %1095 : vector<8x128xf32>
    %1097 = arith.mulf %1096, %1089 : vector<8x128xf32>
    %cst_505 = arith.constant -0.284496725 : f32
    %1098 = vector.broadcast %cst_505 : f32 to vector<8x128xf32>
    %1099 = arith.addf %1097, %1098 : vector<8x128xf32>
    %1100 = arith.mulf %1099, %1089 : vector<8x128xf32>
    %cst_506 = arith.constant 0.254829586 : f32
    %1101 = vector.broadcast %cst_506 : f32 to vector<8x128xf32>
    %1102 = arith.addf %1100, %1101 : vector<8x128xf32>
    %1103 = arith.mulf %1102, %1089 : vector<8x128xf32>
    %cst_507 = arith.constant 0.000000e+00 : f32
    %1104 = vector.broadcast %cst_507 : f32 to vector<8x128xf32>
    %1105 = arith.subf %1104, %1080 : vector<8x128xf32>
    %1106 = arith.mulf %1105, %1080 : vector<8x128xf32>
    %1107 = math.exp %1106 : vector<8x128xf32>
    %1108 = arith.mulf %1103, %1107 : vector<8x128xf32>
    %cst_508 = arith.constant 1.000000e+00 : f32
    %1109 = vector.broadcast %cst_508 : f32 to vector<8x128xf32>
    %1110 = arith.subf %1109, %1108 : vector<8x128xf32>
    %1111 = arith.mulf %1079, %1110 : vector<8x128xf32>
    %cst_509 = arith.constant 1.000000e+00 : f32
    %1112 = vector.broadcast %cst_509 : f32 to vector<8x128xf32>
    %1113 = arith.addf %1112, %1111 : vector<8x128xf32>
    %cst_510 = arith.constant 5.000000e-01 : f32
    %1114 = vector.broadcast %cst_510 : f32 to vector<8x128xf32>
    %1115 = arith.mulf %1114, %1113 : vector<8x128xf32>
    %1116 = arith.subf %1115, %1067 : vector<8x128xf32>
    %c8_511 = arith.constant 8 : index
    %c0_512 = arith.constant 0 : index
    %c0_513 = arith.constant 0 : index
    %1117 = vector.load %arg8[%c8_511, %c0_512, %c0_513] : memref<16x8x128xf32, #tpu.memory_space<vmem>>, vector<1x8x128xf32>
    %1118 = vector.shape_cast %1117 : vector<1x8x128xf32> to vector<8x128xf32>
    %1119 = vector.shape_cast %1116 : vector<8x128xf32> to vector<1x8x128xf32>
    tpu.vector_store %arg8[%c8_511, %c0_512, %c0_513], %1119 {strides = array<i32>} : memref<16x8x128xf32, #tpu.memory_space<vmem>>, vector<1x8x128xf32>,
    %cst_514 = arith.constant 2.500000e-01 : f32
    %1120 = vector.broadcast %cst_514 : f32 to vector<8x128xf32>
    %1121 = arith.mulf %1120, %683 : vector<8x128xf32>
    %1122 = arith.addf %1121, %686 : vector<8x128xf32>
    %cst_515 = arith.constant 0.000000e+00 : f32
    %1123 = vector.broadcast %cst_515 : f32 to vector<8x128xf32>
    %1124 = arith.cmpf oge, %1122, %1123 : vector<8x128xf32>
    %cst_516 = arith.constant 1.000000e+00 : f32
    %cst_517 = arith.constant -1.000000e+00 : f32
    %1125 = vector.broadcast %cst_516 : f32 to vector<8x128xf32>
    %1126 = vector.broadcast %cst_517 : f32 to vector<8x128xf32>
    %1127 = arith.select %1124, %1125, %1126 : vector<8x128xi1>, vector<8x128xf32>
    %1128 = math.absf %1122 : vector<8x128xf32>
    %cst_518 = arith.constant 0.327591091 : f32
    %1129 = vector.broadcast %cst_518 : f32 to vector<8x128xf32>
    %1130 = arith.mulf %1129, %1128 : vector<8x128xf32>
    %cst_519 = arith.constant 1.000000e+00 : f32
    %1131 = vector.broadcast %cst_519 : f32 to vector<8x128xf32>
    %1132 = arith.addf %1131, %1130 : vector<8x128xf32>
    %1133 = tpu.reciprocal %1132 {approx = true} : vector<8x128xf32> -> vector<8x128xf32>
    %1134 = arith.mulf %1132, %1133 : vector<8x128xf32>
    %cst_520 = arith.constant 2.000000e+00 : f32
    %1135 = vector.broadcast %cst_520 : f32 to vector<8x128xf32>
    %1136 = arith.subf %1135, %1134 : vector<8x128xf32>
    %1137 = arith.mulf %1133, %1136 : vector<8x128xf32>
    %cst_521 = arith.constant 1.06140542 : f32
    %1138 = vector.broadcast %cst_521 : f32 to vector<8x128xf32>
    %1139 = arith.mulf %1138, %1137 : vector<8x128xf32>
    %cst_522 = arith.constant -1.45315206 : f32
    %1140 = vector.broadcast %cst_522 : f32 to vector<8x128xf32>
    %1141 = arith.addf %1139, %1140 : vector<8x128xf32>
    %1142 = arith.mulf %1141, %1137 : vector<8x128xf32>
    %cst_523 = arith.constant 1.42141378 : f32
    %1143 = vector.broadcast %cst_523 : f32 to vector<8x128xf32>
    %1144 = arith.addf %1142, %1143 : vector<8x128xf32>
    %1145 = arith.mulf %1144, %1137 : vector<8x128xf32>
    %cst_524 = arith.constant -0.284496725 : f32
    %1146 = vector.broadcast %cst_524 : f32 to vector<8x128xf32>
    %1147 = arith.addf %1145, %1146 : vector<8x128xf32>
    %1148 = arith.mulf %1147, %1137 : vector<8x128xf32>
    %cst_525 = arith.constant 0.254829586 : f32
    %1149 = vector.broadcast %cst_525 : f32 to vector<8x128xf32>
    %1150 = arith.addf %1148, %1149 : vector<8x128xf32>
    %1151 = arith.mulf %1150, %1137 : vector<8x128xf32>
    %cst_526 = arith.constant 0.000000e+00 : f32
    %1152 = vector.broadcast %cst_526 : f32 to vector<8x128xf32>
    %1153 = arith.subf %1152, %1128 : vector<8x128xf32>
    %1154 = arith.mulf %1153, %1128 : vector<8x128xf32>
    %1155 = math.exp %1154 : vector<8x128xf32>
    %1156 = arith.mulf %1151, %1155 : vector<8x128xf32>
    %cst_527 = arith.constant 1.000000e+00 : f32
    %1157 = vector.broadcast %cst_527 : f32 to vector<8x128xf32>
    %1158 = arith.subf %1157, %1156 : vector<8x128xf32>
    %1159 = arith.mulf %1127, %1158 : vector<8x128xf32>
    %cst_528 = arith.constant 1.000000e+00 : f32
    %1160 = vector.broadcast %cst_528 : f32 to vector<8x128xf32>
    %1161 = arith.addf %1160, %1159 : vector<8x128xf32>
    %cst_529 = arith.constant 5.000000e-01 : f32
    %1162 = vector.broadcast %cst_529 : f32 to vector<8x128xf32>
    %1163 = arith.mulf %1162, %1161 : vector<8x128xf32>
    %1164 = arith.subf %1163, %1115 : vector<8x128xf32>
    %c9_530 = arith.constant 9 : index
    %c0_531 = arith.constant 0 : index
    %c0_532 = arith.constant 0 : index
    %1165 = vector.load %arg8[%c9_530, %c0_531, %c0_532] : memref<16x8x128xf32, #tpu.memory_space<vmem>>, vector<1x8x128xf32>
    %1166 = vector.shape_cast %1165 : vector<1x8x128xf32> to vector<8x128xf32>
    %1167 = vector.shape_cast %1164 : vector<8x128xf32> to vector<1x8x128xf32>
    tpu.vector_store %arg8[%c9_530, %c0_531, %c0_532], %1167 {strides = array<i32>} : memref<16x8x128xf32, #tpu.memory_space<vmem>>, vector<1x8x128xf32>,
    %cst_533 = arith.constant 3.750000e-01 : f32
    %1168 = vector.broadcast %cst_533 : f32 to vector<8x128xf32>
    %1169 = arith.mulf %1168, %683 : vector<8x128xf32>
    %1170 = arith.addf %1169, %686 : vector<8x128xf32>
    %cst_534 = arith.constant 0.000000e+00 : f32
    %1171 = vector.broadcast %cst_534 : f32 to vector<8x128xf32>
    %1172 = arith.cmpf oge, %1170, %1171 : vector<8x128xf32>
    %cst_535 = arith.constant 1.000000e+00 : f32
    %cst_536 = arith.constant -1.000000e+00 : f32
    %1173 = vector.broadcast %cst_535 : f32 to vector<8x128xf32>
    %1174 = vector.broadcast %cst_536 : f32 to vector<8x128xf32>
    %1175 = arith.select %1172, %1173, %1174 : vector<8x128xi1>, vector<8x128xf32>
    %1176 = math.absf %1170 : vector<8x128xf32>
    %cst_537 = arith.constant 0.327591091 : f32
    %1177 = vector.broadcast %cst_537 : f32 to vector<8x128xf32>
    %1178 = arith.mulf %1177, %1176 : vector<8x128xf32>
    %cst_538 = arith.constant 1.000000e+00 : f32
    %1179 = vector.broadcast %cst_538 : f32 to vector<8x128xf32>
    %1180 = arith.addf %1179, %1178 : vector<8x128xf32>
    %1181 = tpu.reciprocal %1180 {approx = true} : vector<8x128xf32> -> vector<8x128xf32>
    %1182 = arith.mulf %1180, %1181 : vector<8x128xf32>
    %cst_539 = arith.constant 2.000000e+00 : f32
    %1183 = vector.broadcast %cst_539 : f32 to vector<8x128xf32>
    %1184 = arith.subf %1183, %1182 : vector<8x128xf32>
    %1185 = arith.mulf %1181, %1184 : vector<8x128xf32>
    %cst_540 = arith.constant 1.06140542 : f32
    %1186 = vector.broadcast %cst_540 : f32 to vector<8x128xf32>
    %1187 = arith.mulf %1186, %1185 : vector<8x128xf32>
    %cst_541 = arith.constant -1.45315206 : f32
    %1188 = vector.broadcast %cst_541 : f32 to vector<8x128xf32>
    %1189 = arith.addf %1187, %1188 : vector<8x128xf32>
    %1190 = arith.mulf %1189, %1185 : vector<8x128xf32>
    %cst_542 = arith.constant 1.42141378 : f32
    %1191 = vector.broadcast %cst_542 : f32 to vector<8x128xf32>
    %1192 = arith.addf %1190, %1191 : vector<8x128xf32>
    %1193 = arith.mulf %1192, %1185 : vector<8x128xf32>
    %cst_543 = arith.constant -0.284496725 : f32
    %1194 = vector.broadcast %cst_543 : f32 to vector<8x128xf32>
    %1195 = arith.addf %1193, %1194 : vector<8x128xf32>
    %1196 = arith.mulf %1195, %1185 : vector<8x128xf32>
    %cst_544 = arith.constant 0.254829586 : f32
    %1197 = vector.broadcast %cst_544 : f32 to vector<8x128xf32>
    %1198 = arith.addf %1196, %1197 : vector<8x128xf32>
    %1199 = arith.mulf %1198, %1185 : vector<8x128xf32>
    %cst_545 = arith.constant 0.000000e+00 : f32
    %1200 = vector.broadcast %cst_545 : f32 to vector<8x128xf32>
    %1201 = arith.subf %1200, %1176 : vector<8x128xf32>
    %1202 = arith.mulf %1201, %1176 : vector<8x128xf32>
    %1203 = math.exp %1202 : vector<8x128xf32>
    %1204 = arith.mulf %1199, %1203 : vector<8x128xf32>
    %cst_546 = arith.constant 1.000000e+00 : f32
    %1205 = vector.broadcast %cst_546 : f32 to vector<8x128xf32>
    %1206 = arith.subf %1205, %1204 : vector<8x128xf32>
    %1207 = arith.mulf %1175, %1206 : vector<8x128xf32>
    %cst_547 = arith.constant 1.000000e+00 : f32
    %1208 = vector.broadcast %cst_547 : f32 to vector<8x128xf32>
    %1209 = arith.addf %1208, %1207 : vector<8x128xf32>
    %cst_548 = arith.constant 5.000000e-01 : f32
    %1210 = vector.broadcast %cst_548 : f32 to vector<8x128xf32>
    %1211 = arith.mulf %1210, %1209 : vector<8x128xf32>
    %1212 = arith.subf %1211, %1163 : vector<8x128xf32>
    %c10_549 = arith.constant 10 : index
    %c0_550 = arith.constant 0 : index
    %c0_551 = arith.constant 0 : index
    %1213 = vector.load %arg8[%c10_549, %c0_550, %c0_551] : memref<16x8x128xf32, #tpu.memory_space<vmem>>, vector<1x8x128xf32>
    %1214 = vector.shape_cast %1213 : vector<1x8x128xf32> to vector<8x128xf32>
    %1215 = vector.shape_cast %1212 : vector<8x128xf32> to vector<1x8x128xf32>
    tpu.vector_store %arg8[%c10_549, %c0_550, %c0_551], %1215 {strides = array<i32>} : memref<16x8x128xf32, #tpu.memory_space<vmem>>, vector<1x8x128xf32>,
    %cst_552 = arith.constant 5.000000e-01 : f32
    %1216 = vector.broadcast %cst_552 : f32 to vector<8x128xf32>
    %1217 = arith.mulf %1216, %683 : vector<8x128xf32>
    %1218 = arith.addf %1217, %686 : vector<8x128xf32>
    %cst_553 = arith.constant 0.000000e+00 : f32
    %1219 = vector.broadcast %cst_553 : f32 to vector<8x128xf32>
    %1220 = arith.cmpf oge, %1218, %1219 : vector<8x128xf32>
    %cst_554 = arith.constant 1.000000e+00 : f32
    %cst_555 = arith.constant -1.000000e+00 : f32
    %1221 = vector.broadcast %cst_554 : f32 to vector<8x128xf32>
    %1222 = vector.broadcast %cst_555 : f32 to vector<8x128xf32>
    %1223 = arith.select %1220, %1221, %1222 : vector<8x128xi1>, vector<8x128xf32>
    %1224 = math.absf %1218 : vector<8x128xf32>
    %cst_556 = arith.constant 0.327591091 : f32
    %1225 = vector.broadcast %cst_556 : f32 to vector<8x128xf32>
    %1226 = arith.mulf %1225, %1224 : vector<8x128xf32>
    %cst_557 = arith.constant 1.000000e+00 : f32
    %1227 = vector.broadcast %cst_557 : f32 to vector<8x128xf32>
    %1228 = arith.addf %1227, %1226 : vector<8x128xf32>
    %1229 = tpu.reciprocal %1228 {approx = true} : vector<8x128xf32> -> vector<8x128xf32>
    %1230 = arith.mulf %1228, %1229 : vector<8x128xf32>
    %cst_558 = arith.constant 2.000000e+00 : f32
    %1231 = vector.broadcast %cst_558 : f32 to vector<8x128xf32>
    %1232 = arith.subf %1231, %1230 : vector<8x128xf32>
    %1233 = arith.mulf %1229, %1232 : vector<8x128xf32>
    %cst_559 = arith.constant 1.06140542 : f32
    %1234 = vector.broadcast %cst_559 : f32 to vector<8x128xf32>
    %1235 = arith.mulf %1234, %1233 : vector<8x128xf32>
    %cst_560 = arith.constant -1.45315206 : f32
    %1236 = vector.broadcast %cst_560 : f32 to vector<8x128xf32>
    %1237 = arith.addf %1235, %1236 : vector<8x128xf32>
    %1238 = arith.mulf %1237, %1233 : vector<8x128xf32>
    %cst_561 = arith.constant 1.42141378 : f32
    %1239 = vector.broadcast %cst_561 : f32 to vector<8x128xf32>
    %1240 = arith.addf %1238, %1239 : vector<8x128xf32>
    %1241 = arith.mulf %1240, %1233 : vector<8x128xf32>
    %cst_562 = arith.constant -0.284496725 : f32
    %1242 = vector.broadcast %cst_562 : f32 to vector<8x128xf32>
    %1243 = arith.addf %1241, %1242 : vector<8x128xf32>
    %1244 = arith.mulf %1243, %1233 : vector<8x128xf32>
    %cst_563 = arith.constant 0.254829586 : f32
    %1245 = vector.broadcast %cst_563 : f32 to vector<8x128xf32>
    %1246 = arith.addf %1244, %1245 : vector<8x128xf32>
    %1247 = arith.mulf %1246, %1233 : vector<8x128xf32>
    %cst_564 = arith.constant 0.000000e+00 : f32
    %1248 = vector.broadcast %cst_564 : f32 to vector<8x128xf32>
    %1249 = arith.subf %1248, %1224 : vector<8x128xf32>
    %1250 = arith.mulf %1249, %1224 : vector<8x128xf32>
    %1251 = math.exp %1250 : vector<8x128xf32>
    %1252 = arith.mulf %1247, %1251 : vector<8x128xf32>
    %cst_565 = arith.constant 1.000000e+00 : f32
    %1253 = vector.broadcast %cst_565 : f32 to vector<8x128xf32>
    %1254 = arith.subf %1253, %1252 : vector<8x128xf32>
    %1255 = arith.mulf %1223, %1254 : vector<8x128xf32>
    %cst_566 = arith.constant 1.000000e+00 : f32
    %1256 = vector.broadcast %cst_566 : f32 to vector<8x128xf32>
    %1257 = arith.addf %1256, %1255 : vector<8x128xf32>
    %cst_567 = arith.constant 5.000000e-01 : f32
    %1258 = vector.broadcast %cst_567 : f32 to vector<8x128xf32>
    %1259 = arith.mulf %1258, %1257 : vector<8x128xf32>
    %1260 = arith.subf %1259, %1211 : vector<8x128xf32>
    %c11_568 = arith.constant 11 : index
    %c0_569 = arith.constant 0 : index
    %c0_570 = arith.constant 0 : index
    %1261 = vector.load %arg8[%c11_568, %c0_569, %c0_570] : memref<16x8x128xf32, #tpu.memory_space<vmem>>, vector<1x8x128xf32>
    %1262 = vector.shape_cast %1261 : vector<1x8x128xf32> to vector<8x128xf32>
    %1263 = vector.shape_cast %1260 : vector<8x128xf32> to vector<1x8x128xf32>
    tpu.vector_store %arg8[%c11_568, %c0_569, %c0_570], %1263 {strides = array<i32>} : memref<16x8x128xf32, #tpu.memory_space<vmem>>, vector<1x8x128xf32>,
    %cst_571 = arith.constant 6.250000e-01 : f32
    %1264 = vector.broadcast %cst_571 : f32 to vector<8x128xf32>
    %1265 = arith.mulf %1264, %683 : vector<8x128xf32>
    %1266 = arith.addf %1265, %686 : vector<8x128xf32>
    %cst_572 = arith.constant 0.000000e+00 : f32
    %1267 = vector.broadcast %cst_572 : f32 to vector<8x128xf32>
    %1268 = arith.cmpf oge, %1266, %1267 : vector<8x128xf32>
    %cst_573 = arith.constant 1.000000e+00 : f32
    %cst_574 = arith.constant -1.000000e+00 : f32
    %1269 = vector.broadcast %cst_573 : f32 to vector<8x128xf32>
    %1270 = vector.broadcast %cst_574 : f32 to vector<8x128xf32>
    %1271 = arith.select %1268, %1269, %1270 : vector<8x128xi1>, vector<8x128xf32>
    %1272 = math.absf %1266 : vector<8x128xf32>
    %cst_575 = arith.constant 0.327591091 : f32
    %1273 = vector.broadcast %cst_575 : f32 to vector<8x128xf32>
    %1274 = arith.mulf %1273, %1272 : vector<8x128xf32>
    %cst_576 = arith.constant 1.000000e+00 : f32
    %1275 = vector.broadcast %cst_576 : f32 to vector<8x128xf32>
    %1276 = arith.addf %1275, %1274 : vector<8x128xf32>
    %1277 = tpu.reciprocal %1276 {approx = true} : vector<8x128xf32> -> vector<8x128xf32>
    %1278 = arith.mulf %1276, %1277 : vector<8x128xf32>
    %cst_577 = arith.constant 2.000000e+00 : f32
    %1279 = vector.broadcast %cst_577 : f32 to vector<8x128xf32>
    %1280 = arith.subf %1279, %1278 : vector<8x128xf32>
    %1281 = arith.mulf %1277, %1280 : vector<8x128xf32>
    %cst_578 = arith.constant 1.06140542 : f32
    %1282 = vector.broadcast %cst_578 : f32 to vector<8x128xf32>
    %1283 = arith.mulf %1282, %1281 : vector<8x128xf32>
    %cst_579 = arith.constant -1.45315206 : f32
    %1284 = vector.broadcast %cst_579 : f32 to vector<8x128xf32>
    %1285 = arith.addf %1283, %1284 : vector<8x128xf32>
    %1286 = arith.mulf %1285, %1281 : vector<8x128xf32>
    %cst_580 = arith.constant 1.42141378 : f32
    %1287 = vector.broadcast %cst_580 : f32 to vector<8x128xf32>
    %1288 = arith.addf %1286, %1287 : vector<8x128xf32>
    %1289 = arith.mulf %1288, %1281 : vector<8x128xf32>
    %cst_581 = arith.constant -0.284496725 : f32
    %1290 = vector.broadcast %cst_581 : f32 to vector<8x128xf32>
    %1291 = arith.addf %1289, %1290 : vector<8x128xf32>
    %1292 = arith.mulf %1291, %1281 : vector<8x128xf32>
    %cst_582 = arith.constant 0.254829586 : f32
    %1293 = vector.broadcast %cst_582 : f32 to vector<8x128xf32>
    %1294 = arith.addf %1292, %1293 : vector<8x128xf32>
    %1295 = arith.mulf %1294, %1281 : vector<8x128xf32>
    %cst_583 = arith.constant 0.000000e+00 : f32
    %1296 = vector.broadcast %cst_583 : f32 to vector<8x128xf32>
    %1297 = arith.subf %1296, %1272 : vector<8x128xf32>
    %1298 = arith.mulf %1297, %1272 : vector<8x128xf32>
    %1299 = math.exp %1298 : vector<8x128xf32>
    %1300 = arith.mulf %1295, %1299 : vector<8x128xf32>
    %cst_584 = arith.constant 1.000000e+00 : f32
    %1301 = vector.broadcast %cst_584 : f32 to vector<8x128xf32>
    %1302 = arith.subf %1301, %1300 : vector<8x128xf32>
    %1303 = arith.mulf %1271, %1302 : vector<8x128xf32>
    %cst_585 = arith.constant 1.000000e+00 : f32
    %1304 = vector.broadcast %cst_585 : f32 to vector<8x128xf32>
    %1305 = arith.addf %1304, %1303 : vector<8x128xf32>
    %cst_586 = arith.constant 5.000000e-01 : f32
    %1306 = vector.broadcast %cst_586 : f32 to vector<8x128xf32>
    %1307 = arith.mulf %1306, %1305 : vector<8x128xf32>
    %1308 = arith.subf %1307, %1259 : vector<8x128xf32>
    %c12_587 = arith.constant 12 : index
    %c0_588 = arith.constant 0 : index
    %c0_589 = arith.constant 0 : index
    %1309 = vector.load %arg8[%c12_587, %c0_588, %c0_589] : memref<16x8x128xf32, #tpu.memory_space<vmem>>, vector<1x8x128xf32>
    %1310 = vector.shape_cast %1309 : vector<1x8x128xf32> to vector<8x128xf32>
    %1311 = vector.shape_cast %1308 : vector<8x128xf32> to vector<1x8x128xf32>
    tpu.vector_store %arg8[%c12_587, %c0_588, %c0_589], %1311 {strides = array<i32>} : memref<16x8x128xf32, #tpu.memory_space<vmem>>, vector<1x8x128xf32>,
    %cst_590 = arith.constant 7.500000e-01 : f32
    %1312 = vector.broadcast %cst_590 : f32 to vector<8x128xf32>
    %1313 = arith.mulf %1312, %683 : vector<8x128xf32>
    %1314 = arith.addf %1313, %686 : vector<8x128xf32>
    %cst_591 = arith.constant 0.000000e+00 : f32
    %1315 = vector.broadcast %cst_591 : f32 to vector<8x128xf32>
    %1316 = arith.cmpf oge, %1314, %1315 : vector<8x128xf32>
    %cst_592 = arith.constant 1.000000e+00 : f32
    %cst_593 = arith.constant -1.000000e+00 : f32
    %1317 = vector.broadcast %cst_592 : f32 to vector<8x128xf32>
    %1318 = vector.broadcast %cst_593 : f32 to vector<8x128xf32>
    %1319 = arith.select %1316, %1317, %1318 : vector<8x128xi1>, vector<8x128xf32>
    %1320 = math.absf %1314 : vector<8x128xf32>
    %cst_594 = arith.constant 0.327591091 : f32
    %1321 = vector.broadcast %cst_594 : f32 to vector<8x128xf32>
    %1322 = arith.mulf %1321, %1320 : vector<8x128xf32>
    %cst_595 = arith.constant 1.000000e+00 : f32
    %1323 = vector.broadcast %cst_595 : f32 to vector<8x128xf32>
    %1324 = arith.addf %1323, %1322 : vector<8x128xf32>
    %1325 = tpu.reciprocal %1324 {approx = true} : vector<8x128xf32> -> vector<8x128xf32>
    %1326 = arith.mulf %1324, %1325 : vector<8x128xf32>
    %cst_596 = arith.constant 2.000000e+00 : f32
    %1327 = vector.broadcast %cst_596 : f32 to vector<8x128xf32>
    %1328 = arith.subf %1327, %1326 : vector<8x128xf32>
    %1329 = arith.mulf %1325, %1328 : vector<8x128xf32>
    %cst_597 = arith.constant 1.06140542 : f32
    %1330 = vector.broadcast %cst_597 : f32 to vector<8x128xf32>
    %1331 = arith.mulf %1330, %1329 : vector<8x128xf32>
    %cst_598 = arith.constant -1.45315206 : f32
    %1332 = vector.broadcast %cst_598 : f32 to vector<8x128xf32>
    %1333 = arith.addf %1331, %1332 : vector<8x128xf32>
    %1334 = arith.mulf %1333, %1329 : vector<8x128xf32>
    %cst_599 = arith.constant 1.42141378 : f32
    %1335 = vector.broadcast %cst_599 : f32 to vector<8x128xf32>
    %1336 = arith.addf %1334, %1335 : vector<8x128xf32>
    %1337 = arith.mulf %1336, %1329 : vector<8x128xf32>
    %cst_600 = arith.constant -0.284496725 : f32
    %1338 = vector.broadcast %cst_600 : f32 to vector<8x128xf32>
    %1339 = arith.addf %1337, %1338 : vector<8x128xf32>
    %1340 = arith.mulf %1339, %1329 : vector<8x128xf32>
    %cst_601 = arith.constant 0.254829586 : f32
    %1341 = vector.broadcast %cst_601 : f32 to vector<8x128xf32>
    %1342 = arith.addf %1340, %1341 : vector<8x128xf32>
    %1343 = arith.mulf %1342, %1329 : vector<8x128xf32>
    %cst_602 = arith.constant 0.000000e+00 : f32
    %1344 = vector.broadcast %cst_602 : f32 to vector<8x128xf32>
    %1345 = arith.subf %1344, %1320 : vector<8x128xf32>
    %1346 = arith.mulf %1345, %1320 : vector<8x128xf32>
    %1347 = math.exp %1346 : vector<8x128xf32>
    %1348 = arith.mulf %1343, %1347 : vector<8x128xf32>
    %cst_603 = arith.constant 1.000000e+00 : f32
    %1349 = vector.broadcast %cst_603 : f32 to vector<8x128xf32>
    %1350 = arith.subf %1349, %1348 : vector<8x128xf32>
    %1351 = arith.mulf %1319, %1350 : vector<8x128xf32>
    %cst_604 = arith.constant 1.000000e+00 : f32
    %1352 = vector.broadcast %cst_604 : f32 to vector<8x128xf32>
    %1353 = arith.addf %1352, %1351 : vector<8x128xf32>
    %cst_605 = arith.constant 5.000000e-01 : f32
    %1354 = vector.broadcast %cst_605 : f32 to vector<8x128xf32>
    %1355 = arith.mulf %1354, %1353 : vector<8x128xf32>
    %1356 = arith.subf %1355, %1307 : vector<8x128xf32>
    %c13_606 = arith.constant 13 : index
    %c0_607 = arith.constant 0 : index
    %c0_608 = arith.constant 0 : index
    %1357 = vector.load %arg8[%c13_606, %c0_607, %c0_608] : memref<16x8x128xf32, #tpu.memory_space<vmem>>, vector<1x8x128xf32>
    %1358 = vector.shape_cast %1357 : vector<1x8x128xf32> to vector<8x128xf32>
    %1359 = vector.shape_cast %1356 : vector<8x128xf32> to vector<1x8x128xf32>
    tpu.vector_store %arg8[%c13_606, %c0_607, %c0_608], %1359 {strides = array<i32>} : memref<16x8x128xf32, #tpu.memory_space<vmem>>, vector<1x8x128xf32>,
    %cst_609 = arith.constant 8.750000e-01 : f32
    %1360 = vector.broadcast %cst_609 : f32 to vector<8x128xf32>
    %1361 = arith.mulf %1360, %683 : vector<8x128xf32>
    %1362 = arith.addf %1361, %686 : vector<8x128xf32>
    %cst_610 = arith.constant 0.000000e+00 : f32
    %1363 = vector.broadcast %cst_610 : f32 to vector<8x128xf32>
    %1364 = arith.cmpf oge, %1362, %1363 : vector<8x128xf32>
    %cst_611 = arith.constant 1.000000e+00 : f32
    %cst_612 = arith.constant -1.000000e+00 : f32
    %1365 = vector.broadcast %cst_611 : f32 to vector<8x128xf32>
    %1366 = vector.broadcast %cst_612 : f32 to vector<8x128xf32>
    %1367 = arith.select %1364, %1365, %1366 : vector<8x128xi1>, vector<8x128xf32>
    %1368 = math.absf %1362 : vector<8x128xf32>
    %cst_613 = arith.constant 0.327591091 : f32
    %1369 = vector.broadcast %cst_613 : f32 to vector<8x128xf32>
    %1370 = arith.mulf %1369, %1368 : vector<8x128xf32>
    %cst_614 = arith.constant 1.000000e+00 : f32
    %1371 = vector.broadcast %cst_614 : f32 to vector<8x128xf32>
    %1372 = arith.addf %1371, %1370 : vector<8x128xf32>
    %1373 = tpu.reciprocal %1372 {approx = true} : vector<8x128xf32> -> vector<8x128xf32>
    %1374 = arith.mulf %1372, %1373 : vector<8x128xf32>
    %cst_615 = arith.constant 2.000000e+00 : f32
    %1375 = vector.broadcast %cst_615 : f32 to vector<8x128xf32>
    %1376 = arith.subf %1375, %1374 : vector<8x128xf32>
    %1377 = arith.mulf %1373, %1376 : vector<8x128xf32>
    %cst_616 = arith.constant 1.06140542 : f32
    %1378 = vector.broadcast %cst_616 : f32 to vector<8x128xf32>
    %1379 = arith.mulf %1378, %1377 : vector<8x128xf32>
    %cst_617 = arith.constant -1.45315206 : f32
    %1380 = vector.broadcast %cst_617 : f32 to vector<8x128xf32>
    %1381 = arith.addf %1379, %1380 : vector<8x128xf32>
    %1382 = arith.mulf %1381, %1377 : vector<8x128xf32>
    %cst_618 = arith.constant 1.42141378 : f32
    %1383 = vector.broadcast %cst_618 : f32 to vector<8x128xf32>
    %1384 = arith.addf %1382, %1383 : vector<8x128xf32>
    %1385 = arith.mulf %1384, %1377 : vector<8x128xf32>
    %cst_619 = arith.constant -0.284496725 : f32
    %1386 = vector.broadcast %cst_619 : f32 to vector<8x128xf32>
    %1387 = arith.addf %1385, %1386 : vector<8x128xf32>
    %1388 = arith.mulf %1387, %1377 : vector<8x128xf32>
    %cst_620 = arith.constant 0.254829586 : f32
    %1389 = vector.broadcast %cst_620 : f32 to vector<8x128xf32>
    %1390 = arith.addf %1388, %1389 : vector<8x128xf32>
    %1391 = arith.mulf %1390, %1377 : vector<8x128xf32>
    %cst_621 = arith.constant 0.000000e+00 : f32
    %1392 = vector.broadcast %cst_621 : f32 to vector<8x128xf32>
    %1393 = arith.subf %1392, %1368 : vector<8x128xf32>
    %1394 = arith.mulf %1393, %1368 : vector<8x128xf32>
    %1395 = math.exp %1394 : vector<8x128xf32>
    %1396 = arith.mulf %1391, %1395 : vector<8x128xf32>
    %cst_622 = arith.constant 1.000000e+00 : f32
    %1397 = vector.broadcast %cst_622 : f32 to vector<8x128xf32>
    %1398 = arith.subf %1397, %1396 : vector<8x128xf32>
    %1399 = arith.mulf %1367, %1398 : vector<8x128xf32>
    %cst_623 = arith.constant 1.000000e+00 : f32
    %1400 = vector.broadcast %cst_623 : f32 to vector<8x128xf32>
    %1401 = arith.addf %1400, %1399 : vector<8x128xf32>
    %cst_624 = arith.constant 5.000000e-01 : f32
    %1402 = vector.broadcast %cst_624 : f32 to vector<8x128xf32>
    %1403 = arith.mulf %1402, %1401 : vector<8x128xf32>
    %1404 = arith.subf %1403, %1355 : vector<8x128xf32>
    %c14_625 = arith.constant 14 : index
    %c0_626 = arith.constant 0 : index
    %c0_627 = arith.constant 0 : index
    %1405 = vector.load %arg8[%c14_625, %c0_626, %c0_627] : memref<16x8x128xf32, #tpu.memory_space<vmem>>, vector<1x8x128xf32>
    %1406 = vector.shape_cast %1405 : vector<1x8x128xf32> to vector<8x128xf32>
    %1407 = vector.shape_cast %1404 : vector<8x128xf32> to vector<1x8x128xf32>
    tpu.vector_store %arg8[%c14_625, %c0_626, %c0_627], %1407 {strides = array<i32>} : memref<16x8x128xf32, #tpu.memory_space<vmem>>, vector<1x8x128xf32>,
    %cst_628 = arith.constant 1.000000e+00 : f32
    %1408 = vector.broadcast %cst_628 : f32 to vector<8x128xf32>
    %1409 = arith.subf %1408, %1403 : vector<8x128xf32>
    %c15_629 = arith.constant 15 : index
    %c0_630 = arith.constant 0 : index
    %c0_631 = arith.constant 0 : index
    %1410 = vector.load %arg8[%c15_629, %c0_630, %c0_631] : memref<16x8x128xf32, #tpu.memory_space<vmem>>, vector<1x8x128xf32>
    %1411 = vector.shape_cast %1410 : vector<1x8x128xf32> to vector<8x128xf32>
    %1412 = vector.shape_cast %1409 : vector<8x128xf32> to vector<1x8x128xf32>
    tpu.vector_store %arg8[%c15_629, %c0_630, %c0_631], %1412 {strides = array<i32>} : memref<16x8x128xf32, #tpu.memory_space<vmem>>, vector<1x8x128xf32>,
    return
  }
  func.func @transform_0(%arg0: i32) -> (i32, i32) {
    %c0_i32 = arith.constant 0 : i32
    %c0_i32_0 = arith.constant 0 : i32
    return %arg0, %c0_i32 : i32, i32
  }
  func.func @transform_1(%arg0: i32) -> (i32, i32) {
    %c0_i32 = arith.constant 0 : i32
    %c0_i32_0 = arith.constant 0 : i32
    return %arg0, %c0_i32 : i32, i32
  }
  func.func @transform_2(%arg0: i32) -> (i32, i32) {
    %c0_i32 = arith.constant 0 : i32
    %c0_i32_0 = arith.constant 0 : i32
    return %arg0, %c0_i32 : i32, i32
  }
  func.func @transform_3(%arg0: i32) -> (i32, i32) {
    %c0_i32 = arith.constant 0 : i32
    %c0_i32_0 = arith.constant 0 : i32
    %c0_i32_1 = arith.constant 0 : i32
    return %c0_i32, %c0_i32_0 : i32, i32
  }
  func.func @transform_4(%arg0: i32) -> (i32, i32) {
    %c0_i32 = arith.constant 0 : i32
    %c0_i32_0 = arith.constant 0 : i32
    %c0_i32_1 = arith.constant 0 : i32
    return %c0_i32, %c0_i32_0 : i32, i32
  }
  func.func @transform_5(%arg0: i32) -> (i32, i32) {
    %c0_i32 = arith.constant 0 : i32
    %c0_i32_0 = arith.constant 0 : i32
    %c0_i32_1 = arith.constant 0 : i32
    return %c0_i32, %c0_i32_0 : i32, i32
  }
  func.func @transform_6(%arg0: i32) -> (i32, i32) {
    %c0_i32 = arith.constant 0 : i32
    %c0_i32_0 = arith.constant 0 : i32
    %c0_i32_1 = arith.constant 0 : i32
    return %c0_i32, %c0_i32_0 : i32, i32
  }
  func.func @transform_7(%arg0: i32) -> (i32, i32, i32) {
    %c0_i32 = arith.constant 0 : i32
    %c0_i32_0 = arith.constant 0 : i32
    %c0_i32_1 = arith.constant 0 : i32
    return %c0_i32, %arg0, %c0_i32_0 : i32, i32, i32
  }
}

</mosaic_0001>

<llo_original>
// kernel: tpu_custom_call.1
$region0: #{tpu_custom_call.1}
  #allocation0 [shape = 'u32[]', space=smem, size = 0x4, offset = 0x4, fixed_abs, tag = 'smem constant byte address 0x4 - core index']
  #allocation1 [shape = 'u32[144,128]{1,0:T(1,128)}', space=vmem, size = 0x12000, scoped, tag = 'internal scratch']
  %s0 = inlined_call_operand.hbm [shape: f32[8,128], index: 0, kind: input, shape index: {}]
  %s1 = inlined_call_operand.hbm [shape: f32[8,128], index: 1, kind: input, shape index: {}]
  %s2 = inlined_call_operand.hbm [shape: f32[8,128], index: 2, kind: input, shape index: {}]
  %s3 = inlined_call_operand.vmem [shape: f32[2,32], index: 3, kind: input, shape index: {}]
  %s4 = inlined_call_operand.vmem [shape: f32[1,32], index: 4, kind: input, shape index: {}]
  %s5 = inlined_call_operand.vmem [shape: f32[2,32], index: 5, kind: input, shape index: {}]
  %s6 = inlined_call_operand.vmem [shape: f32[1,2], index: 6, kind: input, shape index: {}]
  %s7 = inlined_call_operand.hbm [shape: f32[16,8,128], index: 7, kind: output, shape index: {}]
  %s8 = sld [smem:[#allocation0]]
  $region66: #{tpu_custom_call.1} parent=0
    _
  %s10 = ssub.s32 1, %s8
  %s11 = scalar_select 0, %s10, %s8
  $region1: #{tpu_custom_call.1} parent=0
    #allocation2 [shape = 'u8[4096]{0}', space=vmem, size = 0x1000, scoped, tag = 'input window, operand 0, single buffered']
    #allocation3 [shape = 's32[1]{0}', space=sflag, size = 0x4, scoped, tag = 'scoped memory for tpu_custom_call.1']
    #allocation4 [shape = 's32[1]{0}', space=sflag, size = 0x4, scoped, tag = 'scoped memory for tpu_custom_call.1']
    #allocation5 [shape = 's32[1]{0}', space=sflag, size = 0x4, scoped, tag = 'scoped memory for tpu_custom_call.1']
    #allocation6 [shape = 'u8[4096]{0}', space=vmem, size = 0x1000, scoped, tag = 'input window, operand 1, single buffered']
    #allocation7 [shape = 's32[1]{0}', space=sflag, size = 0x4, scoped, tag = 'scoped memory for tpu_custom_call.1']
    #allocation8 [shape = 'u8[4096]{0}', space=vmem, size = 0x1000, scoped, tag = 'input window, operand 2, single buffered']
    #allocation9 [shape = 'u8[1024]{0}', space=smem, size = 0x400, scoped, tag = 'input window, operand 3, single buffered']
    #allocation10 [shape = 'u8[512]{0}', space=smem, size = 0x200, scoped, tag = 'input window, operand 4, single buffered']
    #allocation11 [shape = 's32[1]{0}', space=sflag, size = 0x4, scoped, tag = 'scoped memory for tpu_custom_call.1']
    #allocation12 [shape = 'u8[1024]{0}', space=smem, size = 0x400, scoped, tag = 'input window, operand 5, single buffered']
    #allocation13 [shape = 'u8[512]{0}', space=smem, size = 0x200, scoped, tag = 'input window, operand 6, single buffered']
    #allocation14 [shape = 's32[1]{0}', space=sflag, size = 0x4, scoped, tag = 'scoped memory for tpu_custom_call.1']
    #allocation15 [shape = 'u8[65536]{0}', space=vmem, size = 0x10000, scoped, tag = 'output window, operand 0, single buffered']
    %12 = vsyncpa [#allocation3], 0
    %13 = vsyncpa [#allocation7], 0
    %14 = vsyncpa [#allocation5], 0
    %15 = vsyncpa [#allocation11], 0
    %16 = vsyncpa [#allocation14], 0
    %17 = vsyncpa [#allocation4], 0
    // Predicated region
    $region2: #{tpu_custom_call.1} parent=1 // pred_check
      _
    $region3: #{tpu_custom_call.1} parent=1 // pred_check_branch
      %19 = sbr.rel (0) target = $region5
    $region4: #{tpu_custom_call.1} parent=1 // pred_region
      %s21 = ssub.s32 128, 128
      %22 = vsyncadd [#allocation3], %s21
      %s24 = sshll.u32 [#allocation2], 4
      %s25 = int_to_ptr.vmem [resolvable:$true] %s24
      %27 = dma.hbm_to_vmem [thread:$0]  %s0, 128, %s25, [#allocation3]
    $region5: #{tpu_custom_call.1} parent=1 // pred_fallthru
      _
    // Predicated region
    $region6: #{tpu_custom_call.1} parent=1 // pred_check
      _
    $region7: #{tpu_custom_call.1} parent=1 // pred_check_branch
      %29 = sbr.rel (0) target = $region9
    $region8: #{tpu_custom_call.1} parent=1 // pred_region
      %s31 = ssub.s32 128, 128
      %32 = vsyncadd [#allocation7], %s31
      %s34 = sshll.u32 [#allocation6], 4
      %s35 = int_to_ptr.vmem [resolvable:$true] %s34
      %37 = dma.hbm_to_vmem [thread:$0]  %s1, 128, %s35, [#allocation7]
    $region9: #{tpu_custom_call.1} parent=1 // pred_fallthru
      _
    // Predicated region
    $region10: #{tpu_custom_call.1} parent=1 // pred_check
      _
    $region11: #{tpu_custom_call.1} parent=1 // pred_check_branch
      %39 = sbr.rel (0) target = $region13
    $region12: #{tpu_custom_call.1} parent=1 // pred_region
      %s41 = ssub.s32 128, 128
      %42 = vsyncadd [#allocation7], %s41
      %s44 = sshll.u32 [#allocation8], 4
      %s45 = int_to_ptr.vmem [resolvable:$true] %s44
      %47 = dma.hbm_to_vmem [thread:$0]  %s2, 128, %s45, [#allocation7]
    $region13: #{tpu_custom_call.1} parent=1 // pred_fallthru
      _
    // Predicated region
    $region14: #{tpu_custom_call.1} parent=1 // pred_check
      _
    $region15: #{tpu_custom_call.1} parent=1 // pred_check_branch
      %49 = sbr.rel (0) target = $region17
    $region16: #{tpu_custom_call.1} parent=1 // pred_region
      %s51 = ssub.s32 32, 32
      %52 = vsyncadd [#allocation5], %s51
      %s54 = sshll.u32 %s3, 4
      %s55 = int_to_ptr.vmem [resolvable:$true] %s54
      %57 = dma.vmem_to_smem %s55, 32, [#allocation9], [#allocation5]
    $region17: #{tpu_custom_call.1} parent=1 // pred_fallthru
      _
    // Predicated region
    $region18: #{tpu_custom_call.1} parent=1 // pred_check
      _
    $region19: #{tpu_custom_call.1} parent=1 // pred_check_branch
      %59 = sbr.rel (0) target = $region21
    $region20: #{tpu_custom_call.1} parent=1 // pred_region
      %s61 = ssub.s32 16, 16
      %62 = vsyncadd [#allocation11], %s61
      %s64 = sshll.u32 %s4, 4
      %s65 = int_to_ptr.vmem [resolvable:$true] %s64
      %67 = dma.vmem_to_smem %s65, 16, [#allocation10], [#allocation11]
    $region21: #{tpu_custom_call.1} parent=1 // pred_fallthru
      _
    // Predicated region
    $region22: #{tpu_custom_call.1} parent=1 // pred_check
      _
    $region23: #{tpu_custom_call.1} parent=1 // pred_check_branch
      %69 = sbr.rel (0) target = $region25
    $region24: #{tpu_custom_call.1} parent=1 // pred_region
      %s71 = ssub.s32 32, 32
      %72 = vsyncadd [#allocation11], %s71
      %s74 = sshll.u32 %s5, 4
      %s75 = int_to_ptr.vmem [resolvable:$true] %s74
      %77 = dma.vmem_to_smem %s75, 32, [#allocation12], [#allocation11]
    $region25: #{tpu_custom_call.1} parent=1 // pred_fallthru
      _
    // Predicated region
    $region26: #{tpu_custom_call.1} parent=1 // pred_check
      _
    $region27: #{tpu_custom_call.1} parent=1 // pred_check_branch
      %79 = sbr.rel (0) target = $region29
    $region28: #{tpu_custom_call.1} parent=1 // pred_region
      %s81 = ssub.s32 16, 16
      %82 = vsyncadd [#allocation14], %s81
      %s84 = sshll.u32 %s6, 4
      %s85 = int_to_ptr.vmem [resolvable:$true] %s84
      %87 = dma.vmem_to_smem %s85, 16, [#allocation13], [#allocation14]
    $region29: #{tpu_custom_call.1} parent=1 // pred_fallthru
      _
    // Predicated region
    $region30: #{tpu_custom_call.1} parent=1 // pred_check
      _
    $region31: #{tpu_custom_call.1} parent=1 // pred_check_branch
      %89 = sbr.rel (0) target = $region33
    $region32: #{tpu_custom_call.1} parent=1 // pred_region
      %90 = dma.done [#allocation3], 128
    $region33: #{tpu_custom_call.1} parent=1 // pred_fallthru
      _
    // Predicated region
    $region34: #{tpu_custom_call.1} parent=1 // pred_check
      _
    $region35: #{tpu_custom_call.1} parent=1 // pred_check_branch
      %92 = sbr.rel (0) target = $region37
    $region36: #{tpu_custom_call.1} parent=1 // pred_region
      %93 = dma.done [#allocation7], 128
    $region37: #{tpu_custom_call.1} parent=1 // pred_fallthru
      _
    // Predicated region
    $region38: #{tpu_custom_call.1} parent=1 // pred_check
      _
    $region39: #{tpu_custom_call.1} parent=1 // pred_check_branch
      %95 = sbr.rel (0) target = $region41
    $region40: #{tpu_custom_call.1} parent=1 // pred_region
      %96 = dma.done [#allocation7], 128
    $region41: #{tpu_custom_call.1} parent=1 // pred_fallthru
      _
    // Predicated region
    $region42: #{tpu_custom_call.1} parent=1 // pred_check
      _
    $region43: #{tpu_custom_call.1} parent=1 // pred_check_branch
      %98 = sbr.rel (0) target = $region45
    $region44: #{tpu_custom_call.1} parent=1 // pred_region
      %99 = dma.done [#allocation5], 32
    $region45: #{tpu_custom_call.1} parent=1 // pred_fallthru
      _
    // Predicated region
    $region46: #{tpu_custom_call.1} parent=1 // pred_check
      _
    $region47: #{tpu_custom_call.1} parent=1 // pred_check_branch
      %101 = sbr.rel (0) target = $region49
    $region48: #{tpu_custom_call.1} parent=1 // pred_region
      %102 = dma.done [#allocation11], 16
    $region49: #{tpu_custom_call.1} parent=1 // pred_fallthru
      _
    // Predicated region
    $region50: #{tpu_custom_call.1} parent=1 // pred_check
      _
    $region51: #{tpu_custom_call.1} parent=1 // pred_check_branch
      %104 = sbr.rel (0) target = $region53
    $region52: #{tpu_custom_call.1} parent=1 // pred_region
      %105 = dma.done [#allocation11], 32
    $region53: #{tpu_custom_call.1} parent=1 // pred_fallthru
      _
    // Predicated region
    $region54: #{tpu_custom_call.1} parent=1 // pred_check
      _
    $region55: #{tpu_custom_call.1} parent=1 // pred_check_branch
      %107 = sbr.rel (0) target = $region57
    $region56: #{tpu_custom_call.1} parent=1 // pred_region
      %108 = dma.done [#allocation14], 16
    $region57: #{tpu_custom_call.1} parent=1 // pred_fallthru
      _
    %109 = sfence
    %v110 = vld [vmem:[#allocation2] sm:$0xff]
    %v111 = vld [vmem:[#allocation6] sm:$0xff]
    %v112 = vld [vmem:[#allocation8] sm:$0xff]
    %s113 = sld [smem:[#allocation13]]
    %v114 = vstv %s113
    %s115 = sld [smem:[#allocation13 + $0x1]]
    %v116 = vstv %s115
    %s117 = sld [smem:[#allocation9]]
    %v118 = vstv %s117
    %v119 = vmul.f32 %v110, %v118
    %s120 = sld [smem:[#allocation9 + $0x80]]
    %v121 = vstv %s120
    %v122 = vmul.f32 %v111, %v121
    %v123 = vadd.f32 %v119, %v122
    %s124 = sld [smem:[#allocation10]]
    %v125 = vstv %s124
    %v126 = vadd.f32 %v123, %v125
    %v127 = vmax.f32 %v126, 0.0
    %s128 = sld [smem:[#allocation12]]
    %v129 = vstv %s128
    %v130 = vmul.f32 %v127, %v129
    %v131 = vadd.f32 %v114, %v130
    %s132 = sld [smem:[#allocation12 + $0x80]]
    %v133 = vstv %s132
    %v134 = vmul.f32 %v127, %v133
    %v135 = vadd.f32 %v116, %v134
    %s136 = sld [smem:[#allocation9 + $0x1]]
    %v137 = vstv %s136
    %v138 = vmul.f32 %v110, %v137
    %s139 = sld [smem:[#allocation9 + $0x81]]
    %v140 = vstv %s139
    %v141 = vmul.f32 %v111, %v140
    %v142 = vadd.f32 %v138, %v141
    %s143 = sld [smem:[#allocation10 + $0x1]]
    %v144 = vstv %s143
    %v145 = vadd.f32 %v142, %v144
    %v146 = vmax.f32 %v145, 0.0
    %s147 = sld [smem:[#allocation12 + $0x1]]
    %v148 = vstv %s147
    %v149 = vmul.f32 %v146, %v148
    %v150 = vadd.f32 %v131, %v149
    %s151 = sld [smem:[#allocation12 + $0x81]]
    %v152 = vstv %s151
    %v153 = vmul.f32 %v146, %v152
    %v154 = vadd.f32 %v135, %v153
    %s155 = sld [smem:[#allocation9 + $0x2]]
    %v156 = vstv %s155
    %v157 = vmul.f32 %v110, %v156
    %s158 = sld [smem:[#allocation9 + $0x82]]
    %v159 = vstv %s158
    %v160 = vmul.f32 %v111, %v159
    %v161 = vadd.f32 %v157, %v160
    %s162 = sld [smem:[#allocation10 + $0x2]]
    %v163 = vstv %s162
    %v164 = vadd.f32 %v161, %v163
    %v165 = vmax.f32 %v164, 0.0
    %s166 = sld [smem:[#allocation12 + $0x2]]
    %v167 = vstv %s166
    %v168 = vmul.f32 %v165, %v167
    %v169 = vadd.f32 %v150, %v168
    %s170 = sld [smem:[#allocation12 + $0x82]]
    %v171 = vstv %s170
    %v172 = vmul.f32 %v165, %v171
    %v173 = vadd.f32 %v154, %v172
    %s174 = sld [smem:[#allocation9 + $0x3]]
    %v175 = vstv %s174
    %v176 = vmul.f32 %v110, %v175
    %s177 = sld [smem:[#allocation9 + $0x83]]
    %v178 = vstv %s177
    %v179 = vmul.f32 %v111, %v178
    %v180 = vadd.f32 %v176, %v179
    %s181 = sld [smem:[#allocation10 + $0x3]]
    %v182 = vstv %s181
    %v183 = vadd.f32 %v180, %v182
    %v184 = vmax.f32 %v183, 0.0
    %s185 = sld [smem:[#allocation12 + $0x3]]
    %v186 = vstv %s185
    %v187 = vmul.f32 %v184, %v186
    %v188 = vadd.f32 %v169, %v187
    %s189 = sld [smem:[#allocation12 + $0x83]]
    %v190 = vstv %s189
    %v191 = vmul.f32 %v184, %v190
    %v192 = vadd.f32 %v173, %v191
    %s193 = sld [smem:[#allocation9 + $0x4]]
    %v194 = vstv %s193
    %v195 = vmul.f32 %v110, %v194
    %s196 = sld [smem:[#allocation9 + $0x84]]
    %v197 = vstv %s196
    %v198 = vmul.f32 %v111, %v197
    %v199 = vadd.f32 %v195, %v198
    %s200 = sld [smem:[#allocation10 + $0x4]]
    %v201 = vstv %s200
    %v202 = vadd.f32 %v199, %v201
    %v203 = vmax.f32 %v202, 0.0
    %s204 = sld [smem:[#allocation12 + $0x4]]
    %v205 = vstv %s204
    %v206 = vmul.f32 %v203, %v205
    %v207 = vadd.f32 %v188, %v206
    %s208 = sld [smem:[#allocation12 + $0x84]]
    %v209 = vstv %s208
    %v210 = vmul.f32 %v203, %v209
    %v211 = vadd.f32 %v192, %v210
    %s212 = sld [smem:[#allocation9 + $0x5]]
    %v213 = vstv %s212
    %v214 = vmul.f32 %v110, %v213
    %s215 = sld [smem:[#allocation9 + $0x85]]
    %v216 = vstv %s215
    %v217 = vmul.f32 %v111, %v216
    %v218 = vadd.f32 %v214, %v217
    %s219 = sld [smem:[#allocation10 + $0x5]]
    %v220 = vstv %s219
    %v221 = vadd.f32 %v218, %v220
    %v222 = vmax.f32 %v221, 0.0
    %s223 = sld [smem:[#allocation12 + $0x5]]
    %v224 = vstv %s223
    %v225 = vmul.f32 %v222, %v224
    %v226 = vadd.f32 %v207, %v225
    %s227 = sld [smem:[#allocation12 + $0x85]]
    %v228 = vstv %s227
    %v229 = vmul.f32 %v222, %v228
    %v230 = vadd.f32 %v211, %v229
    %s231 = sld [smem:[#allocation9 + $0x6]]
    %v232 = vstv %s231
    %v233 = vmul.f32 %v110, %v232
    %s234 = sld [smem:[#allocation9 + $0x86]]
    %v235 = vstv %s234
    %v236 = vmul.f32 %v111, %v235
    %v237 = vadd.f32 %v233, %v236
    %s238 = sld [smem:[#allocation10 + $0x6]]
    %v239 = vstv %s238
    %v240 = vadd.f32 %v237, %v239
    %v241 = vmax.f32 %v240, 0.0
    %s242 = sld [smem:[#allocation12 + $0x6]]
    %v243 = vstv %s242
    %v244 = vmul.f32 %v241, %v243
    %v245 = vadd.f32 %v226, %v244
    %s246 = sld [smem:[#allocation12 + $0x86]]
    %v247 = vstv %s246
    %v248 = vmul.f32 %v241, %v247
    %v249 = vadd.f32 %v230, %v248
    %s250 = sld [smem:[#allocation9 + $0x7]]
    %v251 = vstv %s250
    %v252 = vmul.f32 %v110, %v251
    %s253 = sld [smem:[#allocation9 + $0x87]]
    %v254 = vstv %s253
    %v255 = vmul.f32 %v111, %v254
    %v256 = vadd.f32 %v252, %v255
    %s257 = sld [smem:[#allocation10 + $0x7]]
    %v258 = vstv %s257
    %v259 = vadd.f32 %v256, %v258
    %v260 = vmax.f32 %v259, 0.0
    %s261 = sld [smem:[#allocation12 + $0x7]]
    %v262 = vstv %s261
    %v263 = vmul.f32 %v260, %v262
    %v264 = vadd.f32 %v245, %v263
    %s265 = sld [smem:[#allocation12 + $0x87]]
    %v266 = vstv %s265
    %v267 = vmul.f32 %v260, %v266
    %v268 = vadd.f32 %v249, %v267
    %s269 = sld [smem:[#allocation9 + $0x8]]
    %v270 = vstv %s269
    %v271 = vmul.f32 %v110, %v270
    %s272 = sld [smem:[#allocation9 + $0x88]]
    %v273 = vstv %s272
    %v274 = vmul.f32 %v111, %v273
    %v275 = vadd.f32 %v271, %v274
    %s276 = sld [smem:[#allocation10 + $0x8]]
    %v277 = vstv %s276
    %v278 = vadd.f32 %v275, %v277
    %v279 = vmax.f32 %v278, 0.0
    %s280 = sld [smem:[#allocation12 + $0x8]]
    %v281 = vstv %s280
    %v282 = vmul.f32 %v279, %v281
    %v283 = vadd.f32 %v264, %v282
    %s284 = sld [smem:[#allocation12 + $0x88]]
    %v285 = vstv %s284
    %v286 = vmul.f32 %v279, %v285
    %v287 = vadd.f32 %v268, %v286
    %s288 = sld [smem:[#allocation9 + $0x9]]
    %v289 = vstv %s288
    %v290 = vmul.f32 %v110, %v289
    %s291 = sld [smem:[#allocation9 + $0x89]]
    %v292 = vstv %s291
    %v293 = vmul.f32 %v111, %v292
    %v294 = vadd.f32 %v290, %v293
    %s295 = sld [smem:[#allocation10 + $0x9]]
    %v296 = vstv %s295
    %v297 = vadd.f32 %v294, %v296
    %v298 = vmax.f32 %v297, 0.0
    %s299 = sld [smem:[#allocation12 + $0x9]]
    %v300 = vstv %s299
    %v301 = vmul.f32 %v298, %v300
    %v302 = vadd.f32 %v283, %v301
    %s303 = sld [smem:[#allocation12 + $0x89]]
    %v304 = vstv %s303
    %v305 = vmul.f32 %v298, %v304
    %v306 = vadd.f32 %v287, %v305
    %s307 = sld [smem:[#allocation9 + $0xa]]
    %v308 = vstv %s307
    %v309 = vmul.f32 %v110, %v308
    %s310 = sld [smem:[#allocation9 + $0x8a]]
    %v311 = vstv %s310
    %v312 = vmul.f32 %v111, %v311
    %v313 = vadd.f32 %v309, %v312
    %s314 = sld [smem:[#allocation10 + $0xa]]
    %v315 = vstv %s314
    %v316 = vadd.f32 %v313, %v315
    %v317 = vmax.f32 %v316, 0.0
    %s318 = sld [smem:[#allocation12 + $0xa]]
    %v319 = vstv %s318
    %v320 = vmul.f32 %v317, %v319
    %v321 = vadd.f32 %v302, %v320
    %s322 = sld [smem:[#allocation12 + $0x8a]]
    %v323 = vstv %s322
    %v324 = vmul.f32 %v317, %v323
    %v325 = vadd.f32 %v306, %v324
    %s326 = sld [smem:[#allocation9 + $0xb]]
    %v327 = vstv %s326
    %v328 = vmul.f32 %v110, %v327
    %s329 = sld [smem:[#allocation9 + $0x8b]]
    %v330 = vstv %s329
    %v331 = vmul.f32 %v111, %v330
    %v332 = vadd.f32 %v328, %v331
    %s333 = sld [smem:[#allocation10 + $0xb]]
    %v334 = vstv %s333
    %v335 = vadd.f32 %v332, %v334
    %v336 = vmax.f32 %v335, 0.0
    %s337 = sld [smem:[#allocation12 + $0xb]]
    %v338 = vstv %s337
    %v339 = vmul.f32 %v336, %v338
    %v340 = vadd.f32 %v321, %v339
    %s341 = sld [smem:[#allocation12 + $0x8b]]
    %v342 = vstv %s341
    %v343 = vmul.f32 %v336, %v342
    %v344 = vadd.f32 %v325, %v343
    %s345 = sld [smem:[#allocation9 + $0xc]]
    %v346 = vstv %s345
    %v347 = vmul.f32 %v110, %v346
    %s348 = sld [smem:[#allocation9 + $0x8c]]
    %v349 = vstv %s348
    %v350 = vmul.f32 %v111, %v349
    %v351 = vadd.f32 %v347, %v350
    %s352 = sld [smem:[#allocation10 + $0xc]]
    %v353 = vstv %s352
    %v354 = vadd.f32 %v351, %v353
    %v355 = vmax.f32 %v354, 0.0
    %s356 = sld [smem:[#allocation12 + $0xc]]
    %v357 = vstv %s356
    %v358 = vmul.f32 %v355, %v357
    %v359 = vadd.f32 %v340, %v358
    %s360 = sld [smem:[#allocation12 + $0x8c]]
    %v361 = vstv %s360
    %v362 = vmul.f32 %v355, %v361
    %v363 = vadd.f32 %v344, %v362
    %s364 = sld [smem:[#allocation9 + $0xd]]
    %v365 = vstv %s364
    %v366 = vmul.f32 %v110, %v365
    %s367 = sld [smem:[#allocation9 + $0x8d]]
    %v368 = vstv %s367
    %v369 = vmul.f32 %v111, %v368
    %v370 = vadd.f32 %v366, %v369
    %s371 = sld [smem:[#allocation10 + $0xd]]
    %v372 = vstv %s371
    %v373 = vadd.f32 %v370, %v372
    %v374 = vmax.f32 %v373, 0.0
    %s375 = sld [smem:[#allocation12 + $0xd]]
    %v376 = vstv %s375
    %v377 = vmul.f32 %v374, %v376
    %v378 = vadd.f32 %v359, %v377
    %s379 = sld [smem:[#allocation12 + $0x8d]]
    %v380 = vstv %s379
    %v381 = vmul.f32 %v374, %v380
    %v382 = vadd.f32 %v363, %v381
    %s383 = sld [smem:[#allocation9 + $0xe]]
    %v384 = vstv %s383
    %v385 = vmul.f32 %v110, %v384
    %s386 = sld [smem:[#allocation9 + $0x8e]]
    %v387 = vstv %s386
    %v388 = vmul.f32 %v111, %v387
    %v389 = vadd.f32 %v385, %v388
    %s390 = sld [smem:[#allocation10 + $0xe]]
    %v391 = vstv %s390
    %v392 = vadd.f32 %v389, %v391
    %v393 = vmax.f32 %v392, 0.0
    %s394 = sld [smem:[#allocation12 + $0xe]]
    %v395 = vstv %s394
    %v396 = vmul.f32 %v393, %v395
    %v397 = vadd.f32 %v378, %v396
    %s398 = sld [smem:[#allocation12 + $0x8e]]
    %v399 = vstv %s398
    %v400 = vmul.f32 %v393, %v399
    %v401 = vadd.f32 %v382, %v400
    %s402 = sld [smem:[#allocation9 + $0xf]]
    %v403 = vstv %s402
    %v404 = vmul.f32 %v110, %v403
    %s405 = sld [smem:[#allocation9 + $0x8f]]
    %v406 = vstv %s405
    %v407 = vmul.f32 %v111, %v406
    %v408 = vadd.f32 %v404, %v407
    %s409 = sld [smem:[#allocation10 + $0xf]]
    %v410 = vstv %s409
    %v411 = vadd.f32 %v408, %v410
    %v412 = vmax.f32 %v411, 0.0
    %s413 = sld [smem:[#allocation12 + $0xf]]
    %v414 = vstv %s413
    %v415 = vmul.f32 %v412, %v414
    %v416 = vadd.f32 %v397, %v415
    %s417 = sld [smem:[#allocation12 + $0x8f]]
    %v418 = vstv %s417
    %v419 = vmul.f32 %v412, %v418
    %v420 = vadd.f32 %v401, %v419
    %s421 = sld [smem:[#allocation9 + $0x10]]
    %v422 = vstv %s421
    %v423 = vmul.f32 %v110, %v422
    %s424 = sld [smem:[#allocation9 + $0x90]]
    %v425 = vstv %s424
    %v426 = vmul.f32 %v111, %v425
    %v427 = vadd.f32 %v423, %v426
    %s428 = sld [smem:[#allocation10 + $0x10]]
    %v429 = vstv %s428
    %v430 = vadd.f32 %v427, %v429
    %v431 = vmax.f32 %v430, 0.0
    %s432 = sld [smem:[#allocation12 + $0x10]]
    %v433 = vstv %s432
    %v434 = vmul.f32 %v431, %v433
    %v435 = vadd.f32 %v416, %v434
    %s436 = sld [smem:[#allocation12 + $0x90]]
    %v437 = vstv %s436
    %v438 = vmul.f32 %v431, %v437
    %v439 = vadd.f32 %v420, %v438
    %s440 = sld [smem:[#allocation9 + $0x11]]
    %v441 = vstv %s440
    %v442 = vmul.f32 %v110, %v441
    %s443 = sld [smem:[#allocation9 + $0x91]]
    %v444 = vstv %s443
    %v445 = vmul.f32 %v111, %v444
    %v446 = vadd.f32 %v442, %v445
    %s447 = sld [smem:[#allocation10 + $0x11]]
    %v448 = vstv %s447
    %v449 = vadd.f32 %v446, %v448
    %v450 = vmax.f32 %v449, 0.0
    %s451 = sld [smem:[#allocation12 + $0x11]]
    %v452 = vstv %s451
    %v453 = vmul.f32 %v450, %v452
    %v454 = vadd.f32 %v435, %v453
    %s455 = sld [smem:[#allocation12 + $0x91]]
    %v456 = vstv %s455
    %v457 = vmul.f32 %v450, %v456
    %v458 = vadd.f32 %v439, %v457
    %s459 = sld [smem:[#allocation9 + $0x12]]
    %v460 = vstv %s459
    %v461 = vmul.f32 %v110, %v460
    %s462 = sld [smem:[#allocation9 + $0x92]]
    %v463 = vstv %s462
    %v464 = vmul.f32 %v111, %v463
    %v465 = vadd.f32 %v461, %v464
    %s466 = sld [smem:[#allocation10 + $0x12]]
    %v467 = vstv %s466
    %v468 = vadd.f32 %v465, %v467
    %v469 = vmax.f32 %v468, 0.0
    %s470 = sld [smem:[#allocation12 + $0x12]]
    %v471 = vstv %s470
    %v472 = vmul.f32 %v469, %v471
    %v473 = vadd.f32 %v454, %v472
    %s474 = sld [smem:[#allocation12 + $0x92]]
    %v475 = vstv %s474
    %v476 = vmul.f32 %v469, %v475
    %v477 = vadd.f32 %v458, %v476
    %s478 = sld [smem:[#allocation9 + $0x13]]
    %v479 = vstv %s478
    %v480 = vmul.f32 %v110, %v479
    %s481 = sld [smem:[#allocation9 + $0x93]]
    %v482 = vstv %s481
    %v483 = vmul.f32 %v111, %v482
    %v484 = vadd.f32 %v480, %v483
    %s485 = sld [smem:[#allocation10 + $0x13]]
    %v486 = vstv %s485
    %v487 = vadd.f32 %v484, %v486
    %v488 = vmax.f32 %v487, 0.0
    %s489 = sld [smem:[#allocation12 + $0x13]]
    %v490 = vstv %s489
    %v491 = vmul.f32 %v488, %v490
    %v492 = vadd.f32 %v473, %v491
    %s493 = sld [smem:[#allocation12 + $0x93]]
    %v494 = vstv %s493
    %v495 = vmul.f32 %v488, %v494
    %v496 = vadd.f32 %v477, %v495
    %s497 = sld [smem:[#allocation9 + $0x14]]
    %v498 = vstv %s497
    %v499 = vmul.f32 %v110, %v498
    %s500 = sld [smem:[#allocation9 + $0x94]]
    %v501 = vstv %s500
    %v502 = vmul.f32 %v111, %v501
    %v503 = vadd.f32 %v499, %v502
    %s504 = sld [smem:[#allocation10 + $0x14]]
    %v505 = vstv %s504
    %v506 = vadd.f32 %v503, %v505
    %v507 = vmax.f32 %v506, 0.0
    %s508 = sld [smem:[#allocation12 + $0x14]]
    %v509 = vstv %s508
    %v510 = vmul.f32 %v507, %v509
    %v511 = vadd.f32 %v492, %v510
    %s512 = sld [smem:[#allocation12 + $0x94]]
    %v513 = vstv %s512
    %v514 = vmul.f32 %v507, %v513
    %v515 = vadd.f32 %v496, %v514
    %s516 = sld [smem:[#allocation9 + $0x15]]
    %v517 = vstv %s516
    %v518 = vmul.f32 %v110, %v517
    %s519 = sld [smem:[#allocation9 + $0x95]]
    %v520 = vstv %s519
    %v521 = vmul.f32 %v111, %v520
    %v522 = vadd.f32 %v518, %v521
    %s523 = sld [smem:[#allocation10 + $0x15]]
    %v524 = vstv %s523
    %v525 = vadd.f32 %v522, %v524
    %v526 = vmax.f32 %v525, 0.0
    %s527 = sld [smem:[#allocation12 + $0x15]]
    %v528 = vstv %s527
    %v529 = vmul.f32 %v526, %v528
    %v530 = vadd.f32 %v511, %v529
    %s531 = sld [smem:[#allocation12 + $0x95]]
    %v532 = vstv %s531
    %v533 = vmul.f32 %v526, %v532
    %v534 = vadd.f32 %v515, %v533
    %s535 = sld [smem:[#allocation9 + $0x16]]
    %v536 = vstv %s535
    %v537 = vmul.f32 %v110, %v536
    %s538 = sld [smem:[#allocation9 + $0x96]]
    %v539 = vstv %s538
    %v540 = vmul.f32 %v111, %v539
    %v541 = vadd.f32 %v537, %v540
    %s542 = sld [smem:[#allocation10 + $0x16]]
    %v543 = vstv %s542
    %v544 = vadd.f32 %v541, %v543
    %v545 = vmax.f32 %v544, 0.0
    %s546 = sld [smem:[#allocation12 + $0x16]]
    %v547 = vstv %s546
    %v548 = vmul.f32 %v545, %v547
    %v549 = vadd.f32 %v530, %v548
    %s550 = sld [smem:[#allocation12 + $0x96]]
    %v551 = vstv %s550
    %v552 = vmul.f32 %v545, %v551
    %v553 = vadd.f32 %v534, %v552
    %s554 = sld [smem:[#allocation9 + $0x17]]
    %v555 = vstv %s554
    %v556 = vmul.f32 %v110, %v555
    %s557 = sld [smem:[#allocation9 + $0x97]]
    %v558 = vstv %s557
    %v559 = vmul.f32 %v111, %v558
    %v560 = vadd.f32 %v556, %v559
    %s561 = sld [smem:[#allocation10 + $0x17]]
    %v562 = vstv %s561
    %v563 = vadd.f32 %v560, %v562
    %v564 = vmax.f32 %v563, 0.0
    %s565 = sld [smem:[#allocation12 + $0x17]]
    %v566 = vstv %s565
    %v567 = vmul.f32 %v564, %v566
    %v568 = vadd.f32 %v549, %v567
    %s569 = sld [smem:[#allocation12 + $0x97]]
    %v570 = vstv %s569
    %v571 = vmul.f32 %v564, %v570
    %v572 = vadd.f32 %v553, %v571
    %s573 = sld [smem:[#allocation9 + $0x18]]
    %v574 = vstv %s573
    %v575 = vmul.f32 %v110, %v574
    %s576 = sld [smem:[#allocation9 + $0x98]]
    %v577 = vstv %s576
    %v578 = vmul.f32 %v111, %v577
    %v579 = vadd.f32 %v575, %v578
    %s580 = sld [smem:[#allocation10 + $0x18]]
    %v581 = vstv %s580
    %v582 = vadd.f32 %v579, %v581
    %v583 = vmax.f32 %v582, 0.0
    %s584 = sld [smem:[#allocation12 + $0x18]]
    %v585 = vstv %s584
    %v586 = vmul.f32 %v583, %v585
    %v587 = vadd.f32 %v568, %v586
    %s588 = sld [smem:[#allocation12 + $0x98]]
    %v589 = vstv %s588
    %v590 = vmul.f32 %v583, %v589
    %v591 = vadd.f32 %v572, %v590
    %s592 = sld [smem:[#allocation9 + $0x19]]
    %v593 = vstv %s592
    %v594 = vmul.f32 %v110, %v593
    %s595 = sld [smem:[#allocation9 + $0x99]]
    %v596 = vstv %s595
    %v597 = vmul.f32 %v111, %v596
    %v598 = vadd.f32 %v594, %v597
    %s599 = sld [smem:[#allocation10 + $0x19]]
    %v600 = vstv %s599
    %v601 = vadd.f32 %v598, %v600
    %v602 = vmax.f32 %v601, 0.0
    %s603 = sld [smem:[#allocation12 + $0x19]]
    %v604 = vstv %s603
    %v605 = vmul.f32 %v602, %v604
    %v606 = vadd.f32 %v587, %v605
    %s607 = sld [smem:[#allocation12 + $0x99]]
    %v608 = vstv %s607
    %v609 = vmul.f32 %v602, %v608
    %v610 = vadd.f32 %v591, %v609
    %s611 = sld [smem:[#allocation9 + $0x1a]]
    %v612 = vstv %s611
    %v613 = vmul.f32 %v110, %v612
    %s614 = sld [smem:[#allocation9 + $0x9a]]
    %v615 = vstv %s614
    %v616 = vmul.f32 %v111, %v615
    %v617 = vadd.f32 %v613, %v616
    %s618 = sld [smem:[#allocation10 + $0x1a]]
    %v619 = vstv %s618
    %v620 = vadd.f32 %v617, %v619
    %v621 = vmax.f32 %v620, 0.0
    %s622 = sld [smem:[#allocation12 + $0x1a]]
    %v623 = vstv %s622
    %v624 = vmul.f32 %v621, %v623
    %v625 = vadd.f32 %v606, %v624
    %s626 = sld [smem:[#allocation12 + $0x9a]]
    %v627 = vstv %s626
    %v628 = vmul.f32 %v621, %v627
    %v629 = vadd.f32 %v610, %v628
    %s630 = sld [smem:[#allocation9 + $0x1b]]
    %v631 = vstv %s630
    %v632 = vmul.f32 %v110, %v631
    %s633 = sld [smem:[#allocation9 + $0x9b]]
    %v634 = vstv %s633
    %v635 = vmul.f32 %v111, %v634
    %v636 = vadd.f32 %v632, %v635
    %s637 = sld [smem:[#allocation10 + $0x1b]]
    %v638 = vstv %s637
    %v639 = vadd.f32 %v636, %v638
    %v640 = vmax.f32 %v639, 0.0
    %s641 = sld [smem:[#allocation12 + $0x1b]]
    %v642 = vstv %s641
    %v643 = vmul.f32 %v640, %v642
    %v644 = vadd.f32 %v625, %v643
    %s645 = sld [smem:[#allocation12 + $0x9b]]
    %v646 = vstv %s645
    %v647 = vmul.f32 %v640, %v646
    %v648 = vadd.f32 %v629, %v647
    %s649 = sld [smem:[#allocation9 + $0x1c]]
    %v650 = vstv %s649
    %v651 = vmul.f32 %v110, %v650
    %s652 = sld [smem:[#allocation9 + $0x9c]]
    %v653 = vstv %s652
    %v654 = vmul.f32 %v111, %v653
    %v655 = vadd.f32 %v651, %v654
    %s656 = sld [smem:[#allocation10 + $0x1c]]
    %v657 = vstv %s656
    %v658 = vadd.f32 %v655, %v657
    %v659 = vmax.f32 %v658, 0.0
    %s660 = sld [smem:[#allocation12 + $0x1c]]
    %v661 = vstv %s660
    %v662 = vmul.f32 %v659, %v661
    %v663 = vadd.f32 %v644, %v662
    %s664 = sld [smem:[#allocation12 + $0x9c]]
    %v665 = vstv %s664
    %v666 = vmul.f32 %v659, %v665
    %v667 = vadd.f32 %v648, %v666
    %s668 = sld [smem:[#allocation9 + $0x1d]]
    %v669 = vstv %s668
    %v670 = vmul.f32 %v110, %v669
    %s671 = sld [smem:[#allocation9 + $0x9d]]
    %v672 = vstv %s671
    %v673 = vmul.f32 %v111, %v672
    %v674 = vadd.f32 %v670, %v673
    %s675 = sld [smem:[#allocation10 + $0x1d]]
    %v676 = vstv %s675
    %v677 = vadd.f32 %v674, %v676
    %v678 = vmax.f32 %v677, 0.0
    %s679 = sld [smem:[#allocation12 + $0x1d]]
    %v680 = vstv %s679
    %v681 = vmul.f32 %v678, %v680
    %v682 = vadd.f32 %v663, %v681
    %s683 = sld [smem:[#allocation12 + $0x9d]]
    %v684 = vstv %s683
    %v685 = vmul.f32 %v678, %v684
    %v686 = vadd.f32 %v667, %v685
    %s687 = sld [smem:[#allocation9 + $0x1e]]
    %v688 = vstv %s687
    %v689 = vmul.f32 %v110, %v688
    %s690 = sld [smem:[#allocation9 + $0x9e]]
    %v691 = vstv %s690
    %v692 = vmul.f32 %v111, %v691
    %v693 = vadd.f32 %v689, %v692
    %s694 = sld [smem:[#allocation10 + $0x1e]]
    %v695 = vstv %s694
    %v696 = vadd.f32 %v693, %v695
    %v697 = vmax.f32 %v696, 0.0
    %s698 = sld [smem:[#allocation12 + $0x1e]]
    %v699 = vstv %s698
    %v700 = vmul.f32 %v697, %v699
    %v701 = vadd.f32 %v682, %v700
    %s702 = sld [smem:[#allocation12 + $0x9e]]
    %v703 = vstv %s702
    %v704 = vmul.f32 %v697, %v703
    %v705 = vadd.f32 %v686, %v704
    %s706 = sld [smem:[#allocation9 + $0x1f]]
    %v707 = vstv %s706
    %v708 = vmul.f32 %v110, %v707
    %s709 = sld [smem:[#allocation9 + $0x9f]]
    %v710 = vstv %s709
    %v711 = vmul.f32 %v111, %v710
    %v712 = vadd.f32 %v708, %v711
    %s713 = sld [smem:[#allocation10 + $0x1f]]
    %v714 = vstv %s713
    %v715 = vadd.f32 %v712, %v714
    %v716 = vmax.f32 %v715, 0.0
    %s717 = sld [smem:[#allocation12 + $0x1f]]
    %v718 = vstv %s717
    %v719 = vmul.f32 %v716, %v718
    %v720 = vadd.f32 %v701, %v719
    %s721 = sld [smem:[#allocation12 + $0x9f]]
    %v722 = vstv %s721
    %v723 = vmul.f32 %v716, %v722
    %v724 = vadd.f32 %v705, %v723
    %v725 = vrcp.pop %v112
    %v726 = vmul.f32 %v112, %v725
    %v727 = vsub.f32 2.0, %v726
    %v728 = vmul.f32 %v725, %v727
    %v729 = vsub.f32 1.0, %v112
    %v730 = vmul.f32 %v729, %v728
    %v731 = vrsqrt.pop %v730
    %v732 = vmul.f32 %v730, %v731
    %vm733 = vcmp.eq.f32.partialorder %v730, inf
    %v734 = vsel %vm733, %v730, %v732
    %vm735 = vcmp.eq.f32.partialorder %v730, 0.0
    %v736 = vand.u32 %v730, 2147483648
    %v737 = vsel %vm735, %v736, %v734
    %v738 = vmul.f32 %v110, %v728
    %v739 = vmul.f32 %v737, %v720
    %v740 = vsub.f32 %v738, %v739
    %v741 = vmax.f32 %v724, -10.0
    %v742 = vmin.f32 %v741, 10.0
    %v743 = vmul.f32 %v742, 1.442695
    %v744 = vpow.pop %v743
    %v745 = vmul.f32 %v737, %v744
    %v746 = vmax.f32 %v745, 0.02
    %vm747 = vcmp.lt.f32.partialorder %v111, 1e-06
    %v748 = vsel %vm747, 0.0, %v740
    %v749 = vsel %vm747, 1.0, %v746
    %v750 = vmax.f32 %v748, -1.0
    %v751 = vmin.f32 %v750, 1.0
    %v752 = vrcp.pop %v749
    %v753 = vmul.f32 %v749, %v752
    %v754 = vsub.f32 2.0, %v753
    %v755 = vmul.f32 %v752, %v754
    %v756 = vmul.f32 %v755, 0.70710677
    %v757 = vsub.f32 0.0, %v751
    %v758 = vmul.f32 %v757, %v756
    %v759 = vmul.f32 %v756, -0.875
    %v760 = vadd.f32 %v759, %v758
    %vm761 = vcmp.ge.f32.partialorder %v760, 0.0
    %v762 = vsel %vm761, 1.0, -1.0
    %v763 = vand.u32 2147483647, %v760
    %v764 = vmul.f32 %v763, 0.3275911
    %v765 = vadd.f32 %v764, 1.0
    %v766 = vrcp.pop %v765
    %v767 = vmul.f32 %v765, %v766
    %v768 = vsub.f32 2.0, %v767
    %v769 = vmul.f32 %v766, %v768
    %v770 = vmul.f32 %v769, 1.0614054
    %v771 = vadd.f32 %v770, -1.4531521
    %v772 = vmul.f32 %v771, %v769
    %v773 = vadd.f32 %v772, 1.4214138
    %v774 = vmul.f32 %v773, %v769
    %v775 = vadd.f32 %v774, -0.28449672
    %v776 = vmul.f32 %v775, %v769
    %v777 = vadd.f32 %v776, 0.2548296
    %v778 = vmul.f32 %v777, %v769
    %v779 = vsub.f32 0.0, %v763
    %v780 = vmul.f32 %v779, %v763
    %v781 = vmul.f32 %v780, 1.442695
    %v782 = vpow.pop %v781
    %v783 = vmul.f32 %v778, %v782
    %v784 = vsub.f32 1.0, %v783
    %v785 = vmul.f32 %v762, %v784
    %v786 = vadd.f32 %v785, 1.0
    %v787 = vmul.f32 %v786, 0.5
    %788 = vst [vmem:[#allocation15] sm:$0xff] %v787
    %v789 = vmul.f32 %v756, -0.75
    %v790 = vadd.f32 %v789, %v758
    %vm791 = vcmp.ge.f32.partialorder %v790, 0.0
    %v792 = vsel %vm791, 1.0, -1.0
    %v793 = vand.u32 2147483647, %v790
    %v794 = vmul.f32 %v793, 0.3275911
    %v795 = vadd.f32 %v794, 1.0
    %v796 = vrcp.pop %v795
    %v797 = vmul.f32 %v795, %v796
    %v798 = vsub.f32 2.0, %v797
    %v799 = vmul.f32 %v796, %v798
    %v800 = vmul.f32 %v799, 1.0614054
    %v801 = vadd.f32 %v800, -1.4531521
    %v802 = vmul.f32 %v801, %v799
    %v803 = vadd.f32 %v802, 1.4214138
    %v804 = vmul.f32 %v803, %v799
    %v805 = vadd.f32 %v804, -0.28449672
    %v806 = vmul.f32 %v805, %v799
    %v807 = vadd.f32 %v806, 0.2548296
    %v808 = vmul.f32 %v807, %v799
    %v809 = vsub.f32 0.0, %v793
    %v810 = vmul.f32 %v809, %v793
    %v811 = vmul.f32 %v810, 1.442695
    %v812 = vpow.pop %v811
    %v813 = vmul.f32 %v808, %v812
    %v814 = vsub.f32 1.0, %v813
    %v815 = vmul.f32 %v792, %v814
    %v816 = vadd.f32 %v815, 1.0
    %v817 = vmul.f32 %v816, 0.5
    %v818 = vsub.f32 %v817, %v787
    %s819 = scalar_lea.vmem [#allocation15], 8
    %820 = vst [vmem:[%s819] sm:$0xff] %v818
    %v821 = vmul.f32 %v756, -0.625
    %v822 = vadd.f32 %v821, %v758
    %vm823 = vcmp.ge.f32.partialorder %v822, 0.0
    %v824 = vsel %vm823, 1.0, -1.0
    %v825 = vand.u32 2147483647, %v822
    %v826 = vmul.f32 %v825, 0.3275911
    %v827 = vadd.f32 %v826, 1.0
    %v828 = vrcp.pop %v827
    %v829 = vmul.f32 %v827, %v828
    %v830 = vsub.f32 2.0, %v829
    %v831 = vmul.f32 %v828, %v830
    %v832 = vmul.f32 %v831, 1.0614054
    %v833 = vadd.f32 %v832, -1.4531521
    %v834 = vmul.f32 %v833, %v831
    %v835 = vadd.f32 %v834, 1.4214138
    %v836 = vmul.f32 %v835, %v831
    %v837 = vadd.f32 %v836, -0.28449672
    %v838 = vmul.f32 %v837, %v831
    %v839 = vadd.f32 %v838, 0.2548296
    %v840 = vmul.f32 %v839, %v831
    %v841 = vsub.f32 0.0, %v825
    %v842 = vmul.f32 %v841, %v825
    %v843 = vmul.f32 %v842, 1.442695
    %v844 = vpow.pop %v843
    %v845 = vmul.f32 %v840, %v844
    %v846 = vsub.f32 1.0, %v845
    %v847 = vmul.f32 %v824, %v846
    %v848 = vadd.f32 %v847, 1.0
    %v849 = vmul.f32 %v848, 0.5
    %v850 = vsub.f32 %v849, %v817
    %s851 = scalar_lea.vmem [#allocation15], 16
    %852 = vst [vmem:[%s851] sm:$0xff] %v850
    %v853 = vmul.f32 %v756, -0.5
    %v854 = vadd.f32 %v853, %v758
    %vm855 = vcmp.ge.f32.partialorder %v854, 0.0
    %v856 = vsel %vm855, 1.0, -1.0
    %v857 = vand.u32 2147483647, %v854
    %v858 = vmul.f32 %v857, 0.3275911
    %v859 = vadd.f32 %v858, 1.0
    %v860 = vrcp.pop %v859
    %v861 = vmul.f32 %v859, %v860
    %v862 = vsub.f32 2.0, %v861
    %v863 = vmul.f32 %v860, %v862
    %v864 = vmul.f32 %v863, 1.0614054
    %v865 = vadd.f32 %v864, -1.4531521
    %v866 = vmul.f32 %v865, %v863
    %v867 = vadd.f32 %v866, 1.4214138
    %v868 = vmul.f32 %v867, %v863
    %v869 = vadd.f32 %v868, -0.28449672
    %v870 = vmul.f32 %v869, %v863
    %v871 = vadd.f32 %v870, 0.2548296
    %v872 = vmul.f32 %v871, %v863
    %v873 = vsub.f32 0.0, %v857
    %v874 = vmul.f32 %v873, %v857
    %v875 = vmul.f32 %v874, 1.442695
    %v876 = vpow.pop %v875
    %v877 = vmul.f32 %v872, %v876
    %v878 = vsub.f32 1.0, %v877
    %v879 = vmul.f32 %v856, %v878
    %v880 = vadd.f32 %v879, 1.0
    %v881 = vmul.f32 %v880, 0.5
    %v882 = vsub.f32 %v881, %v849
    %s883 = scalar_lea.vmem [#allocation15], 24
    %884 = vst [vmem:[%s883] sm:$0xff] %v882
    %v885 = vmul.f32 %v756, -0.375
    %v886 = vadd.f32 %v885, %v758
    %vm887 = vcmp.ge.f32.partialorder %v886, 0.0
    %v888 = vsel %vm887, 1.0, -1.0
    %v889 = vand.u32 2147483647, %v886
    %v890 = vmul.f32 %v889, 0.3275911
    %v891 = vadd.f32 %v890, 1.0
    %v892 = vrcp.pop %v891
    %v893 = vmul.f32 %v891, %v892
    %v894 = vsub.f32 2.0, %v893
    %v895 = vmul.f32 %v892, %v894
    %v896 = vmul.f32 %v895, 1.0614054
    %v897 = vadd.f32 %v896, -1.4531521
    %v898 = vmul.f32 %v897, %v895
    %v899 = vadd.f32 %v898, 1.4214138
    %v900 = vmul.f32 %v899, %v895
    %v901 = vadd.f32 %v900, -0.28449672
    %v902 = vmul.f32 %v901, %v895
    %v903 = vadd.f32 %v902, 0.2548296
    %v904 = vmul.f32 %v903, %v895
    %v905 = vsub.f32 0.0, %v889
    %v906 = vmul.f32 %v905, %v889
    %v907 = vmul.f32 %v906, 1.442695
    %v908 = vpow.pop %v907
    %v909 = vmul.f32 %v904, %v908
    %v910 = vsub.f32 1.0, %v909
    %v911 = vmul.f32 %v888, %v910
    %v912 = vadd.f32 %v911, 1.0
    %v913 = vmul.f32 %v912, 0.5
    %v914 = vsub.f32 %v913, %v881
    %s915 = scalar_lea.vmem [#allocation15], 32
    %916 = vst [vmem:[%s915] sm:$0xff] %v914
    %v917 = vmul.f32 %v756, -0.25
    %v918 = vadd.f32 %v917, %v758
    %vm919 = vcmp.ge.f32.partialorder %v918, 0.0
    %v920 = vsel %vm919, 1.0, -1.0
    %v921 = vand.u32 2147483647, %v918
    %v922 = vmul.f32 %v921, 0.3275911
    %v923 = vadd.f32 %v922, 1.0
    %v924 = vrcp.pop %v923
    %v925 = vmul.f32 %v923, %v924
    %v926 = vsub.f32 2.0, %v925
    %v927 = vmul.f32 %v924, %v926
    %v928 = vmul.f32 %v927, 1.0614054
    %v929 = vadd.f32 %v928, -1.4531521
    %v930 = vmul.f32 %v929, %v927
    %v931 = vadd.f32 %v930, 1.4214138
    %v932 = vmul.f32 %v931, %v927
    %v933 = vadd.f32 %v932, -0.28449672
    %v934 = vmul.f32 %v933, %v927
    %v935 = vadd.f32 %v934, 0.2548296
    %v936 = vmul.f32 %v935, %v927
    %v937 = vsub.f32 0.0, %v921
    %v938 = vmul.f32 %v937, %v921
    %v939 = vmul.f32 %v938, 1.442695
    %v940 = vpow.pop %v939
    %v941 = vmul.f32 %v936, %v940
    %v942 = vsub.f32 1.0, %v941
    %v943 = vmul.f32 %v920, %v942
    %v944 = vadd.f32 %v943, 1.0
    %v945 = vmul.f32 %v944, 0.5
    %v946 = vsub.f32 %v945, %v913
    %s947 = scalar_lea.vmem [#allocation15], 40
    %948 = vst [vmem:[%s947] sm:$0xff] %v946
    %v949 = vmul.f32 %v756, -0.125
    %v950 = vadd.f32 %v949, %v758
    %vm951 = vcmp.ge.f32.partialorder %v950, 0.0
    %v952 = vsel %vm951, 1.0, -1.0
    %v953 = vand.u32 2147483647, %v950
    %v954 = vmul.f32 %v953, 0.3275911
    %v955 = vadd.f32 %v954, 1.0
    %v956 = vrcp.pop %v955
    %v957 = vmul.f32 %v955, %v956
    %v958 = vsub.f32 2.0, %v957
    %v959 = vmul.f32 %v956, %v958
    %v960 = vmul.f32 %v959, 1.0614054
    %v961 = vadd.f32 %v960, -1.4531521
    %v962 = vmul.f32 %v961, %v959
    %v963 = vadd.f32 %v962, 1.4214138
    %v964 = vmul.f32 %v963, %v959
    %v965 = vadd.f32 %v964, -0.28449672
    %v966 = vmul.f32 %v965, %v959
    %v967 = vadd.f32 %v966, 0.2548296
    %v968 = vmul.f32 %v967, %v959
    %v969 = vsub.f32 0.0, %v953
    %v970 = vmul.f32 %v969, %v953
    %v971 = vmul.f32 %v970, 1.442695
    %v972 = vpow.pop %v971
    %v973 = vmul.f32 %v968, %v972
    %v974 = vsub.f32 1.0, %v973
    %v975 = vmul.f32 %v952, %v974
    %v976 = vadd.f32 %v975, 1.0
    %v977 = vmul.f32 %v976, 0.5
    %v978 = vsub.f32 %v977, %v945
    %s979 = scalar_lea.vmem [#allocation15], 48
    %980 = vst [vmem:[%s979] sm:$0xff] %v978
    %v981 = vmul.f32 %v756, 0.0
    %v982 = vadd.f32 %v981, %v758
    %vm983 = vcmp.ge.f32.partialorder %v982, 0.0
    %v984 = vsel %vm983, 1.0, -1.0
    %v985 = vand.u32 2147483647, %v982
    %v986 = vmul.f32 %v985, 0.3275911
    %v987 = vadd.f32 %v986, 1.0
    %v988 = vrcp.pop %v987
    %v989 = vmul.f32 %v987, %v988
    %v990 = vsub.f32 2.0, %v989
    %v991 = vmul.f32 %v988, %v990
    %v992 = vmul.f32 %v991, 1.0614054
    %v993 = vadd.f32 %v992, -1.4531521
    %v994 = vmul.f32 %v993, %v991
    %v995 = vadd.f32 %v994, 1.4214138
    %v996 = vmul.f32 %v995, %v991
    %v997 = vadd.f32 %v996, -0.28449672
    %v998 = vmul.f32 %v997, %v991
    %v999 = vadd.f32 %v998, 0.2548296
    %v1000 = vmul.f32 %v999, %v991
    %v1001 = vsub.f32 0.0, %v985
    %v1002 = vmul.f32 %v1001, %v985
    %v1003 = vmul.f32 %v1002, 1.442695
    %v1004 = vpow.pop %v1003
    %v1005 = vmul.f32 %v1000, %v1004
    %v1006 = vsub.f32 1.0, %v1005
    %v1007 = vmul.f32 %v984, %v1006
    %v1008 = vadd.f32 %v1007, 1.0
    %v1009 = vmul.f32 %v1008, 0.5
    %v1010 = vsub.f32 %v1009, %v977
    %s1011 = scalar_lea.vmem [#allocation15], 56
    %1012 = vst [vmem:[%s1011] sm:$0xff] %v1010
    %v1013 = vmul.f32 %v756, 0.125
    %v1014 = vadd.f32 %v1013, %v758
    %vm1015 = vcmp.ge.f32.partialorder %v1014, 0.0
    %v1016 = vsel %vm1015, 1.0, -1.0
    %v1017 = vand.u32 2147483647, %v1014
    %v1018 = vmul.f32 %v1017, 0.3275911
    %v1019 = vadd.f32 %v1018, 1.0
    %v1020 = vrcp.pop %v1019
    %v1021 = vmul.f32 %v1019, %v1020
    %v1022 = vsub.f32 2.0, %v1021
    %v1023 = vmul.f32 %v1020, %v1022
    %v1024 = vmul.f32 %v1023, 1.0614054
    %v1025 = vadd.f32 %v1024, -1.4531521
    %v1026 = vmul.f32 %v1025, %v1023
    %v1027 = vadd.f32 %v1026, 1.4214138
    %v1028 = vmul.f32 %v1027, %v1023
    %v1029 = vadd.f32 %v1028, -0.28449672
    %v1030 = vmul.f32 %v1029, %v1023
    %v1031 = vadd.f32 %v1030, 0.2548296
    %v1032 = vmul.f32 %v1031, %v1023
    %v1033 = vsub.f32 0.0, %v1017
    %v1034 = vmul.f32 %v1033, %v1017
    %v1035 = vmul.f32 %v1034, 1.442695
    %v1036 = vpow.pop %v1035
    %v1037 = vmul.f32 %v1032, %v1036
    %v1038 = vsub.f32 1.0, %v1037
    %v1039 = vmul.f32 %v1016, %v1038
    %v1040 = vadd.f32 %v1039, 1.0
    %v1041 = vmul.f32 %v1040, 0.5
    %v1042 = vsub.f32 %v1041, %v1009
    %s1043 = scalar_lea.vmem [#allocation15], 64
    %1044 = vst [vmem:[%s1043] sm:$0xff] %v1042
    %v1045 = vmul.f32 %v756, 0.25
    %v1046 = vadd.f32 %v1045, %v758
    %vm1047 = vcmp.ge.f32.partialorder %v1046, 0.0
    %v1048 = vsel %vm1047, 1.0, -1.0
    %v1049 = vand.u32 2147483647, %v1046
    %v1050 = vmul.f32 %v1049, 0.3275911
    %v1051 = vadd.f32 %v1050, 1.0
    %v1052 = vrcp.pop %v1051
    %v1053 = vmul.f32 %v1051, %v1052
    %v1054 = vsub.f32 2.0, %v1053
    %v1055 = vmul.f32 %v1052, %v1054
    %v1056 = vmul.f32 %v1055, 1.0614054
    %v1057 = vadd.f32 %v1056, -1.4531521
    %v1058 = vmul.f32 %v1057, %v1055
    %v1059 = vadd.f32 %v1058, 1.4214138
    %v1060 = vmul.f32 %v1059, %v1055
    %v1061 = vadd.f32 %v1060, -0.28449672
    %v1062 = vmul.f32 %v1061, %v1055
    %v1063 = vadd.f32 %v1062, 0.2548296
    %v1064 = vmul.f32 %v1063, %v1055
    %v1065 = vsub.f32 0.0, %v1049
    %v1066 = vmul.f32 %v1065, %v1049
    %v1067 = vmul.f32 %v1066, 1.442695
    %v1068 = vpow.pop %v1067
    %v1069 = vmul.f32 %v1064, %v1068
    %v1070 = vsub.f32 1.0, %v1069
    %v1071 = vmul.f32 %v1048, %v1070
    %v1072 = vadd.f32 %v1071, 1.0
    %v1073 = vmul.f32 %v1072, 0.5
    %v1074 = vsub.f32 %v1073, %v1041
    %s1075 = scalar_lea.vmem [#allocation15], 72
    %1076 = vst [vmem:[%s1075] sm:$0xff] %v1074
    %v1077 = vmul.f32 %v756, 0.375
    %v1078 = vadd.f32 %v1077, %v758
    %vm1079 = vcmp.ge.f32.partialorder %v1078, 0.0
    %v1080 = vsel %vm1079, 1.0, -1.0
    %v1081 = vand.u32 2147483647, %v1078
    %v1082 = vmul.f32 %v1081, 0.3275911
    %v1083 = vadd.f32 %v1082, 1.0
    %v1084 = vrcp.pop %v1083
    %v1085 = vmul.f32 %v1083, %v1084
    %v1086 = vsub.f32 2.0, %v1085
    %v1087 = vmul.f32 %v1084, %v1086
    %v1088 = vmul.f32 %v1087, 1.0614054
    %v1089 = vadd.f32 %v1088, -1.4531521
    %v1090 = vmul.f32 %v1089, %v1087
    %v1091 = vadd.f32 %v1090, 1.4214138
    %v1092 = vmul.f32 %v1091, %v1087
    %v1093 = vadd.f32 %v1092, -0.28449672
    %v1094 = vmul.f32 %v1093, %v1087
    %v1095 = vadd.f32 %v1094, 0.2548296
    %v1096 = vmul.f32 %v1095, %v1087
    %v1097 = vsub.f32 0.0, %v1081
    %v1098 = vmul.f32 %v1097, %v1081
    %v1099 = vmul.f32 %v1098, 1.442695
    %v1100 = vpow.pop %v1099
    %v1101 = vmul.f32 %v1096, %v1100
    %v1102 = vsub.f32 1.0, %v1101
    %v1103 = vmul.f32 %v1080, %v1102
    %v1104 = vadd.f32 %v1103, 1.0
    %v1105 = vmul.f32 %v1104, 0.5
    %v1106 = vsub.f32 %v1105, %v1073
    %s1107 = scalar_lea.vmem [#allocation15], 80
    %1108 = vst [vmem:[%s1107] sm:$0xff] %v1106
    %v1109 = vmul.f32 %v756, 0.5
    %v1110 = vadd.f32 %v1109, %v758
    %vm1111 = vcmp.ge.f32.partialorder %v1110, 0.0
    %v1112 = vsel %vm1111, 1.0, -1.0
    %v1113 = vand.u32 2147483647, %v1110
    %v1114 = vmul.f32 %v1113, 0.3275911
    %v1115 = vadd.f32 %v1114, 1.0
    %v1116 = vrcp.pop %v1115
    %v1117 = vmul.f32 %v1115, %v1116
    %v1118 = vsub.f32 2.0, %v1117
    %v1119 = vmul.f32 %v1116, %v1118
    %v1120 = vmul.f32 %v1119, 1.0614054
    %v1121 = vadd.f32 %v1120, -1.4531521
    %v1122 = vmul.f32 %v1121, %v1119
    %v1123 = vadd.f32 %v1122, 1.4214138
    %v1124 = vmul.f32 %v1123, %v1119
    %v1125 = vadd.f32 %v1124, -0.28449672
    %v1126 = vmul.f32 %v1125, %v1119
    %v1127 = vadd.f32 %v1126, 0.2548296
    %v1128 = vmul.f32 %v1127, %v1119
    %v1129 = vsub.f32 0.0, %v1113
    %v1130 = vmul.f32 %v1129, %v1113
    %v1131 = vmul.f32 %v1130, 1.442695
    %v1132 = vpow.pop %v1131
    %v1133 = vmul.f32 %v1128, %v1132
    %v1134 = vsub.f32 1.0, %v1133
    %v1135 = vmul.f32 %v1112, %v1134
    %v1136 = vadd.f32 %v1135, 1.0
    %v1137 = vmul.f32 %v1136, 0.5
    %v1138 = vsub.f32 %v1137, %v1105
    %s1139 = scalar_lea.vmem [#allocation15], 88
    %1140 = vst [vmem:[%s1139] sm:$0xff] %v1138
    %v1141 = vmul.f32 %v756, 0.625
    %v1142 = vadd.f32 %v1141, %v758
    %vm1143 = vcmp.ge.f32.partialorder %v1142, 0.0
    %v1144 = vsel %vm1143, 1.0, -1.0
    %v1145 = vand.u32 2147483647, %v1142
    %v1146 = vmul.f32 %v1145, 0.3275911
    %v1147 = vadd.f32 %v1146, 1.0
    %v1148 = vrcp.pop %v1147
    %v1149 = vmul.f32 %v1147, %v1148
    %v1150 = vsub.f32 2.0, %v1149
    %v1151 = vmul.f32 %v1148, %v1150
    %v1152 = vmul.f32 %v1151, 1.0614054
    %v1153 = vadd.f32 %v1152, -1.4531521
    %v1154 = vmul.f32 %v1153, %v1151
    %v1155 = vadd.f32 %v1154, 1.4214138
    %v1156 = vmul.f32 %v1155, %v1151
    %v1157 = vadd.f32 %v1156, -0.28449672
    %v1158 = vmul.f32 %v1157, %v1151
    %v1159 = vadd.f32 %v1158, 0.2548296
    %v1160 = vmul.f32 %v1159, %v1151
    %v1161 = vsub.f32 0.0, %v1145
    %v1162 = vmul.f32 %v1161, %v1145
    %v1163 = vmul.f32 %v1162, 1.442695
    %v1164 = vpow.pop %v1163
    %v1165 = vmul.f32 %v1160, %v1164
    %v1166 = vsub.f32 1.0, %v1165
    %v1167 = vmul.f32 %v1144, %v1166
    %v1168 = vadd.f32 %v1167, 1.0
    %v1169 = vmul.f32 %v1168, 0.5
    %v1170 = vsub.f32 %v1169, %v1137
    %s1171 = scalar_lea.vmem [#allocation15], 96
    %1172 = vst [vmem:[%s1171] sm:$0xff] %v1170
    %v1173 = vmul.f32 %v756, 0.75
    %v1174 = vadd.f32 %v1173, %v758
    %vm1175 = vcmp.ge.f32.partialorder %v1174, 0.0
    %v1176 = vsel %vm1175, 1.0, -1.0
    %v1177 = vand.u32 2147483647, %v1174
    %v1178 = vmul.f32 %v1177, 0.3275911
    %v1179 = vadd.f32 %v1178, 1.0
    %v1180 = vrcp.pop %v1179
    %v1181 = vmul.f32 %v1179, %v1180
    %v1182 = vsub.f32 2.0, %v1181
    %v1183 = vmul.f32 %v1180, %v1182
    %v1184 = vmul.f32 %v1183, 1.0614054
    %v1185 = vadd.f32 %v1184, -1.4531521
    %v1186 = vmul.f32 %v1185, %v1183
    %v1187 = vadd.f32 %v1186, 1.4214138
    %v1188 = vmul.f32 %v1187, %v1183
    %v1189 = vadd.f32 %v1188, -0.28449672
    %v1190 = vmul.f32 %v1189, %v1183
    %v1191 = vadd.f32 %v1190, 0.2548296
    %v1192 = vmul.f32 %v1191, %v1183
    %v1193 = vsub.f32 0.0, %v1177
    %v1194 = vmul.f32 %v1193, %v1177
    %v1195 = vmul.f32 %v1194, 1.442695
    %v1196 = vpow.pop %v1195
    %v1197 = vmul.f32 %v1192, %v1196
    %v1198 = vsub.f32 1.0, %v1197
    %v1199 = vmul.f32 %v1176, %v1198
    %v1200 = vadd.f32 %v1199, 1.0
    %v1201 = vmul.f32 %v1200, 0.5
    %v1202 = vsub.f32 %v1201, %v1169
    %s1203 = scalar_lea.vmem [#allocation15], 104
    %1204 = vst [vmem:[%s1203] sm:$0xff] %v1202
    %v1205 = vmul.f32 %v756, 0.875
    %v1206 = vadd.f32 %v1205, %v758
    %vm1207 = vcmp.ge.f32.partialorder %v1206, 0.0
    %v1208 = vsel %vm1207, 1.0, -1.0
    %v1209 = vand.u32 2147483647, %v1206
    %v1210 = vmul.f32 %v1209, 0.3275911
    %v1211 = vadd.f32 %v1210, 1.0
    %v1212 = vrcp.pop %v1211
    %v1213 = vmul.f32 %v1211, %v1212
    %v1214 = vsub.f32 2.0, %v1213
    %v1215 = vmul.f32 %v1212, %v1214
    %v1216 = vmul.f32 %v1215, 1.0614054
    %v1217 = vadd.f32 %v1216, -1.4531521
    %v1218 = vmul.f32 %v1217, %v1215
    %v1219 = vadd.f32 %v1218, 1.4214138
    %v1220 = vmul.f32 %v1219, %v1215
    %v1221 = vadd.f32 %v1220, -0.28449672
    %v1222 = vmul.f32 %v1221, %v1215
    %v1223 = vadd.f32 %v1222, 0.2548296
    %v1224 = vmul.f32 %v1223, %v1215
    %v1225 = vsub.f32 0.0, %v1209
    %v1226 = vmul.f32 %v1225, %v1209
    %v1227 = vmul.f32 %v1226, 1.442695
    %v1228 = vpow.pop %v1227
    %v1229 = vmul.f32 %v1224, %v1228
    %v1230 = vsub.f32 1.0, %v1229
    %v1231 = vmul.f32 %v1208, %v1230
    %v1232 = vadd.f32 %v1231, 1.0
    %v1233 = vmul.f32 %v1232, 0.5
    %v1234 = vsub.f32 %v1233, %v1201
    %s1235 = scalar_lea.vmem [#allocation15], 112
    %1236 = vst [vmem:[%s1235] sm:$0xff] %v1234
    %v1237 = vsub.f32 1.0, %v1233
    %s1238 = scalar_lea.vmem [#allocation15], 120
    %1239 = vst [vmem:[%s1238] sm:$0xff] %v1237
    // Predicated region
    $region58: #{tpu_custom_call.1} parent=1 // pred_check
      _
    $region59: #{tpu_custom_call.1} parent=1 // pred_check_branch
      %1241 = sbr.rel (0) target = $region61
    $region60: #{tpu_custom_call.1} parent=1 // pred_region
      %s1243 = ssub.s32 2048, 2048
      %1244 = vsyncadd [#allocation4], %s1243
      %s1245 = sshll.u32 [#allocation15], 4
      %s1246 = int_to_ptr.vmem [resolvable:$true] %s1245
      %1251 = dma.vmem_to_hbm [thread:$0]  %s1246, 2048, %s7, [#allocation4], 128, 128, 8
    $region61: #{tpu_custom_call.1} parent=1 // pred_fallthru
      _
    // Predicated region
    $region62: #{tpu_custom_call.1} parent=1 // pred_check
      _
    $region63: #{tpu_custom_call.1} parent=1 // pred_check_branch
      %1253 = sbr.rel (0) target = $region65
    $region64: #{tpu_custom_call.1} parent=1 // pred_region
      %1254 = dma.done [#allocation4], 2048
    $region65: #{tpu_custom_call.1} parent=1 // pred_fallthru
      _
    %1255 = vsyncpa [#allocation3], 1
    %1256 = vsyncpa [#allocation7], 1
    %1257 = vsyncpa [#allocation4], 1
    %1258 = vsyncpa [#allocation5], 1
    %1259 = vsyncpa [#allocation11], 1
    %1260 = vsyncpa [#allocation14], 1

</llo_original>
